<compile_context>
chip_gen: v7x
topology: tpu7x:2x2x1
jax: 0.10.0
libtpu: 0.0.40
codegen_flags: <defaults>
</compile_context>

<pallas_src>
import math
import functools

import jax
import jax.numpy as jnp
from jax import lax
from jax.experimental import pallas as pl
from jax.experimental.pallas import tpu as pltpu


# ----------------------------------------------------------------------------
# helpers
# ----------------------------------------------------------------------------
def _batch_block(B, max_bb=8):
    """Largest divisor of B (<= max_bb) that leaves >= 2 grid steps so a v7x
    chip can shard the 'parallel' axis over both TensorCores.  On v6e/v5e
    (single TC) the extra grid step costs only ~0.35 us, which is negligible
    at these sizes."""
    if B <= 1:
        return 1
    for cand in range(min(max_bb, B // 2), 0, -1):
        if B % cand == 0:
            return cand
    return 1


def _vmem_limit_bytes(arrays, out_bytes):
    """Explicit scoped-VMEM limit: double-buffered operands + headroom.
    Raises the 16 MiB v5e default when needed; capped under v7x's 64 MiB."""
    total = sum(int(a.size) * a.dtype.itemsize for a in arrays) + int(out_bytes)
    return int(min(max(2 * total + (16 << 20), 32 << 20), 60 << 20))


def _layernorm(x, gamma, beta, eps=1e-5):
    mean = jnp.mean(x, axis=-1, keepdims=True)
    var = jnp.mean((x - mean) ** 2, axis=-1, keepdims=True)
    return (x - mean) * lax.rsqrt(var + eps) * gamma + beta


# ----------------------------------------------------------------------------
# Kernel 1: full transformer encoder stack (all layers fused) with the
# positional add and the mixer fused in.  One batch block per grid step.
# Weight layouts (per layer, pre-transposed so the kernel computes x @ W,
# heads folded into the N dimension):
#   wq/wk/wv/wo : (L, D, D)  bf16      bq/bk/bv/bo : (L, 1, D)  f32
#   w1 : (L, D, Dff) bf16  b1 : (L, 1, Dff) f32
#   w2 : (L, Dff, D) bf16  b2 : (L, 1, D)  f32
#   g1/be1/g2/be2 : (L, 1, D) f32
# ----------------------------------------------------------------------------
def encoder_stack_kernel(mix_ref, emb_ref, pos_ref, km_ref,
                         wq_ref, wk_ref, wv_ref, bq_ref, bk_ref, bv_ref,
                         wo_ref, bo_ref, w1_ref, b1_ref, w2_ref, b2_ref,
                         g1_ref, be1_ref, g2_ref, be2_ref, o_ref,
                         *, n_heads):
    emb = emb_ref[...]                                   # (bb, S, D) f32
    x3 = emb + pos_ref[...]                              # fused positional add
    km = km_ref[...]                                     # (bb, 1, S) 1=valid
    bb, S, D = x3.shape
    n_layers = wq_ref.shape[0]
    hd = D // n_heads
    scale = 1.0 / math.sqrt(hd)

    # key-padding additive bias, layer/head-invariant -> hoisted
    neg_bias = (1.0 - km) * (-1e9)                       # (bb, 1, S)

    # per-head lane masks (trace-time constants).  Selecting a head's
    # contiguous hd-wide column group by masking keeps every projection fused
    # over heads (no sub-128 lane slices, no transposes) and is exact math.
    lane = lax.broadcasted_iota(jnp.int32, (1, 1, D), 2)
    head_masks = [((lane >= h * hd) & (lane < (h + 1) * hd)).astype(jnp.float32)
                  for h in range(n_heads)]

    x2d = x3.reshape(bb * S, D)                          # carried activation (f32)

    for li in range(n_layers):
        # ---- fused-over-heads Q/K/V projections: (bb*S, D) @ (D, D) on MXU --
        xb = x2d.astype(jnp.bfloat16)
        q2d = jnp.dot(xb, wq_ref[li], preferred_element_type=jnp.float32) + bq_ref[li]
        k2d = jnp.dot(xb, wk_ref[li], preferred_element_type=jnp.float32) + bk_ref[li]
        v2d = jnp.dot(xb, wv_ref[li], preferred_element_type=jnp.float32) + bv_ref[li]

        q3 = q2d.reshape(bb, S, D)
        k3b = k2d.reshape(bb, S, D).astype(jnp.bfloat16)
        v3b = v2d.reshape(bb, S, D).astype(jnp.bfloat16)

        # ---- per-head attention via head-column masking ---------------------
        ctx = jnp.zeros((bb, S, D), jnp.float32)
        for hm in head_masks:
            qh = (q3 * hm).astype(jnp.bfloat16)          # zero other heads' cols
            s = jnp.einsum('bqe,bke->bqk', qh, k3b,
                           preferred_element_type=jnp.float32) * scale + neg_bias
            s = s - jnp.max(s, axis=-1, keepdims=True)
            p = jnp.exp(s)                               # f32 softmax stats
            p = p * pl.reciprocal(jnp.sum(p, axis=-1, keepdims=True), approx=True)
            ch = jnp.einsum('bqk,bke->bqe', p.astype(jnp.bfloat16), v3b,
                            preferred_element_type=jnp.float32)
            ctx = ctx + ch * hm                          # keep this head's columns

        # ---- output projection: one (bb*S, D) @ (D, D) matmul ---------------
        attn2d = jnp.dot(ctx.reshape(bb * S, D).astype(jnp.bfloat16), wo_ref[li],
                         preferred_element_type=jnp.float32) + bo_ref[li]

        # ---- residual + post-norm + FFN + residual + post-norm --------------
        x1 = _layernorm(x2d + attn2d, g1_ref[li], be1_ref[li])
        h1 = jnp.maximum(
            jnp.dot(x1.astype(jnp.bfloat16), w1_ref[li],
                    preferred_element_type=jnp.float32) + b1_ref[li], 0.0)
        ff = jnp.dot(h1.astype(jnp.bfloat16), w2_ref[li],
                     preferred_element_type=jnp.float32) + b2_ref[li]
        x2d = _layernorm(x1 + ff, g2_ref[li], be2_ref[li])

    # ---- fused mixer: m*emb + (1-m)*ctx -------------------------------------
    m = mix_ref[0]
    o_ref[...] = m * emb + (1.0 - m) * x2d.reshape(bb, S, D)


def run_encoder(emb, pos, key_mask, mixer, lp, n_heads):
    B, S, D = emb.shape
    bb = _batch_block(B)
    per_batch = lambda b: (b, 0, 0)

    def full_spec(a):
        # whole stacked weight tensor resident in VMEM; constant index map.
        # TODO(synk): pipeline_mode=pl.Buffered(1) (single-buffer) + a per-layer
        # grid axis when scaling L / D up on the 64 MiB-VMEM v7x.
        return pl.BlockSpec(a.shape, lambda b, n=a.ndim: (0,) * n)

    smem = pl.BlockSpec(memory_space=pltpu.MemorySpace.SMEM)
    weights = [lp[k] for k in ("wq", "wk", "wv", "bq", "bk", "bv",
                               "wo", "bo", "w1", "b1", "w2", "b2",
                               "g1", "be1", "g2", "be2")]
    grid_spec = pltpu.PrefetchScalarGridSpec(
        num_scalar_prefetch=0,
        grid=(B // bb,),
        in_specs=[smem,                                         # mixer scalar
                  pl.BlockSpec((bb, S, D), per_batch),          # embeddings
                  pl.BlockSpec((1, S, D), lambda b: (0, 0, 0)),  # positional
                  pl.BlockSpec((bb, 1, S), per_batch)]          # key-pad mask
                 + [full_spec(w) for w in weights],
        out_specs=pl.BlockSpec((bb, S, D), per_batch),
    )
    return pl.pallas_call(
        functools.partial(encoder_stack_kernel, n_heads=n_heads),
        out_shape=jax.ShapeDtypeStruct((B, S, D), jnp.float32),
        grid_spec=grid_spec,
        compiler_params=pltpu.CompilerParams(
            dimension_semantics=("parallel",),
            vmem_limit_bytes=_vmem_limit_bytes(
                [emb, pos, key_mask] + weights, B * S * D * 4)),
    )(mixer, emb, pos, key_mask, *weights)


# ----------------------------------------------------------------------------
# Kernel 2: cosine matrix + Gaussian kernel pooling + scoring heads.
# One batch block per grid step; score written as a lane-dense (bb,1,128) slab.
# ----------------------------------------------------------------------------
def tk_score_kernel(q_ref, d_ref, qm_ref, dm_ref,
                    mu_ref, ninv2s2_ref, nns_ref, logw_ref, lenw_ref, wsw_ref,
                    o_ref):
    q = q_ref[...]        # (bb, Sq, D) f32
    d = d_ref[...]        # (bb, Sd, D) f32
    qm = qm_ref[...]      # (bb, Sq, 1)
    dm = dm_ref[...]      # (bb, 1, Sd)
    n_kernels = mu_ref.shape[0]

    # CosineMatrixAttention: L2-normalize in f32 (rsqrt on EUP), bf16 MXU matmul
    qn = (q * lax.rsqrt(jnp.sum(q * q, axis=-1, keepdims=True) + 1e-26)
          ).astype(jnp.bfloat16)
    dn = (d * lax.rsqrt(jnp.sum(d * d, axis=-1, keepdims=True) + 1e-26)
          ).astype(jnp.bfloat16)
    cos = jnp.einsum('bqd,bkd->bqk', qn, dn,
                     preferred_element_type=jnp.float32)   # (bb, Sq, Sd)

    mask_mat = qm * dm
    cos_m = cos * mask_mat

    # hoisted loop invariants
    doc_len = jnp.sum(dm, axis=-1, keepdims=True)               # (bb, 1, 1)
    inv_dl = pl.reciprocal(doc_len + 1.0, approx=True)          # EUP divide
    qm_nns = qm * nns_ref[0]                                    # (bb, Sq, 1)

    # Gaussian kernels.  Kept in (cos-mu)^2 form: expanding to
    # a*cos^2 + b*cos + c cancels catastrophically for the exact-match kernel
    # (sigma=1e-4); -1/(2 sigma^2) is folded host-side.  f32 exp keeps
    # semantics identical on v5e (no bf16 EUP).
    acc_log = jnp.zeros_like(qm)                                # (bb, Sq, 1)
    acc_len = jnp.zeros_like(qm)
    for kk in range(n_kernels):
        g = jnp.exp(jnp.square(cos_m - mu_ref[kk]) * ninv2s2_ref[kk]) * mask_mat
        pkq = jnp.sum(g, axis=-1, keepdims=True)                # (bb, Sq, 1)
        acc_log = acc_log + jnp.log2(jnp.maximum(pkq, 1e-10)) * logw_ref[kk]
        acc_len = acc_len + pkq * lenw_ref[kk]

    # single cross-sublane reduction per scoring head, after the loop
    dense_log = jnp.sum(acc_log * qm_nns, axis=1, keepdims=True)           # (bb,1,1)
    dense_len = jnp.sum(acc_len * qm_nns * inv_dl, axis=1, keepdims=True)  # (bb,1,1)
    score = dense_log * wsw_ref[0] + dense_len * wsw_ref[1]                # (bb,1,1)

    o_ref[...] = jnp.broadcast_to(score, o_ref.shape)           # dense (bb,1,128)


def tk_score(q_ctx, d_ctx, q_mask, d_mask,
             mu, neg_inv_2sig2, nn_scaler, log_w, len_w, ws_w):
    B, Sq, D = q_ctx.shape
    _, Sd, _ = d_ctx.shape
    bb = _batch_block(B)
    smem = pl.BlockSpec(memory_space=pltpu.MemorySpace.SMEM)
    qm = q_mask[..., None]                       # (B, Sq, 1)
    dmm = d_mask[:, None, :]                     # (B, 1, Sd)
    grid_spec = pltpu.PrefetchScalarGridSpec(
        num_scalar_prefetch=0,
        grid=(B // bb,),
        in_specs=[
            pl.BlockSpec((bb, Sq, D), lambda b: (b, 0, 0)),
            pl.BlockSpec((bb, Sd, D), lambda b: (b, 0, 0)),
            pl.BlockSpec((bb, Sq, 1), lambda b: (b, 0, 0)),
            pl.BlockSpec((bb, 1, Sd), lambda b: (b, 0, 0)),
            smem, smem, smem, smem, smem, smem,
        ],
        out_specs=pl.BlockSpec((bb, 1, 128), lambda b: (b, 0, 0)),
    )
    out = pl.pallas_call(
        tk_score_kernel,
        out_shape=jax.ShapeDtypeStruct((B, 1, 128), jnp.float32),
        grid_spec=grid_spec,
        compiler_params=pltpu.CompilerParams(
            dimension_semantics=("parallel",),
            vmem_limit_bytes=_vmem_limit_bytes(
                [q_ctx, d_ctx, qm, dmm], B * 128 * 4)),
    )(q_ctx, d_ctx, qm, dmm,
      mu, neg_inv_2sig2, nn_scaler, log_w, len_w, ws_w)
    return out[:, 0, 0]


# ----------------------------------------------------------------------------
# Plain-JAX glue: embeddings, positional features, params, forward.
# ----------------------------------------------------------------------------
def kernel_mus(n_kernels):
    l_mu = [1.0]
    if n_kernels == 1:
        return l_mu
    bin_size = 2.0 / (n_kernels - 1)
    l_mu.append(1 - bin_size / 2)
    for i in range(1, n_kernels - 1):
        l_mu.append(l_mu[i] - bin_size)
    return l_mu


def kernel_sigmas(n_kernels):
    l_sigma = [0.0001]
    if n_kernels == 1:
        return l_sigma
    bin_size = 2.0 / (n_kernels - 1)
    l_sigma += [0.5 * bin_size] * (n_kernels - 1)
    return l_sigma


def get_positional_features(dim, length, min_ts=1.0, max_ts=10000.0):
    positions = jnp.arange(length, dtype=jnp.float32)
    num_ts = dim // 2
    ts = jnp.arange(num_ts, dtype=jnp.float32)
    log_inc = math.log(max_ts / min_ts) / float(num_ts - 1)
    inv = min_ts * jnp.exp(ts * -log_inc)
    scaled = positions[:, None] * inv[None, :]
    pe = jnp.concatenate([jnp.sin(scaled), jnp.cos(scaled)], axis=1)
    if dim % 2 != 0:
        pe = jnp.concatenate([pe, jnp.zeros((length, 1), jnp.float32)], axis=1)
    return pe[None].astype(jnp.float32)      # (1, length, dim)


def init_params(key, vocab, D, nheads, n_layers, K):
    f32, bf16 = jnp.float32, jnp.bfloat16
    d_ff = D                                  # module: dim_feedforward=n_tf_dim
    L = n_layers
    keys = jax.random.split(key, 5)
    lk = jax.random.split(keys[4], 6)

    def rnd(k, shape, s=0.05):
        return (jax.random.normal(k, shape) * s).astype(bf16)   # bf16 MXU weights

    layers = dict(
        # pre-transposed (x @ W) layouts; heads folded into the N dimension
        wq=rnd(lk[0], (L, D, D)), wk=rnd(lk[1], (L, D, D)), wv=rnd(lk[2], (L, D, D)),
        bq=jnp.zeros((L, 1, D), f32), bk=jnp.zeros((L, 1, D), f32),
        bv=jnp.zeros((L, 1, D), f32),
        wo=rnd(lk[3], (L, D, D)), bo=jnp.zeros((L, 1, D), f32),
        w1=rnd(lk[4], (L, D, d_ff)), b1=jnp.zeros((L, 1, d_ff), f32),
        w2=rnd(lk[5], (L, d_ff, D)), b2=jnp.zeros((L, 1, D), f32),
        g1=jnp.ones((L, 1, D), f32), be1=jnp.zeros((L, 1, D), f32),
        g2=jnp.ones((L, 1, D), f32), be2=jnp.zeros((L, 1, D), f32),
    )
    sigma = jnp.asarray(kernel_sigmas(K), f32)
    return dict(
        emb=(jax.random.normal(keys[0], (vocab, D)) * 0.1).astype(f32),
        pos=get_positional_features(D, 2000),
        layers=layers,
        n_heads=nheads,
        mixer=jnp.full((1,), 0.5, f32),
        nn_scaler=jnp.full((1,), 0.01, f32),
        mu=jnp.asarray(kernel_mus(K), f32),
        sigma=sigma,
        neg_inv_2sig2=(-1.0 / (2.0 * sigma * sigma)).astype(f32),
        log_w=jax.random.uniform(keys[1], (K,), f32, -0.014, 0.014),
        len_w=jax.random.uniform(keys[2], (K,), f32, -0.014, 0.014),
        ws_w=jax.random.uniform(keys[3], (2,), f32, -0.7, 0.7),
    )


def tk_forward(q_tokens, d_tokens, params):
    q_mask = (q_tokens > 0).astype(jnp.float32)     # (B, Sq)
    d_mask = (d_tokens > 0).astype(jnp.float32)     # (B, Sd)
    q_emb = params["emb"][q_tokens]                 # (B, Sq, D)  (XLA gather)
    d_emb = params["emb"][d_tokens]                 # (B, Sd, D)
    n_heads = params["n_heads"]

    def contextualize(emb, mask):
        pos = params["pos"][:, :emb.shape[1], :]
        # positional add + transformer stack + mixer, all inside one kernel
        return run_encoder(emb, pos, mask[:, None, :], params["mixer"],
                           params["layers"], n_heads)

    q_ctx = contextualize(q_emb, q_mask)
    d_ctx = contextualize(d_emb, d_mask)

    return tk_score(q_ctx, d_ctx, q_mask, d_mask,
                    params["mu"], params["neg_inv_2sig2"], params["nn_scaler"],
                    params["log_w"], params["len_w"], params["ws_w"])


if __name__ == "__main__":
    B, Sq, Sd = 2, 8, 16
    D, H, N_LAYERS, K, VOCAB = 32, 2, 2, 11, 50
    # TODO(synk): at production TK sizes pad D and Sd up to multiples of 128
    # host-side (masks covering the pad) for fully lane-dense vregs.

    key = jax.random.PRNGKey(0)
    k_q, k_d, k_p = jax.random.split(key, 3)
    params = init_params(k_p, VOCAB, D, H, N_LAYERS, K)

    q_tokens = jax.random.randint(k_q, (B, Sq), 1, VOCAB)
    d_tokens = jax.random.randint(k_d, (B, Sd), 1, VOCAB)
    # introduce some padding (token id 0) to exercise the masks
    q_tokens = q_tokens.at[:, -2:].set(0)
    d_tokens = d_tokens.at[:, -3:].set(0)

    score = tk_forward(q_tokens, d_tokens, params)   # (B,)
    jax.block_until_ready(score)
    print("KERNEL_OK")
</pallas_src>

<mosaic_0001>
module attributes {stable_mosaic.version = 11 : i64} {
  func.func @encoder_stack_kernel(%arg0: i32, %arg1: memref<1xf32, #tpu.memory_space<smem>>, %arg2: memref<1x8x32xf32, #tpu.memory_space<vmem>>, %arg3: memref<1x8x32xf32, #tpu.memory_space<vmem>>, %arg4: memref<1x1x8xf32, #tpu.memory_space<vmem>>, %arg5: memref<2x32x32xbf16, #tpu.memory_space<vmem>>, %arg6: memref<2x32x32xbf16, #tpu.memory_space<vmem>>, %arg7: memref<2x32x32xbf16, #tpu.memory_space<vmem>>, %arg8: memref<2x1x32xf32, #tpu.memory_space<vmem>>, %arg9: memref<2x1x32xf32, #tpu.memory_space<vmem>>, %arg10: memref<2x1x32xf32, #tpu.memory_space<vmem>>, %arg11: memref<2x32x32xbf16, #tpu.memory_space<vmem>>, %arg12: memref<2x1x32xf32, #tpu.memory_space<vmem>>, %arg13: memref<2x32x32xbf16, #tpu.memory_space<vmem>>, %arg14: memref<2x1x32xf32, #tpu.memory_space<vmem>>, %arg15: memref<2x32x32xbf16, #tpu.memory_space<vmem>>, %arg16: memref<2x1x32xf32, #tpu.memory_space<vmem>>, %arg17: memref<2x1x32xf32, #tpu.memory_space<vmem>>, %arg18: memref<2x1x32xf32, #tpu.memory_space<vmem>>, %arg19: memref<2x1x32xf32, #tpu.memory_space<vmem>>, %arg20: memref<2x1x32xf32, #tpu.memory_space<vmem>>, %arg21: memref<1x8x32xf32, #tpu.memory_space<vmem>>) attributes {dimension_semantics = [#tpu.dimension_semantics<parallel>], iteration_bounds = array<i64: 2>, scalar_prefetch = 0 : i64, scratch_operands = 0 : i64, tpu.core_type = #tpu.core_type<tc>, window_params = [{transform_indices = @transform_0, window_bounds = array<i64: 1>}, {transform_indices = @transform_1, window_bounds = array<i64: 1, 8, 32>}, {pipeline_mode = #tpu.pipeline_mode<synchronous>, transform_indices = @transform_2, window_bounds = array<i64: 1, 8, 32>}, {transform_indices = @transform_3, window_bounds = array<i64: 1, 1, 8>}, {pipeline_mode = #tpu.pipeline_mode<synchronous>, transform_indices = @transform_4, window_bounds = array<i64: 2, 32, 32>}, {pipeline_mode = #tpu.pipeline_mode<synchronous>, transform_indices = @transform_5, window_bounds = array<i64: 2, 32, 32>}, {pipeline_mode = #tpu.pipeline_mode<synchronous>, transform_indices = @transform_6, window_bounds = array<i64: 2, 32, 32>}, {pipeline_mode = #tpu.pipeline_mode<synchronous>, transform_indices = @transform_7, window_bounds = array<i64: 2, 1, 32>}, {pipeline_mode = #tpu.pipeline_mode<synchronous>, transform_indices = @transform_8, window_bounds = array<i64: 2, 1, 32>}, {pipeline_mode = #tpu.pipeline_mode<synchronous>, transform_indices = @transform_9, window_bounds = array<i64: 2, 1, 32>}, {pipeline_mode = #tpu.pipeline_mode<synchronous>, transform_indices = @transform_10, window_bounds = array<i64: 2, 32, 32>}, {pipeline_mode = #tpu.pipeline_mode<synchronous>, transform_indices = @transform_11, window_bounds = array<i64: 2, 1, 32>}, {pipeline_mode = #tpu.pipeline_mode<synchronous>, transform_indices = @transform_12, window_bounds = array<i64: 2, 32, 32>}, {pipeline_mode = #tpu.pipeline_mode<synchronous>, transform_indices = @transform_13, window_bounds = array<i64: 2, 1, 32>}, {pipeline_mode = #tpu.pipeline_mode<synchronous>, transform_indices = @transform_14, window_bounds = array<i64: 2, 32, 32>}, {pipeline_mode = #tpu.pipeline_mode<synchronous>, transform_indices = @transform_15, window_bounds = array<i64: 2, 1, 32>}, {pipeline_mode = #tpu.pipeline_mode<synchronous>, transform_indices = @transform_16, window_bounds = array<i64: 2, 1, 32>}, {pipeline_mode = #tpu.pipeline_mode<synchronous>, transform_indices = @transform_17, window_bounds = array<i64: 2, 1, 32>}, {pipeline_mode = #tpu.pipeline_mode<synchronous>, transform_indices = @transform_18, window_bounds = array<i64: 2, 1, 32>}, {pipeline_mode = #tpu.pipeline_mode<synchronous>, transform_indices = @transform_19, window_bounds = array<i64: 2, 1, 32>}, {transform_indices = @transform_20, window_bounds = array<i64: 1, 8, 32>}]} {
    %c0 = arith.constant 0 : index
    %c0_0 = arith.constant 0 : index
    %c0_1 = arith.constant 0 : index
    %0 = vector.load %arg2[%c0, %c0_0, %c0_1] : memref<1x8x32xf32, #tpu.memory_space<vmem>>, vector<1x8x32xf32>
    %c0_2 = arith.constant 0 : index
    %c0_3 = arith.constant 0 : index
    %c0_4 = arith.constant 0 : index
    %1 = vector.load %arg3[%c0_2, %c0_3, %c0_4] : memref<1x8x32xf32, #tpu.memory_space<vmem>>, vector<1x8x32xf32>
    %2 = arith.addf %0, %1 : vector<1x8x32xf32>
    %c0_5 = arith.constant 0 : index
    %c0_6 = arith.constant 0 : index
    %c0_7 = arith.constant 0 : index
    %3 = vector.load %arg4[%c0_5, %c0_6, %c0_7] : memref<1x1x8xf32, #tpu.memory_space<vmem>>, vector<1x1x8xf32>
    %cst = arith.constant 1.000000e+00 : f32
    %4 = vector.broadcast %cst : f32 to vector<1x1x8xf32>
    %5 = arith.subf %4, %3 : vector<1x1x8xf32>
    %cst_8 = arith.constant -1.000000e+09 : f32
    %6 = vector.broadcast %cst_8 : f32 to vector<1x1x8xf32>
    %7 = arith.mulf %5, %6 : vector<1x1x8xf32>
    %8 = tpu.iota {dimensions = array<i32: 2>} : vector<1x1x32xi32>
    %c0_i32 = arith.constant 0 : i32
    %9 = vector.broadcast %c0_i32 : i32 to vector<1x1x32xi32>
    %10 = arith.cmpi sge, %8, %9 : vector<1x1x32xi32>
    %c16_i32 = arith.constant 16 : i32
    %11 = vector.broadcast %c16_i32 : i32 to vector<1x1x32xi32>
    %12 = arith.cmpi slt, %8, %11 : vector<1x1x32xi32>
    %13 = arith.andi %10, %12 : vector<1x1x32xi1>
    %14 = arith.extui %13 : vector<1x1x32xi1> to vector<1x1x32xi32>
    %15 = arith.sitofp %14 : vector<1x1x32xi32> to vector<1x1x32xf32>
    %c16_i32_9 = arith.constant 16 : i32
    %16 = vector.broadcast %c16_i32_9 : i32 to vector<1x1x32xi32>
    %17 = arith.cmpi sge, %8, %16 : vector<1x1x32xi32>
    %c32_i32 = arith.constant 32 : i32
    %18 = vector.broadcast %c32_i32 : i32 to vector<1x1x32xi32>
    %19 = arith.cmpi slt, %8, %18 : vector<1x1x32xi32>
    %20 = arith.andi %17, %19 : vector<1x1x32xi1>
    %21 = arith.extui %20 : vector<1x1x32xi1> to vector<1x1x32xi32>
    %22 = arith.sitofp %21 : vector<1x1x32xi32> to vector<1x1x32xf32>
    %23 = vector.shape_cast %2 : vector<1x8x32xf32> to vector<8x32xf32>
    %24 = arith.truncf %23 : vector<8x32xf32> to vector<8x32xbf16>
    %c0_10 = arith.constant 0 : index
    %c0_11 = arith.constant 0 : index
    %c0_12 = arith.constant 0 : index
    %25 = vector.load %arg5[%c0_10, %c0_11, %c0_12] : memref<2x32x32xbf16, #tpu.memory_space<vmem>>, vector<1x32x32xbf16>
    %26 = vector.shape_cast %25 : vector<1x32x32xbf16> to vector<32x32xbf16>
    %cst_13 = arith.constant dense<0.000000e+00> : vector<8x32xf32>
    %27 = tpu.matmul %24, %26, %cst_13 {dimension_numbers = #tpu.dot_dimension_numbers<[1], [0], [0], [1], [0, 0, 1, 1], [], []>} : vector<8x32xbf16>, vector<32x32xbf16>, vector<8x32xf32> -> vector<8x32xf32>
    %c0_14 = arith.constant 0 : index
    %c0_15 = arith.constant 0 : index
    %c0_16 = arith.constant 0 : index
    %28 = vector.load %arg8[%c0_14, %c0_15, %c0_16] : memref<2x1x32xf32, #tpu.memory_space<vmem>>, vector<1x1x32xf32>
    %29 = vector.shape_cast %28 : vector<1x1x32xf32> to vector<1x32xf32>
    %30 = vector.broadcast %29 : vector<1x32xf32> to vector<8x32xf32>
    %31 = arith.addf %27, %30 : vector<8x32xf32>
    %c0_17 = arith.constant 0 : index
    %c0_18 = arith.constant 0 : index
    %c0_19 = arith.constant 0 : index
    %32 = vector.load %arg6[%c0_17, %c0_18, %c0_19] : memref<2x32x32xbf16, #tpu.memory_space<vmem>>, vector<1x32x32xbf16>
    %33 = vector.shape_cast %32 : vector<1x32x32xbf16> to vector<32x32xbf16>
    %cst_20 = arith.constant dense<0.000000e+00> : vector<8x32xf32>
    %34 = tpu.matmul %24, %33, %cst_20 {dimension_numbers = #tpu.dot_dimension_numbers<[1], [0], [0], [1], [0, 0, 1, 1], [], []>} : vector<8x32xbf16>, vector<32x32xbf16>, vector<8x32xf32> -> vector<8x32xf32>
    %c0_21 = arith.constant 0 : index
    %c0_22 = arith.constant 0 : index
    %c0_23 = arith.constant 0 : index
    %35 = vector.load %arg9[%c0_21, %c0_22, %c0_23] : memref<2x1x32xf32, #tpu.memory_space<vmem>>, vector<1x1x32xf32>
    %36 = vector.shape_cast %35 : vector<1x1x32xf32> to vector<1x32xf32>
    %37 = vector.broadcast %36 : vector<1x32xf32> to vector<8x32xf32>
    %38 = arith.addf %34, %37 : vector<8x32xf32>
    %c0_24 = arith.constant 0 : index
    %c0_25 = arith.constant 0 : index
    %c0_26 = arith.constant 0 : index
    %39 = vector.load %arg7[%c0_24, %c0_25, %c0_26] : memref<2x32x32xbf16, #tpu.memory_space<vmem>>, vector<1x32x32xbf16>
    %40 = vector.shape_cast %39 : vector<1x32x32xbf16> to vector<32x32xbf16>
    %cst_27 = arith.constant dense<0.000000e+00> : vector<8x32xf32>
    %41 = tpu.matmul %24, %40, %cst_27 {dimension_numbers = #tpu.dot_dimension_numbers<[1], [0], [0], [1], [0, 0, 1, 1], [], []>} : vector<8x32xbf16>, vector<32x32xbf16>, vector<8x32xf32> -> vector<8x32xf32>
    %c0_28 = arith.constant 0 : index
    %c0_29 = arith.constant 0 : index
    %c0_30 = arith.constant 0 : index
    %42 = vector.load %arg10[%c0_28, %c0_29, %c0_30] : memref<2x1x32xf32, #tpu.memory_space<vmem>>, vector<1x1x32xf32>
    %43 = vector.shape_cast %42 : vector<1x1x32xf32> to vector<1x32xf32>
    %44 = vector.broadcast %43 : vector<1x32xf32> to vector<8x32xf32>
    %45 = arith.addf %41, %44 : vector<8x32xf32>
    %46 = vector.shape_cast %31 : vector<8x32xf32> to vector<1x8x32xf32>
    %47 = vector.shape_cast %38 : vector<8x32xf32> to vector<1x8x32xf32>
    %48 = arith.truncf %47 : vector<1x8x32xf32> to vector<1x8x32xbf16>
    %49 = vector.shape_cast %45 : vector<8x32xf32> to vector<1x8x32xf32>
    %50 = arith.truncf %49 : vector<1x8x32xf32> to vector<1x8x32xbf16>
    %cst_31 = arith.constant 0.000000e+00 : f32
    %51 = vector.broadcast %cst_31 : f32 to vector<1x8x32xf32>
    %52 = vector.broadcast %15 : vector<1x1x32xf32> to vector<1x8x32xf32>
    %53 = arith.mulf %46, %52 : vector<1x8x32xf32>
    %54 = arith.truncf %53 : vector<1x8x32xf32> to vector<1x8x32xbf16>
    "tpu.trace_start"() <{level = 10 : i32, message = "bqe,bke->bqk"}> : () -> ()
    %cst_32 = arith.constant dense<0.000000e+00> : vector<1x8x8xf32>
    %55 = tpu.matmul %54, %48, %cst_32 {dimension_numbers = #tpu.dot_dimension_numbers<[2], [2], [1], [1], [0, 0, 0, 1, 1, 1], [0], [0]>} : vector<1x8x32xbf16>, vector<1x8x32xbf16>, vector<1x8x8xf32> -> vector<1x8x8xf32>
    "tpu.trace_stop"() : () -> ()
    %cst_33 = arith.constant 2.500000e-01 : f32
    %56 = vector.broadcast %cst_33 : f32 to vector<1x8x8xf32>
    %57 = arith.mulf %55, %56 : vector<1x8x8xf32>
    %58 = vector.broadcast %7 : vector<1x1x8xf32> to vector<1x8x8xf32>
    %59 = arith.addf %57, %58 : vector<1x8x8xf32>
    %cst_34 = arith.constant dense<0xFF800000> : vector<1x8xf32>
    %60 = vector.multi_reduction <maximumf>, %59, %cst_34 [2] : vector<1x8x8xf32> to vector<1x8xf32>
    %61 = vector.shape_cast %60 : vector<1x8xf32> to vector<1x8x1xf32>
    %62 = vector.broadcast %61 : vector<1x8x1xf32> to vector<1x8x8xf32>
    %63 = arith.subf %59, %62 : vector<1x8x8xf32>
    %64 = math.exp %63 : vector<1x8x8xf32>
    %cst_35 = arith.constant dense<0.000000e+00> : vector<1x8xf32>
    %65 = vector.multi_reduction <add>, %64, %cst_35 [2] : vector<1x8x8xf32> to vector<1x8xf32>
    %66 = vector.shape_cast %65 : vector<1x8xf32> to vector<1x8x1xf32>
    %67 = tpu.reciprocal %66 {approx = true} : vector<1x8x1xf32> -> vector<1x8x1xf32>
    %68 = vector.broadcast %67 : vector<1x8x1xf32> to vector<1x8x8xf32>
    %69 = arith.mulf %64, %68 : vector<1x8x8xf32>
    %70 = arith.truncf %69 : vector<1x8x8xf32> to vector<1x8x8xbf16>
    "tpu.trace_start"() <{level = 10 : i32, message = "bqk,bke->bqe"}> : () -> ()
    %cst_36 = arith.constant dense<0.000000e+00> : vector<1x8x32xf32>
    %71 = tpu.matmul %70, %50, %cst_36 {dimension_numbers = #tpu.dot_dimension_numbers<[2], [1], [1], [2], [0, 0, 0, 1, 1, 2], [0], [0]>} : vector<1x8x8xbf16>, vector<1x8x32xbf16>, vector<1x8x32xf32> -> vector<1x8x32xf32>
    "tpu.trace_stop"() : () -> ()
    %72 = vector.broadcast %15 : vector<1x1x32xf32> to vector<1x8x32xf32>
    %73 = arith.mulf %71, %72 : vector<1x8x32xf32>
    %74 = arith.addf %51, %73 : vector<1x8x32xf32>
    %75 = vector.broadcast %22 : vector<1x1x32xf32> to vector<1x8x32xf32>
    %76 = arith.mulf %46, %75 : vector<1x8x32xf32>
    %77 = arith.truncf %76 : vector<1x8x32xf32> to vector<1x8x32xbf16>
    "tpu.trace_start"() <{level = 10 : i32, message = "bqe,bke->bqk"}> : () -> ()
    %cst_37 = arith.constant dense<0.000000e+00> : vector<1x8x8xf32>
    %78 = tpu.matmul %77, %48, %cst_37 {dimension_numbers = #tpu.dot_dimension_numbers<[2], [2], [1], [1], [0, 0, 0, 1, 1, 1], [0], [0]>} : vector<1x8x32xbf16>, vector<1x8x32xbf16>, vector<1x8x8xf32> -> vector<1x8x8xf32>
    "tpu.trace_stop"() : () -> ()
    %cst_38 = arith.constant 2.500000e-01 : f32
    %79 = vector.broadcast %cst_38 : f32 to vector<1x8x8xf32>
    %80 = arith.mulf %78, %79 : vector<1x8x8xf32>
    %81 = vector.broadcast %7 : vector<1x1x8xf32> to vector<1x8x8xf32>
    %82 = arith.addf %80, %81 : vector<1x8x8xf32>
    %cst_39 = arith.constant dense<0xFF800000> : vector<1x8xf32>
    %83 = vector.multi_reduction <maximumf>, %82, %cst_39 [2] : vector<1x8x8xf32> to vector<1x8xf32>
    %84 = vector.shape_cast %83 : vector<1x8xf32> to vector<1x8x1xf32>
    %85 = vector.broadcast %84 : vector<1x8x1xf32> to vector<1x8x8xf32>
    %86 = arith.subf %82, %85 : vector<1x8x8xf32>
    %87 = math.exp %86 : vector<1x8x8xf32>
    %cst_40 = arith.constant dense<0.000000e+00> : vector<1x8xf32>
    %88 = vector.multi_reduction <add>, %87, %cst_40 [2] : vector<1x8x8xf32> to vector<1x8xf32>
    %89 = vector.shape_cast %88 : vector<1x8xf32> to vector<1x8x1xf32>
    %90 = tpu.reciprocal %89 {approx = true} : vector<1x8x1xf32> -> vector<1x8x1xf32>
    %91 = vector.broadcast %90 : vector<1x8x1xf32> to vector<1x8x8xf32>
    %92 = arith.mulf %87, %91 : vector<1x8x8xf32>
    %93 = arith.truncf %92 : vector<1x8x8xf32> to vector<1x8x8xbf16>
    "tpu.trace_start"() <{level = 10 : i32, message = "bqk,bke->bqe"}> : () -> ()
    %cst_41 = arith.constant dense<0.000000e+00> : vector<1x8x32xf32>
    %94 = tpu.matmul %93, %50, %cst_41 {dimension_numbers = #tpu.dot_dimension_numbers<[2], [1], [1], [2], [0, 0, 0, 1, 1, 2], [0], [0]>} : vector<1x8x8xbf16>, vector<1x8x32xbf16>, vector<1x8x32xf32> -> vector<1x8x32xf32>
    "tpu.trace_stop"() : () -> ()
    %95 = vector.broadcast %22 : vector<1x1x32xf32> to vector<1x8x32xf32>
    %96 = arith.mulf %94, %95 : vector<1x8x32xf32>
    %97 = arith.addf %74, %96 : vector<1x8x32xf32>
    %98 = vector.shape_cast %97 : vector<1x8x32xf32> to vector<8x32xf32>
    %99 = arith.truncf %98 : vector<8x32xf32> to vector<8x32xbf16>
    %c0_42 = arith.constant 0 : index
    %c0_43 = arith.constant 0 : index
    %c0_44 = arith.constant 0 : index
    %100 = vector.load %arg11[%c0_42, %c0_43, %c0_44] : memref<2x32x32xbf16, #tpu.memory_space<vmem>>, vector<1x32x32xbf16>
    %101 = vector.shape_cast %100 : vector<1x32x32xbf16> to vector<32x32xbf16>
    %cst_45 = arith.constant dense<0.000000e+00> : vector<8x32xf32>
    %102 = tpu.matmul %99, %101, %cst_45 {dimension_numbers = #tpu.dot_dimension_numbers<[1], [0], [0], [1], [0, 0, 1, 1], [], []>} : vector<8x32xbf16>, vector<32x32xbf16>, vector<8x32xf32> -> vector<8x32xf32>
    %c0_46 = arith.constant 0 : index
    %c0_47 = arith.constant 0 : index
    %c0_48 = arith.constant 0 : index
    %103 = vector.load %arg12[%c0_46, %c0_47, %c0_48] : memref<2x1x32xf32, #tpu.memory_space<vmem>>, vector<1x1x32xf32>
    %104 = vector.shape_cast %103 : vector<1x1x32xf32> to vector<1x32xf32>
    %105 = vector.broadcast %104 : vector<1x32xf32> to vector<8x32xf32>
    %106 = arith.addf %102, %105 : vector<8x32xf32>
    %107 = arith.addf %23, %106 : vector<8x32xf32>
    %c0_49 = arith.constant 0 : index
    %c0_50 = arith.constant 0 : index
    %c0_51 = arith.constant 0 : index
    %108 = vector.load %arg17[%c0_49, %c0_50, %c0_51] : memref<2x1x32xf32, #tpu.memory_space<vmem>>, vector<1x1x32xf32>
    %109 = vector.shape_cast %108 : vector<1x1x32xf32> to vector<1x32xf32>
    %c0_52 = arith.constant 0 : index
    %c0_53 = arith.constant 0 : index
    %c0_54 = arith.constant 0 : index
    %110 = vector.load %arg18[%c0_52, %c0_53, %c0_54] : memref<2x1x32xf32, #tpu.memory_space<vmem>>, vector<1x1x32xf32>
    %111 = vector.shape_cast %110 : vector<1x1x32xf32> to vector<1x32xf32>
    %cst_55 = arith.constant dense<0.000000e+00> : vector<8xf32>
    %112 = vector.multi_reduction <add>, %107, %cst_55 [1] : vector<8x32xf32> to vector<8xf32>
    %113 = vector.shape_cast %112 : vector<8xf32> to vector<8x1xf32>
    %cst_56 = arith.constant 3.200000e+01 : f32
    %114 = vector.broadcast %cst_56 : f32 to vector<8x1xf32>
    %115 = arith.divf %113, %114 : vector<8x1xf32>
    %116 = vector.broadcast %115 : vector<8x1xf32> to vector<8x32xf32>
    %117 = arith.subf %107, %116 : vector<8x32xf32>
    %118 = arith.mulf %117, %117 : vector<8x32xf32>
    %cst_57 = arith.constant dense<0.000000e+00> : vector<8xf32>
    %119 = vector.multi_reduction <add>, %118, %cst_57 [1] : vector<8x32xf32> to vector<8xf32>
    %120 = vector.shape_cast %119 : vector<8xf32> to vector<8x1xf32>
    %cst_58 = arith.constant 3.200000e+01 : f32
    %121 = vector.broadcast %cst_58 : f32 to vector<8x1xf32>
    %122 = arith.divf %120, %121 : vector<8x1xf32>
    %123 = vector.broadcast %115 : vector<8x1xf32> to vector<8x32xf32>
    %124 = arith.subf %107, %123 : vector<8x32xf32>
    %cst_59 = arith.constant 9.99999974E-6 : f32
    %125 = vector.broadcast %cst_59 : f32 to vector<8x1xf32>
    %126 = arith.addf %122, %125 : vector<8x1xf32>
    %127 = math.rsqrt %126 : vector<8x1xf32>
    %128 = vector.broadcast %127 : vector<8x1xf32> to vector<8x32xf32>
    %129 = arith.mulf %124, %128 : vector<8x32xf32>
    %130 = vector.broadcast %109 : vector<1x32xf32> to vector<8x32xf32>
    %131 = arith.mulf %129, %130 : vector<8x32xf32>
    %132 = vector.broadcast %111 : vector<1x32xf32> to vector<8x32xf32>
    %133 = arith.addf %131, %132 : vector<8x32xf32>
    %134 = arith.truncf %133 : vector<8x32xf32> to vector<8x32xbf16>
    %c0_60 = arith.constant 0 : index
    %c0_61 = arith.constant 0 : index
    %c0_62 = arith.constant 0 : index
    %135 = vector.load %arg13[%c0_60, %c0_61, %c0_62] : memref<2x32x32xbf16, #tpu.memory_space<vmem>>, vector<1x32x32xbf16>
    %136 = vector.shape_cast %135 : vector<1x32x32xbf16> to vector<32x32xbf16>
    %cst_63 = arith.constant dense<0.000000e+00> : vector<8x32xf32>
    %137 = tpu.matmul %134, %136, %cst_63 {dimension_numbers = #tpu.dot_dimension_numbers<[1], [0], [0], [1], [0, 0, 1, 1], [], []>} : vector<8x32xbf16>, vector<32x32xbf16>, vector<8x32xf32> -> vector<8x32xf32>
    %c0_64 = arith.constant 0 : index
    %c0_65 = arith.constant 0 : index
    %c0_66 = arith.constant 0 : index
    %138 = vector.load %arg14[%c0_64, %c0_65, %c0_66] : memref<2x1x32xf32, #tpu.memory_space<vmem>>, vector<1x1x32xf32>
    %139 = vector.shape_cast %138 : vector<1x1x32xf32> to vector<1x32xf32>
    %140 = vector.broadcast %139 : vector<1x32xf32> to vector<8x32xf32>
    %141 = arith.addf %137, %140 : vector<8x32xf32>
    %cst_67 = arith.constant 0.000000e+00 : f32
    %142 = vector.broadcast %cst_67 : f32 to vector<8x32xf32>
    %143 = arith.maximumf %141, %142 : vector<8x32xf32>
    %144 = arith.truncf %143 : vector<8x32xf32> to vector<8x32xbf16>
    %c0_68 = arith.constant 0 : index
    %c0_69 = arith.constant 0 : index
    %c0_70 = arith.constant 0 : index
    %145 = vector.load %arg15[%c0_68, %c0_69, %c0_70] : memref<2x32x32xbf16, #tpu.memory_space<vmem>>, vector<1x32x32xbf16>
    %146 = vector.shape_cast %145 : vector<1x32x32xbf16> to vector<32x32xbf16>
    %cst_71 = arith.constant dense<0.000000e+00> : vector<8x32xf32>
    %147 = tpu.matmul %144, %146, %cst_71 {dimension_numbers = #tpu.dot_dimension_numbers<[1], [0], [0], [1], [0, 0, 1, 1], [], []>} : vector<8x32xbf16>, vector<32x32xbf16>, vector<8x32xf32> -> vector<8x32xf32>
    %c0_72 = arith.constant 0 : index
    %c0_73 = arith.constant 0 : index
    %c0_74 = arith.constant 0 : index
    %148 = vector.load %arg16[%c0_72, %c0_73, %c0_74] : memref<2x1x32xf32, #tpu.memory_space<vmem>>, vector<1x1x32xf32>
    %149 = vector.shape_cast %148 : vector<1x1x32xf32> to vector<1x32xf32>
    %150 = vector.broadcast %149 : vector<1x32xf32> to vector<8x32xf32>
    %151 = arith.addf %147, %150 : vector<8x32xf32>
    %152 = arith.addf %133, %151 : vector<8x32xf32>
    %c0_75 = arith.constant 0 : index
    %c0_76 = arith.constant 0 : index
    %c0_77 = arith.constant 0 : index
    %153 = vector.load %arg19[%c0_75, %c0_76, %c0_77] : memref<2x1x32xf32, #tpu.memory_space<vmem>>, vector<1x1x32xf32>
    %154 = vector.shape_cast %153 : vector<1x1x32xf32> to vector<1x32xf32>
    %c0_78 = arith.constant 0 : index
    %c0_79 = arith.constant 0 : index
    %c0_80 = arith.constant 0 : index
    %155 = vector.load %arg20[%c0_78, %c0_79, %c0_80] : memref<2x1x32xf32, #tpu.memory_space<vmem>>, vector<1x1x32xf32>
    %156 = vector.shape_cast %155 : vector<1x1x32xf32> to vector<1x32xf32>
    %cst_81 = arith.constant dense<0.000000e+00> : vector<8xf32>
    %157 = vector.multi_reduction <add>, %152, %cst_81 [1] : vector<8x32xf32> to vector<8xf32>
    %158 = vector.shape_cast %157 : vector<8xf32> to vector<8x1xf32>
    %cst_82 = arith.constant 3.200000e+01 : f32
    %159 = vector.broadcast %cst_82 : f32 to vector<8x1xf32>
    %160 = arith.divf %158, %159 : vector<8x1xf32>
    %161 = vector.broadcast %160 : vector<8x1xf32> to vector<8x32xf32>
    %162 = arith.subf %152, %161 : vector<8x32xf32>
    %163 = arith.mulf %162, %162 : vector<8x32xf32>
    %cst_83 = arith.constant dense<0.000000e+00> : vector<8xf32>
    %164 = vector.multi_reduction <add>, %163, %cst_83 [1] : vector<8x32xf32> to vector<8xf32>
    %165 = vector.shape_cast %164 : vector<8xf32> to vector<8x1xf32>
    %cst_84 = arith.constant 3.200000e+01 : f32
    %166 = vector.broadcast %cst_84 : f32 to vector<8x1xf32>
    %167 = arith.divf %165, %166 : vector<8x1xf32>
    %168 = vector.broadcast %160 : vector<8x1xf32> to vector<8x32xf32>
    %169 = arith.subf %152, %168 : vector<8x32xf32>
    %cst_85 = arith.constant 9.99999974E-6 : f32
    %170 = vector.broadcast %cst_85 : f32 to vector<8x1xf32>
    %171 = arith.addf %167, %170 : vector<8x1xf32>
    %172 = math.rsqrt %171 : vector<8x1xf32>
    %173 = vector.broadcast %172 : vector<8x1xf32> to vector<8x32xf32>
    %174 = arith.mulf %169, %173 : vector<8x32xf32>
    %175 = vector.broadcast %154 : vector<1x32xf32> to vector<8x32xf32>
    %176 = arith.mulf %174, %175 : vector<8x32xf32>
    %177 = vector.broadcast %156 : vector<1x32xf32> to vector<8x32xf32>
    %178 = arith.addf %176, %177 : vector<8x32xf32>
    %179 = arith.truncf %178 : vector<8x32xf32> to vector<8x32xbf16>
    %c1 = arith.constant 1 : index
    %c0_86 = arith.constant 0 : index
    %c0_87 = arith.constant 0 : index
    %180 = vector.load %arg5[%c1, %c0_86, %c0_87] : memref<2x32x32xbf16, #tpu.memory_space<vmem>>, vector<1x32x32xbf16>
    %181 = vector.shape_cast %180 : vector<1x32x32xbf16> to vector<32x32xbf16>
    %cst_88 = arith.constant dense<0.000000e+00> : vector<8x32xf32>
    %182 = tpu.matmul %179, %181, %cst_88 {dimension_numbers = #tpu.dot_dimension_numbers<[1], [0], [0], [1], [0, 0, 1, 1], [], []>} : vector<8x32xbf16>, vector<32x32xbf16>, vector<8x32xf32> -> vector<8x32xf32>
    %c1_89 = arith.constant 1 : index
    %c0_90 = arith.constant 0 : index
    %c0_91 = arith.constant 0 : index
    %183 = vector.load %arg8[%c1_89, %c0_90, %c0_91] : memref<2x1x32xf32, #tpu.memory_space<vmem>>, vector<1x1x32xf32>
    %184 = vector.shape_cast %183 : vector<1x1x32xf32> to vector<1x32xf32>
    %185 = vector.broadcast %184 : vector<1x32xf32> to vector<8x32xf32>
    %186 = arith.addf %182, %185 : vector<8x32xf32>
    %c1_92 = arith.constant 1 : index
    %c0_93 = arith.constant 0 : index
    %c0_94 = arith.constant 0 : index
    %187 = vector.load %arg6[%c1_92, %c0_93, %c0_94] : memref<2x32x32xbf16, #tpu.memory_space<vmem>>, vector<1x32x32xbf16>
    %188 = vector.shape_cast %187 : vector<1x32x32xbf16> to vector<32x32xbf16>
    %cst_95 = arith.constant dense<0.000000e+00> : vector<8x32xf32>
    %189 = tpu.matmul %179, %188, %cst_95 {dimension_numbers = #tpu.dot_dimension_numbers<[1], [0], [0], [1], [0, 0, 1, 1], [], []>} : vector<8x32xbf16>, vector<32x32xbf16>, vector<8x32xf32> -> vector<8x32xf32>
    %c1_96 = arith.constant 1 : index
    %c0_97 = arith.constant 0 : index
    %c0_98 = arith.constant 0 : index
    %190 = vector.load %arg9[%c1_96, %c0_97, %c0_98] : memref<2x1x32xf32, #tpu.memory_space<vmem>>, vector<1x1x32xf32>
    %191 = vector.shape_cast %190 : vector<1x1x32xf32> to vector<1x32xf32>
    %192 = vector.broadcast %191 : vector<1x32xf32> to vector<8x32xf32>
    %193 = arith.addf %189, %192 : vector<8x32xf32>
    %c1_99 = arith.constant 1 : index
    %c0_100 = arith.constant 0 : index
    %c0_101 = arith.constant 0 : index
    %194 = vector.load %arg7[%c1_99, %c0_100, %c0_101] : memref<2x32x32xbf16, #tpu.memory_space<vmem>>, vector<1x32x32xbf16>
    %195 = vector.shape_cast %194 : vector<1x32x32xbf16> to vector<32x32xbf16>
    %cst_102 = arith.constant dense<0.000000e+00> : vector<8x32xf32>
    %196 = tpu.matmul %179, %195, %cst_102 {dimension_numbers = #tpu.dot_dimension_numbers<[1], [0], [0], [1], [0, 0, 1, 1], [], []>} : vector<8x32xbf16>, vector<32x32xbf16>, vector<8x32xf32> -> vector<8x32xf32>
    %c1_103 = arith.constant 1 : index
    %c0_104 = arith.constant 0 : index
    %c0_105 = arith.constant 0 : index
    %197 = vector.load %arg10[%c1_103, %c0_104, %c0_105] : memref<2x1x32xf32, #tpu.memory_space<vmem>>, vector<1x1x32xf32>
    %198 = vector.shape_cast %197 : vector<1x1x32xf32> to vector<1x32xf32>
    %199 = vector.broadcast %198 : vector<1x32xf32> to vector<8x32xf32>
    %200 = arith.addf %196, %199 : vector<8x32xf32>
    %201 = vector.shape_cast %186 : vector<8x32xf32> to vector<1x8x32xf32>
    %202 = vector.shape_cast %193 : vector<8x32xf32> to vector<1x8x32xf32>
    %203 = arith.truncf %202 : vector<1x8x32xf32> to vector<1x8x32xbf16>
    %204 = vector.shape_cast %200 : vector<8x32xf32> to vector<1x8x32xf32>
    %205 = arith.truncf %204 : vector<1x8x32xf32> to vector<1x8x32xbf16>
    %cst_106 = arith.constant 0.000000e+00 : f32
    %206 = vector.broadcast %cst_106 : f32 to vector<1x8x32xf32>
    %207 = vector.broadcast %15 : vector<1x1x32xf32> to vector<1x8x32xf32>
    %208 = arith.mulf %201, %207 : vector<1x8x32xf32>
    %209 = arith.truncf %208 : vector<1x8x32xf32> to vector<1x8x32xbf16>
    "tpu.trace_start"() <{level = 10 : i32, message = "bqe,bke->bqk"}> : () -> ()
    %cst_107 = arith.constant dense<0.000000e+00> : vector<1x8x8xf32>
    %210 = tpu.matmul %209, %203, %cst_107 {dimension_numbers = #tpu.dot_dimension_numbers<[2], [2], [1], [1], [0, 0, 0, 1, 1, 1], [0], [0]>} : vector<1x8x32xbf16>, vector<1x8x32xbf16>, vector<1x8x8xf32> -> vector<1x8x8xf32>
    "tpu.trace_stop"() : () -> ()
    %cst_108 = arith.constant 2.500000e-01 : f32
    %211 = vector.broadcast %cst_108 : f32 to vector<1x8x8xf32>
    %212 = arith.mulf %210, %211 : vector<1x8x8xf32>
    %213 = vector.broadcast %7 : vector<1x1x8xf32> to vector<1x8x8xf32>
    %214 = arith.addf %212, %213 : vector<1x8x8xf32>
    %cst_109 = arith.constant dense<0xFF800000> : vector<1x8xf32>
    %215 = vector.multi_reduction <maximumf>, %214, %cst_109 [2] : vector<1x8x8xf32> to vector<1x8xf32>
    %216 = vector.shape_cast %215 : vector<1x8xf32> to vector<1x8x1xf32>
    %217 = vector.broadcast %216 : vector<1x8x1xf32> to vector<1x8x8xf32>
    %218 = arith.subf %214, %217 : vector<1x8x8xf32>
    %219 = math.exp %218 : vector<1x8x8xf32>
    %cst_110 = arith.constant dense<0.000000e+00> : vector<1x8xf32>
    %220 = vector.multi_reduction <add>, %219, %cst_110 [2] : vector<1x8x8xf32> to vector<1x8xf32>
    %221 = vector.shape_cast %220 : vector<1x8xf32> to vector<1x8x1xf32>
    %222 = tpu.reciprocal %221 {approx = true} : vector<1x8x1xf32> -> vector<1x8x1xf32>
    %223 = vector.broadcast %222 : vector<1x8x1xf32> to vector<1x8x8xf32>
    %224 = arith.mulf %219, %223 : vector<1x8x8xf32>
    %225 = arith.truncf %224 : vector<1x8x8xf32> to vector<1x8x8xbf16>
    "tpu.trace_start"() <{level = 10 : i32, message = "bqk,bke->bqe"}> : () -> ()
    %cst_111 = arith.constant dense<0.000000e+00> : vector<1x8x32xf32>
    %226 = tpu.matmul %225, %205, %cst_111 {dimension_numbers = #tpu.dot_dimension_numbers<[2], [1], [1], [2], [0, 0, 0, 1, 1, 2], [0], [0]>} : vector<1x8x8xbf16>, vector<1x8x32xbf16>, vector<1x8x32xf32> -> vector<1x8x32xf32>
    "tpu.trace_stop"() : () -> ()
    %227 = vector.broadcast %15 : vector<1x1x32xf32> to vector<1x8x32xf32>
    %228 = arith.mulf %226, %227 : vector<1x8x32xf32>
    %229 = arith.addf %206, %228 : vector<1x8x32xf32>
    %230 = vector.broadcast %22 : vector<1x1x32xf32> to vector<1x8x32xf32>
    %231 = arith.mulf %201, %230 : vector<1x8x32xf32>
    %232 = arith.truncf %231 : vector<1x8x32xf32> to vector<1x8x32xbf16>
    "tpu.trace_start"() <{level = 10 : i32, message = "bqe,bke->bqk"}> : () -> ()
    %cst_112 = arith.constant dense<0.000000e+00> : vector<1x8x8xf32>
    %233 = tpu.matmul %232, %203, %cst_112 {dimension_numbers = #tpu.dot_dimension_numbers<[2], [2], [1], [1], [0, 0, 0, 1, 1, 1], [0], [0]>} : vector<1x8x32xbf16>, vector<1x8x32xbf16>, vector<1x8x8xf32> -> vector<1x8x8xf32>
    "tpu.trace_stop"() : () -> ()
    %cst_113 = arith.constant 2.500000e-01 : f32
    %234 = vector.broadcast %cst_113 : f32 to vector<1x8x8xf32>
    %235 = arith.mulf %233, %234 : vector<1x8x8xf32>
    %236 = vector.broadcast %7 : vector<1x1x8xf32> to vector<1x8x8xf32>
    %237 = arith.addf %235, %236 : vector<1x8x8xf32>
    %cst_114 = arith.constant dense<0xFF800000> : vector<1x8xf32>
    %238 = vector.multi_reduction <maximumf>, %237, %cst_114 [2] : vector<1x8x8xf32> to vector<1x8xf32>
    %239 = vector.shape_cast %238 : vector<1x8xf32> to vector<1x8x1xf32>
    %240 = vector.broadcast %239 : vector<1x8x1xf32> to vector<1x8x8xf32>
    %241 = arith.subf %237, %240 : vector<1x8x8xf32>
    %242 = math.exp %241 : vector<1x8x8xf32>
    %cst_115 = arith.constant dense<0.000000e+00> : vector<1x8xf32>
    %243 = vector.multi_reduction <add>, %242, %cst_115 [2] : vector<1x8x8xf32> to vector<1x8xf32>
    %244 = vector.shape_cast %243 : vector<1x8xf32> to vector<1x8x1xf32>
    %245 = tpu.reciprocal %244 {approx = true} : vector<1x8x1xf32> -> vector<1x8x1xf32>
    %246 = vector.broadcast %245 : vector<1x8x1xf32> to vector<1x8x8xf32>
    %247 = arith.mulf %242, %246 : vector<1x8x8xf32>
    %248 = arith.truncf %247 : vector<1x8x8xf32> to vector<1x8x8xbf16>
    "tpu.trace_start"() <{level = 10 : i32, message = "bqk,bke->bqe"}> : () -> ()
    %cst_116 = arith.constant dense<0.000000e+00> : vector<1x8x32xf32>
    %249 = tpu.matmul %248, %205, %cst_116 {dimension_numbers = #tpu.dot_dimension_numbers<[2], [1], [1], [2], [0, 0, 0, 1, 1, 2], [0], [0]>} : vector<1x8x8xbf16>, vector<1x8x32xbf16>, vector<1x8x32xf32> -> vector<1x8x32xf32>
    "tpu.trace_stop"() : () -> ()
    %250 = vector.broadcast %22 : vector<1x1x32xf32> to vector<1x8x32xf32>
    %251 = arith.mulf %249, %250 : vector<1x8x32xf32>
    %252 = arith.addf %229, %251 : vector<1x8x32xf32>
    %253 = vector.shape_cast %252 : vector<1x8x32xf32> to vector<8x32xf32>
    %254 = arith.truncf %253 : vector<8x32xf32> to vector<8x32xbf16>
    %c1_117 = arith.constant 1 : index
    %c0_118 = arith.constant 0 : index
    %c0_119 = arith.constant 0 : index
    %255 = vector.load %arg11[%c1_117, %c0_118, %c0_119] : memref<2x32x32xbf16, #tpu.memory_space<vmem>>, vector<1x32x32xbf16>
    %256 = vector.shape_cast %255 : vector<1x32x32xbf16> to vector<32x32xbf16>
    %cst_120 = arith.constant dense<0.000000e+00> : vector<8x32xf32>
    %257 = tpu.matmul %254, %256, %cst_120 {dimension_numbers = #tpu.dot_dimension_numbers<[1], [0], [0], [1], [0, 0, 1, 1], [], []>} : vector<8x32xbf16>, vector<32x32xbf16>, vector<8x32xf32> -> vector<8x32xf32>
    %c1_121 = arith.constant 1 : index
    %c0_122 = arith.constant 0 : index
    %c0_123 = arith.constant 0 : index
    %258 = vector.load %arg12[%c1_121, %c0_122, %c0_123] : memref<2x1x32xf32, #tpu.memory_space<vmem>>, vector<1x1x32xf32>
    %259 = vector.shape_cast %258 : vector<1x1x32xf32> to vector<1x32xf32>
    %260 = vector.broadcast %259 : vector<1x32xf32> to vector<8x32xf32>
    %261 = arith.addf %257, %260 : vector<8x32xf32>
    %262 = arith.addf %178, %261 : vector<8x32xf32>
    %c1_124 = arith.constant 1 : index
    %c0_125 = arith.constant 0 : index
    %c0_126 = arith.constant 0 : index
    %263 = vector.load %arg17[%c1_124, %c0_125, %c0_126] : memref<2x1x32xf32, #tpu.memory_space<vmem>>, vector<1x1x32xf32>
    %264 = vector.shape_cast %263 : vector<1x1x32xf32> to vector<1x32xf32>
    %c1_127 = arith.constant 1 : index
    %c0_128 = arith.constant 0 : index
    %c0_129 = arith.constant 0 : index
    %265 = vector.load %arg18[%c1_127, %c0_128, %c0_129] : memref<2x1x32xf32, #tpu.memory_space<vmem>>, vector<1x1x32xf32>
    %266 = vector.shape_cast %265 : vector<1x1x32xf32> to vector<1x32xf32>
    %cst_130 = arith.constant dense<0.000000e+00> : vector<8xf32>
    %267 = vector.multi_reduction <add>, %262, %cst_130 [1] : vector<8x32xf32> to vector<8xf32>
    %268 = vector.shape_cast %267 : vector<8xf32> to vector<8x1xf32>
    %cst_131 = arith.constant 3.200000e+01 : f32
    %269 = vector.broadcast %cst_131 : f32 to vector<8x1xf32>
    %270 = arith.divf %268, %269 : vector<8x1xf32>
    %271 = vector.broadcast %270 : vector<8x1xf32> to vector<8x32xf32>
    %272 = arith.subf %262, %271 : vector<8x32xf32>
    %273 = arith.mulf %272, %272 : vector<8x32xf32>
    %cst_132 = arith.constant dense<0.000000e+00> : vector<8xf32>
    %274 = vector.multi_reduction <add>, %273, %cst_132 [1] : vector<8x32xf32> to vector<8xf32>
    %275 = vector.shape_cast %274 : vector<8xf32> to vector<8x1xf32>
    %cst_133 = arith.constant 3.200000e+01 : f32
    %276 = vector.broadcast %cst_133 : f32 to vector<8x1xf32>
    %277 = arith.divf %275, %276 : vector<8x1xf32>
    %278 = vector.broadcast %270 : vector<8x1xf32> to vector<8x32xf32>
    %279 = arith.subf %262, %278 : vector<8x32xf32>
    %cst_134 = arith.constant 9.99999974E-6 : f32
    %280 = vector.broadcast %cst_134 : f32 to vector<8x1xf32>
    %281 = arith.addf %277, %280 : vector<8x1xf32>
    %282 = math.rsqrt %281 : vector<8x1xf32>
    %283 = vector.broadcast %282 : vector<8x1xf32> to vector<8x32xf32>
    %284 = arith.mulf %279, %283 : vector<8x32xf32>
    %285 = vector.broadcast %264 : vector<1x32xf32> to vector<8x32xf32>
    %286 = arith.mulf %284, %285 : vector<8x32xf32>
    %287 = vector.broadcast %266 : vector<1x32xf32> to vector<8x32xf32>
    %288 = arith.addf %286, %287 : vector<8x32xf32>
    %289 = arith.truncf %288 : vector<8x32xf32> to vector<8x32xbf16>
    %c1_135 = arith.constant 1 : index
    %c0_136 = arith.constant 0 : index
    %c0_137 = arith.constant 0 : index
    %290 = vector.load %arg13[%c1_135, %c0_136, %c0_137] : memref<2x32x32xbf16, #tpu.memory_space<vmem>>, vector<1x32x32xbf16>
    %291 = vector.shape_cast %290 : vector<1x32x32xbf16> to vector<32x32xbf16>
    %cst_138 = arith.constant dense<0.000000e+00> : vector<8x32xf32>
    %292 = tpu.matmul %289, %291, %cst_138 {dimension_numbers = #tpu.dot_dimension_numbers<[1], [0], [0], [1], [0, 0, 1, 1], [], []>} : vector<8x32xbf16>, vector<32x32xbf16>, vector<8x32xf32> -> vector<8x32xf32>
    %c1_139 = arith.constant 1 : index
    %c0_140 = arith.constant 0 : index
    %c0_141 = arith.constant 0 : index
    %293 = vector.load %arg14[%c1_139, %c0_140, %c0_141] : memref<2x1x32xf32, #tpu.memory_space<vmem>>, vector<1x1x32xf32>
    %294 = vector.shape_cast %293 : vector<1x1x32xf32> to vector<1x32xf32>
    %295 = vector.broadcast %294 : vector<1x32xf32> to vector<8x32xf32>
    %296 = arith.addf %292, %295 : vector<8x32xf32>
    %cst_142 = arith.constant 0.000000e+00 : f32
    %297 = vector.broadcast %cst_142 : f32 to vector<8x32xf32>
    %298 = arith.maximumf %296, %297 : vector<8x32xf32>
    %299 = arith.truncf %298 : vector<8x32xf32> to vector<8x32xbf16>
    %c1_143 = arith.constant 1 : index
    %c0_144 = arith.constant 0 : index
    %c0_145 = arith.constant 0 : index
    %300 = vector.load %arg15[%c1_143, %c0_144, %c0_145] : memref<2x32x32xbf16, #tpu.memory_space<vmem>>, vector<1x32x32xbf16>
    %301 = vector.shape_cast %300 : vector<1x32x32xbf16> to vector<32x32xbf16>
    %cst_146 = arith.constant dense<0.000000e+00> : vector<8x32xf32>
    %302 = tpu.matmul %299, %301, %cst_146 {dimension_numbers = #tpu.dot_dimension_numbers<[1], [0], [0], [1], [0, 0, 1, 1], [], []>} : vector<8x32xbf16>, vector<32x32xbf16>, vector<8x32xf32> -> vector<8x32xf32>
    %c1_147 = arith.constant 1 : index
    %c0_148 = arith.constant 0 : index
    %c0_149 = arith.constant 0 : index
    %303 = vector.load %arg16[%c1_147, %c0_148, %c0_149] : memref<2x1x32xf32, #tpu.memory_space<vmem>>, vector<1x1x32xf32>
    %304 = vector.shape_cast %303 : vector<1x1x32xf32> to vector<1x32xf32>
    %305 = vector.broadcast %304 : vector<1x32xf32> to vector<8x32xf32>
    %306 = arith.addf %302, %305 : vector<8x32xf32>
    %307 = arith.addf %288, %306 : vector<8x32xf32>
    %c1_150 = arith.constant 1 : index
    %c0_151 = arith.constant 0 : index
    %c0_152 = arith.constant 0 : index
    %308 = vector.load %arg19[%c1_150, %c0_151, %c0_152] : memref<2x1x32xf32, #tpu.memory_space<vmem>>, vector<1x1x32xf32>
    %309 = vector.shape_cast %308 : vector<1x1x32xf32> to vector<1x32xf32>
    %c1_153 = arith.constant 1 : index
    %c0_154 = arith.constant 0 : index
    %c0_155 = arith.constant 0 : index
    %310 = vector.load %arg20[%c1_153, %c0_154, %c0_155] : memref<2x1x32xf32, #tpu.memory_space<vmem>>, vector<1x1x32xf32>
    %311 = vector.shape_cast %310 : vector<1x1x32xf32> to vector<1x32xf32>
    %cst_156 = arith.constant dense<0.000000e+00> : vector<8xf32>
    %312 = vector.multi_reduction <add>, %307, %cst_156 [1] : vector<8x32xf32> to vector<8xf32>
    %313 = vector.shape_cast %312 : vector<8xf32> to vector<8x1xf32>
    %cst_157 = arith.constant 3.200000e+01 : f32
    %314 = vector.broadcast %cst_157 : f32 to vector<8x1xf32>
    %315 = arith.divf %313, %314 : vector<8x1xf32>
    %316 = vector.broadcast %315 : vector<8x1xf32> to vector<8x32xf32>
    %317 = arith.subf %307, %316 : vector<8x32xf32>
    %318 = arith.mulf %317, %317 : vector<8x32xf32>
    %cst_158 = arith.constant dense<0.000000e+00> : vector<8xf32>
    %319 = vector.multi_reduction <add>, %318, %cst_158 [1] : vector<8x32xf32> to vector<8xf32>
    %320 = vector.shape_cast %319 : vector<8xf32> to vector<8x1xf32>
    %cst_159 = arith.constant 3.200000e+01 : f32
    %321 = vector.broadcast %cst_159 : f32 to vector<8x1xf32>
    %322 = arith.divf %320, %321 : vector<8x1xf32>
    %323 = vector.broadcast %315 : vector<8x1xf32> to vector<8x32xf32>
    %324 = arith.subf %307, %323 : vector<8x32xf32>
    %cst_160 = arith.constant 9.99999974E-6 : f32
    %325 = vector.broadcast %cst_160 : f32 to vector<8x1xf32>
    %326 = arith.addf %322, %325 : vector<8x1xf32>
    %327 = math.rsqrt %326 : vector<8x1xf32>
    %328 = vector.broadcast %327 : vector<8x1xf32> to vector<8x32xf32>
    %329 = arith.mulf %324, %328 : vector<8x32xf32>
    %330 = vector.broadcast %309 : vector<1x32xf32> to vector<8x32xf32>
    %331 = arith.mulf %329, %330 : vector<8x32xf32>
    %332 = vector.broadcast %311 : vector<1x32xf32> to vector<8x32xf32>
    %333 = arith.addf %331, %332 : vector<8x32xf32>
    %c0_161 = arith.constant 0 : index
    %334 = memref.load %arg1[%c0_161] : memref<1xf32, #tpu.memory_space<smem>>
    %335 = vector.broadcast %334 : f32 to vector<1x8x32xf32>
    %336 = arith.mulf %335, %0 : vector<1x8x32xf32>
    %cst_162 = arith.constant 1.000000e+00 : f32
    %337 = arith.subf %cst_162, %334 : f32
    %338 = vector.shape_cast %333 : vector<8x32xf32> to vector<1x8x32xf32>
    %339 = vector.broadcast %337 : f32 to vector<1x8x32xf32>
    %340 = arith.mulf %339, %338 : vector<1x8x32xf32>
    %341 = arith.addf %336, %340 : vector<1x8x32xf32>
    %c0_163 = arith.constant 0 : index
    %c0_164 = arith.constant 0 : index
    %c0_165 = arith.constant 0 : index
    %342 = vector.load %arg21[%c0_163, %c0_164, %c0_165] : memref<1x8x32xf32, #tpu.memory_space<vmem>>, vector<1x8x32xf32>
    tpu.vector_store %arg21[%c0_163, %c0_164, %c0_165], %341 {strides = array<i32>} : memref<1x8x32xf32, #tpu.memory_space<vmem>>, vector<1x8x32xf32>,
    return
  }
  func.func @transform_0(%arg0: i32) -> i32 {
    %c0_i32 = arith.constant 0 : i32
    %c0_i32_0 = arith.constant 0 : i32
    return %c0_i32 : i32
  }
  func.func @transform_1(%arg0: i32) -> (i32, i32, i32) {
    %c0_i32 = arith.constant 0 : i32
    %c0_i32_0 = arith.constant 0 : i32
    %c0_i32_1 = arith.constant 0 : i32
    return %arg0, %c0_i32, %c0_i32_0 : i32, i32, i32
  }
  func.func @transform_2(%arg0: i32) -> (i32, i32, i32) {
    %c0_i32 = arith.constant 0 : i32
    %c0_i32_0 = arith.constant 0 : i32
    %c0_i32_1 = arith.constant 0 : i32
    %c0_i32_2 = arith.constant 0 : i32
    return %c0_i32, %c0_i32_0, %c0_i32_1 : i32, i32, i32
  }
  func.func @transform_3(%arg0: i32) -> (i32, i32, i32) {
    %c0_i32 = arith.constant 0 : i32
    %c0_i32_0 = arith.constant 0 : i32
    %c0_i32_1 = arith.constant 0 : i32
    return %arg0, %c0_i32, %c0_i32_0 : i32, i32, i32
  }
  func.func @transform_4(%arg0: i32) -> (i32, i32, i32) {
    %c0_i32 = arith.constant 0 : i32
    %c0_i32_0 = arith.constant 0 : i32
    %c0_i32_1 = arith.constant 0 : i32
    %c0_i32_2 = arith.constant 0 : i32
    return %c0_i32, %c0_i32_0, %c0_i32_1 : i32, i32, i32
  }
  func.func @transform_5(%arg0: i32) -> (i32, i32, i32) {
    %c0_i32 = arith.constant 0 : i32
    %c0_i32_0 = arith.constant 0 : i32
    %c0_i32_1 = arith.constant 0 : i32
    %c0_i32_2 = arith.constant 0 : i32
    return %c0_i32, %c0_i32_0, %c0_i32_1 : i32, i32, i32
  }
  func.func @transform_6(%arg0: i32) -> (i32, i32, i32) {
    %c0_i32 = arith.constant 0 : i32
    %c0_i32_0 = arith.constant 0 : i32
    %c0_i32_1 = arith.constant 0 : i32
    %c0_i32_2 = arith.constant 0 : i32
    return %c0_i32, %c0_i32_0, %c0_i32_1 : i32, i32, i32
  }
  func.func @transform_7(%arg0: i32) -> (i32, i32, i32) {
    %c0_i32 = arith.constant 0 : i32
    %c0_i32_0 = arith.constant 0 : i32
    %c0_i32_1 = arith.constant 0 : i32
    %c0_i32_2 = arith.constant 0 : i32
    return %c0_i32, %c0_i32_0, %c0_i32_1 : i32, i32, i32
  }
  func.func @transform_8(%arg0: i32) -> (i32, i32, i32) {
    %c0_i32 = arith.constant 0 : i32
    %c0_i32_0 = arith.constant 0 : i32
    %c0_i32_1 = arith.constant 0 : i32
    %c0_i32_2 = arith.constant 0 : i32
    return %c0_i32, %c0_i32_0, %c0_i32_1 : i32, i32, i32
  }
  func.func @transform_9(%arg0: i32) -> (i32, i32, i32) {
    %c0_i32 = arith.constant 0 : i32
    %c0_i32_0 = arith.constant 0 : i32
    %c0_i32_1 = arith.constant 0 : i32
    %c0_i32_2 = arith.constant 0 : i32
    return %c0_i32, %c0_i32_0, %c0_i32_1 : i32, i32, i32
  }
  func.func @transform_10(%arg0: i32) -> (i32, i32, i32) {
    %c0_i32 = arith.constant 0 : i32
    %c0_i32_0 = arith.constant 0 : i32
    %c0_i32_1 = arith.constant 0 : i32
    %c0_i32_2 = arith.constant 0 : i32
    return %c0_i32, %c0_i32_0, %c0_i32_1 : i32, i32, i32
  }
  func.func @transform_11(%arg0: i32) -> (i32, i32, i32) {
    %c0_i32 = arith.constant 0 : i32
    %c0_i32_0 = arith.constant 0 : i32
    %c0_i32_1 = arith.constant 0 : i32
    %c0_i32_2 = arith.constant 0 : i32
    return %c0_i32, %c0_i32_0, %c0_i32_1 : i32, i32, i32
  }
  func.func @transform_12(%arg0: i32) -> (i32, i32, i32) {
    %c0_i32 = arith.constant 0 : i32
    %c0_i32_0 = arith.constant 0 : i32
    %c0_i32_1 = arith.constant 0 : i32
    %c0_i32_2 = arith.constant 0 : i32
    return %c0_i32, %c0_i32_0, %c0_i32_1 : i32, i32, i32
  }
  func.func @transform_13(%arg0: i32) -> (i32, i32, i32) {
    %c0_i32 = arith.constant 0 : i32
    %c0_i32_0 = arith.constant 0 : i32
    %c0_i32_1 = arith.constant 0 : i32
    %c0_i32_2 = arith.constant 0 : i32
    return %c0_i32, %c0_i32_0, %c0_i32_1 : i32, i32, i32
  }
  func.func @transform_14(%arg0: i32) -> (i32, i32, i32) {
    %c0_i32 = arith.constant 0 : i32
    %c0_i32_0 = arith.constant 0 : i32
    %c0_i32_1 = arith.constant 0 : i32
    %c0_i32_2 = arith.constant 0 : i32
    return %c0_i32, %c0_i32_0, %c0_i32_1 : i32, i32, i32
  }
  func.func @transform_15(%arg0: i32) -> (i32, i32, i32) {
    %c0_i32 = arith.constant 0 : i32
    %c0_i32_0 = arith.constant 0 : i32
    %c0_i32_1 = arith.constant 0 : i32
    %c0_i32_2 = arith.constant 0 : i32
    return %c0_i32, %c0_i32_0, %c0_i32_1 : i32, i32, i32
  }
  func.func @transform_16(%arg0: i32) -> (i32, i32, i32) {
    %c0_i32 = arith.constant 0 : i32
    %c0_i32_0 = arith.constant 0 : i32
    %c0_i32_1 = arith.constant 0 : i32
    %c0_i32_2 = arith.constant 0 : i32
    return %c0_i32, %c0_i32_0, %c0_i32_1 : i32, i32, i32
  }
  func.func @transform_17(%arg0: i32) -> (i32, i32, i32) {
    %c0_i32 = arith.constant 0 : i32
    %c0_i32_0 = arith.constant 0 : i32
    %c0_i32_1 = arith.constant 0 : i32
    %c0_i32_2 = arith.constant 0 : i32
    return %c0_i32, %c0_i32_0, %c0_i32_1 : i32, i32, i32
  }
  func.func @transform_18(%arg0: i32) -> (i32, i32, i32) {
    %c0_i32 = arith.constant 0 : i32
    %c0_i32_0 = arith.constant 0 : i32
    %c0_i32_1 = arith.constant 0 : i32
    %c0_i32_2 = arith.constant 0 : i32
    return %c0_i32, %c0_i32_0, %c0_i32_1 : i32, i32, i32
  }
  func.func @transform_19(%arg0: i32) -> (i32, i32, i32) {
    %c0_i32 = arith.constant 0 : i32
    %c0_i32_0 = arith.constant 0 : i32
    %c0_i32_1 = arith.constant 0 : i32
    %c0_i32_2 = arith.constant 0 : i32
    return %c0_i32, %c0_i32_0, %c0_i32_1 : i32, i32, i32
  }
  func.func @transform_20(%arg0: i32) -> (i32, i32, i32) {
    %c0_i32 = arith.constant 0 : i32
    %c0_i32_0 = arith.constant 0 : i32
    %c0_i32_1 = arith.constant 0 : i32
    return %arg0, %c0_i32, %c0_i32_0 : i32, i32, i32
  }
}

</mosaic_0001>

<llo_original>
// kernel: tpu_custom_call.1
$region0: #{tpu_custom_call.1}
  #allocation0 [shape = 'u32[]', space=smem, size = 0x4, offset = 0x4, fixed_abs, tag = 'smem constant byte address 0x4 - core index']
  #allocation1 [shape = 'u32[144,128]{1,0:T(1,128)}', space=vmem, size = 0x12000, scoped, tag = 'internal scratch']
  #allocation2 [shape = 'f32[1]{0:T(128)S(6)}', space=smem, size = 0x200, scoped, tag = 'scoped memory for tpu_custom_call.1']
  %s0 = inlined_call_operand.<no memory space> [shape: f32[1], index: 0, kind: input, shape index: {}]
  %s1 = inlined_call_operand.hbm [shape: f32[2,8,32], index: 1, kind: input, shape index: {}]
  %s2 = inlined_call_operand.hbm [shape: f32[1,8,32], index: 2, kind: input, shape index: {}]
  %s3 = inlined_call_operand.vmem [shape: f32[2,1,8], index: 3, kind: input, shape index: {}]
  %s4 = inlined_call_operand.hbm [shape: bf16[2,32,32], index: 4, kind: input, shape index: {}]
  %s5 = inlined_call_operand.hbm [shape: bf16[2,32,32], index: 5, kind: input, shape index: {}]
  %s6 = inlined_call_operand.hbm [shape: bf16[2,32,32], index: 6, kind: input, shape index: {}]
  %s7 = inlined_call_operand.vmem [shape: f32[2,1,32], index: 7, kind: input, shape index: {}]
  %s8 = inlined_call_operand.hbm [shape: f32[2,1,32], index: 8, kind: input, shape index: {}]
  %s9 = inlined_call_operand.hbm [shape: f32[2,1,32], index: 9, kind: input, shape index: {}]
  %s10 = inlined_call_operand.vmem [shape: bf16[2,32,32], index: 10, kind: input, shape index: {}]
  %s11 = inlined_call_operand.vmem [shape: f32[2,1,32], index: 11, kind: input, shape index: {}]
  %s12 = inlined_call_operand.hbm [shape: bf16[2,32,32], index: 12, kind: input, shape index: {}]
  %s13 = inlined_call_operand.vmem [shape: f32[2,1,32], index: 13, kind: input, shape index: {}]
  %s14 = inlined_call_operand.hbm [shape: bf16[2,32,32], index: 14, kind: input, shape index: {}]
  %s15 = inlined_call_operand.vmem [shape: f32[2,1,32], index: 15, kind: input, shape index: {}]
  %s16 = inlined_call_operand.vmem [shape: f32[2,1,32], index: 16, kind: input, shape index: {}]
  %s17 = inlined_call_operand.vmem [shape: f32[2,1,32], index: 17, kind: input, shape index: {}]
  %s18 = inlined_call_operand.vmem [shape: f32[2,1,32], index: 18, kind: input, shape index: {}]
  %s19 = inlined_call_operand.vmem [shape: f32[2,1,32], index: 19, kind: input, shape index: {}]
  %s20 = inlined_call_operand.hbm [shape: f32[2,8,32], index: 20, kind: output, shape index: {}]
  %s21 = sld [smem:[#allocation0]]
  $region149: #{tpu_custom_call.1} parent=0
    _
  %s23 = ssub.s32 1, %s21
  %s24 = scalar_select 0, %s23, %s21
  %25 = sst [smem:[#allocation2]] %s0
  $region1: #{tpu_custom_call.1} parent=0
    #allocation3 [shape = 'u8[8192]{0}', space=vmem, size = 0x2000, scoped, tag = 'input window, operand 1']
    #allocation4 [shape = 's32[2]{0}', space=sflag, size = 0x8, scoped, tag = 'scoped memory for tpu_custom_call.1']
    #allocation5 [shape = 's32[2]{0}', space=sflag, size = 0x8, scoped, tag = 'scoped memory for tpu_custom_call.1']
    #allocation6 [shape = 'u8[4096]{0}', space=vmem, size = 0x1000, scoped, tag = 'input window, operand 2, single buffered']
    #allocation7 [shape = 's32[1]{0}', space=sflag, size = 0x4, scoped, tag = 'scoped memory for tpu_custom_call.1']
    #allocation8 [shape = 'u8[16384]{0}', space=vmem, size = 0x4000, scoped, tag = 'input window, operand 4, single buffered']
    #allocation9 [shape = 'u8[16384]{0}', space=vmem, size = 0x4000, scoped, tag = 'input window, operand 5, single buffered']
    #allocation10 [shape = 's32[1]{0}', space=sflag, size = 0x4, scoped, tag = 'scoped memory for tpu_custom_call.1']
    #allocation11 [shape = 'u8[16384]{0}', space=vmem, size = 0x4000, scoped, tag = 'input window, operand 6, single buffered']
    #allocation12 [shape = 'u8[1024]{0}', space=vmem, size = 0x400, scoped, tag = 'input window, operand 8, single buffered']
    #allocation13 [shape = 's32[1]{0}', space=sflag, size = 0x4, scoped, tag = 'scoped memory for tpu_custom_call.1']
    #allocation14 [shape = 'u8[1024]{0}', space=vmem, size = 0x400, scoped, tag = 'input window, operand 9, single buffered']
    #allocation15 [shape = 'u8[16384]{0}', space=vmem, size = 0x4000, scoped, tag = 'input window, operand 12, single buffered']
    #allocation16 [shape = 's32[1]{0}', space=sflag, size = 0x4, scoped, tag = 'scoped memory for tpu_custom_call.1']
    #allocation17 [shape = 'u8[16384]{0}', space=vmem, size = 0x4000, scoped, tag = 'input window, operand 14, single buffered']
    #allocation18 [shape = 'u8[8192]{0}', space=vmem, size = 0x2000, scoped, tag = 'output window, operand 0']
    %26 = vsyncpa [#allocation4], 0
    %s27 = scalar_lea.sflag [#allocation4], 1
    %28 = vsyncpa %s27, 0
    %29 = vsyncpa [#allocation7], 0
    %30 = vsyncpa [#allocation10], 0
    %31 = vsyncpa [#allocation13], 0
    %32 = vsyncpa [#allocation16], 0
    %33 = vsyncpa [#allocation5], 0
    %s34 = scalar_lea.sflag [#allocation5], 1
    %35 = vsyncpa %s34, 0
    loop: start=0, step=1, limit=4
    $region2: #{tpu_custom_call.1} parent=1 // loop_pre_header
      _
    $region3: #{tpu_custom_call.1} parent=1 // loop_header
      %s37 = sphi 0, %s41
      %p38 = scmp.ge.s32.totalorder %s37, 4
      %s45 = sphi 0, %s45
      %s47 = sphi 0, %s45
      %s48 = sphi 0, %s47
      %s62 = sphi 0, %s48
      %s68 = sphi 0, %s70
      %s71 = sphi 0, %s68
      %s72 = sphi 0, %s71
      %s88 = sphi 0, %s72
      %s92 = sphi 0, %s92
      %s94 = sphi 0, %s92
      %s95 = sphi 0, %s94
      %s109 = sphi 0, %s95
      %s115 = sphi 0, %s117
      %s118 = sphi 0, %s115
      %s119 = sphi 0, %s118
      %s135 = sphi 0, %s119
      %s139 = sphi 0, %s139
      %s141 = sphi 0, %s139
      %s142 = sphi 0, %s141
      %s156 = sphi 0, %s142
      %s160 = sphi 0, %s160
      %s162 = sphi 0, %s160
      %s163 = sphi 0, %s162
      %s177 = sphi 0, %s163
      %s181 = sphi 0, %s181
      %s183 = sphi 0, %s181
      %s184 = sphi 0, %s183
      %s198 = sphi 0, %s184
      %s202 = sphi 0, %s202
      %s204 = sphi 0, %s202
      %s205 = sphi 0, %s204
      %s219 = sphi 0, %s205
      %s223 = sphi 0, %s223
      %s225 = sphi 0, %s223
      %s226 = sphi 0, %s225
      %s240 = sphi 0, %s226
      %s244 = sphi 0, %s244
      %s246 = sphi 0, %s244
      %s247 = sphi 0, %s246
      %s261 = sphi 0, %s247
      %s265 = sphi 0, %s265
      %s267 = sphi 0, %s265
      %s268 = sphi 0, %s267
      %s282 = sphi 0, %s268
      %s286 = sphi 0, %s286
      %s288 = sphi 0, %s286
      %s289 = sphi 0, %s288
      %s303 = sphi 0, %s289
      %s307 = sphi 0, %s307
      %s309 = sphi 0, %s307
      %s310 = sphi 0, %s309
      %s324 = sphi 0, %s310
      %s328 = sphi 0, %s328
      %s330 = sphi 0, %s328
      %s331 = sphi 0, %s330
      %s345 = sphi 0, %s331
      %s349 = sphi 0, %s349
      %s351 = sphi 0, %s349
      %s352 = sphi 0, %s351
      %s366 = sphi 0, %s352
      %s370 = sphi 0, %s370
      %s372 = sphi 0, %s370
      %s373 = sphi 0, %s372
      %s387 = sphi 0, %s373
      %s391 = sphi 0, %s391
      %s393 = sphi 0, %s391
      %s394 = sphi 0, %s393
      %s408 = sphi 0, %s394
      %s412 = sphi 0, %s412
      %s414 = sphi 0, %s412
      %s415 = sphi 0, %s414
      %s429 = sphi 0, %s415
      %s433 = sphi 0, %s433
      %s435 = sphi 0, %s433
      %s436 = sphi 0, %s435
      %s450 = sphi 0, %s436
      %s454 = sphi 0, %s454
      %s456 = sphi 0, %s454
      %s457 = sphi 0, %s456
      %s471 = sphi 0, %s457
      %s477 = sphi 0, %s479
      %s480 = sphi 0, %s477
      %s481 = sphi 0, %s480
      %s497 = sphi 0, %s481
    $region4: #{tpu_custom_call.1} parent=1 // loop_header_branch
      %40 = sbr.rel (%p38) target = $region8
    $region5: #{tpu_custom_call.1} parent=1 // loop_body
      %s42 = ssub.s32 %s37, 1
      %s43 = ssub.s32 %s37, 2
      %s44 = sadd.s32 %s37, 1
      %s46 = sadd.s32 %s45, 1
      %p49 = scmp.eq.s32.totalorder %s37, 1
      %p50 = scmp.ne.s32.totalorder %s45, %s47
      %p51 = scmp.eq.s32.totalorder %s37, 0
      %p52 = por %p50, %p51
      %p53 = scmp.ne.s32.totalorder %s45, %s47
      %p54 = scmp.eq.s32.totalorder %s42, 1
      %p55 = por %p53, %p54
      %p56 = scmp.ne.s32.totalorder %s47, %s48
      %p57 = scmp.eq.s32.totalorder %s42, 0
      %p58 = por %p56, %p57
      %p59 = scmp.ne.s32.totalorder %s47, %s48
      %p60 = scmp.eq.s32.totalorder %s43, 1
      %p61 = por %p59, %p60
      %p63 = scmp.ne.s32.totalorder %s48, %s62
      %p64 = scmp.eq.s32.totalorder %s43, 0
      %p65 = por %p63, %p64
      %s66 = ssub.s32 %s37, %s44
      %p67 = scmp.eq.s32.totalorder %s66, 0
      %s69 = sadd.s32 %s68, 1
      %s70 = scalar_select %p67, %s68, %s69
      %p73 = pneg %p67
      %p74 = scmp.eq.s32.totalorder %s37, 1
      %p75 = por %p73, %p74
      %p76 = scmp.ne.s32.totalorder %s68, %s71
      %p77 = scmp.eq.s32.totalorder %s37, 0
      %p78 = por %p76, %p77
      %p79 = scmp.ne.s32.totalorder %s68, %s71
      %p80 = scmp.eq.s32.totalorder %s42, 1
      %p81 = por %p79, %p80
      %p82 = scmp.ne.s32.totalorder %s71, %s72
      %p83 = scmp.eq.s32.totalorder %s42, 0
      %p84 = por %p82, %p83
      %p85 = scmp.ne.s32.totalorder %s71, %s72
      %p86 = scmp.eq.s32.totalorder %s43, 1
      %p87 = por %p85, %p86
      %p89 = scmp.ne.s32.totalorder %s72, %s88
      %p90 = scmp.eq.s32.totalorder %s43, 0
      %p91 = por %p89, %p90
      %s93 = sadd.s32 %s92, 1
      %p96 = scmp.eq.s32.totalorder %s37, 1
      %p97 = scmp.ne.s32.totalorder %s92, %s94
      %p98 = scmp.eq.s32.totalorder %s37, 0
      %p99 = por %p97, %p98
      %p100 = scmp.ne.s32.totalorder %s92, %s94
      %p101 = scmp.eq.s32.totalorder %s42, 1
      %p102 = por %p100, %p101
      %p103 = scmp.ne.s32.totalorder %s94, %s95
      %p104 = scmp.eq.s32.totalorder %s42, 0
      %p105 = por %p103, %p104
      %p106 = scmp.ne.s32.totalorder %s94, %s95
      %p107 = scmp.eq.s32.totalorder %s43, 1
      %p108 = por %p106, %p107
      %p110 = scmp.ne.s32.totalorder %s95, %s109
      %p111 = scmp.eq.s32.totalorder %s43, 0
      %p112 = por %p110, %p111
      %s113 = ssub.s32 %s37, %s44
      %p114 = scmp.eq.s32.totalorder %s113, 0
      %s116 = sadd.s32 %s115, 1
      %s117 = scalar_select %p114, %s115, %s116
      %p120 = pneg %p114
      %p121 = scmp.eq.s32.totalorder %s37, 1
      %p122 = por %p120, %p121
      %p123 = scmp.ne.s32.totalorder %s115, %s118
      %p124 = scmp.eq.s32.totalorder %s37, 0
      %p125 = por %p123, %p124
      %p126 = scmp.ne.s32.totalorder %s115, %s118
      %p127 = scmp.eq.s32.totalorder %s42, 1
      %p128 = por %p126, %p127
      %p129 = scmp.ne.s32.totalorder %s118, %s119
      %p130 = scmp.eq.s32.totalorder %s42, 0
      %p131 = por %p129, %p130
      %p132 = scmp.ne.s32.totalorder %s118, %s119
      %p133 = scmp.eq.s32.totalorder %s43, 1
      %p134 = por %p132, %p133
      %p136 = scmp.ne.s32.totalorder %s119, %s135
      %p137 = scmp.eq.s32.totalorder %s43, 0
      %p138 = por %p136, %p137
      %s140 = sadd.s32 %s139, 1
      %p143 = scmp.eq.s32.totalorder %s37, 1
      %p144 = scmp.ne.s32.totalorder %s139, %s141
      %p145 = scmp.eq.s32.totalorder %s37, 0
      %p146 = por %p144, %p145
      %p147 = scmp.ne.s32.totalorder %s139, %s141
      %p148 = scmp.eq.s32.totalorder %s42, 1
      %p149 = por %p147, %p148
      %p150 = scmp.ne.s32.totalorder %s141, %s142
      %p151 = scmp.eq.s32.totalorder %s42, 0
      %p152 = por %p150, %p151
      %p153 = scmp.ne.s32.totalorder %s141, %s142
      %p154 = scmp.eq.s32.totalorder %s43, 1
      %p155 = por %p153, %p154
      %p157 = scmp.ne.s32.totalorder %s142, %s156
      %p158 = scmp.eq.s32.totalorder %s43, 0
      %p159 = por %p157, %p158
      %s161 = sadd.s32 %s160, 1
      %p164 = scmp.eq.s32.totalorder %s37, 1
      %p165 = scmp.ne.s32.totalorder %s160, %s162
      %p166 = scmp.eq.s32.totalorder %s37, 0
      %p167 = por %p165, %p166
      %p168 = scmp.ne.s32.totalorder %s160, %s162
      %p169 = scmp.eq.s32.totalorder %s42, 1
      %p170 = por %p168, %p169
      %p171 = scmp.ne.s32.totalorder %s162, %s163
      %p172 = scmp.eq.s32.totalorder %s42, 0
      %p173 = por %p171, %p172
      %p174 = scmp.ne.s32.totalorder %s162, %s163
      %p175 = scmp.eq.s32.totalorder %s43, 1
      %p176 = por %p174, %p175
      %p178 = scmp.ne.s32.totalorder %s163, %s177
      %p179 = scmp.eq.s32.totalorder %s43, 0
      %p180 = por %p178, %p179
      %s182 = sadd.s32 %s181, 1
      %p185 = scmp.eq.s32.totalorder %s37, 1
      %p186 = scmp.ne.s32.totalorder %s181, %s183
      %p187 = scmp.eq.s32.totalorder %s37, 0
      %p188 = por %p186, %p187
      %p189 = scmp.ne.s32.totalorder %s181, %s183
      %p190 = scmp.eq.s32.totalorder %s42, 1
      %p191 = por %p189, %p190
      %p192 = scmp.ne.s32.totalorder %s183, %s184
      %p193 = scmp.eq.s32.totalorder %s42, 0
      %p194 = por %p192, %p193
      %p195 = scmp.ne.s32.totalorder %s183, %s184
      %p196 = scmp.eq.s32.totalorder %s43, 1
      %p197 = por %p195, %p196
      %p199 = scmp.ne.s32.totalorder %s184, %s198
      %p200 = scmp.eq.s32.totalorder %s43, 0
      %p201 = por %p199, %p200
      %s203 = sadd.s32 %s202, 1
      %p206 = scmp.eq.s32.totalorder %s37, 1
      %p207 = scmp.ne.s32.totalorder %s202, %s204
      %p208 = scmp.eq.s32.totalorder %s37, 0
      %p209 = por %p207, %p208
      %p210 = scmp.ne.s32.totalorder %s202, %s204
      %p211 = scmp.eq.s32.totalorder %s42, 1
      %p212 = por %p210, %p211
      %p213 = scmp.ne.s32.totalorder %s204, %s205
      %p214 = scmp.eq.s32.totalorder %s42, 0
      %p215 = por %p213, %p214
      %p216 = scmp.ne.s32.totalorder %s204, %s205
      %p217 = scmp.eq.s32.totalorder %s43, 1
      %p218 = por %p216, %p217
      %p220 = scmp.ne.s32.totalorder %s205, %s219
      %p221 = scmp.eq.s32.totalorder %s43, 0
      %p222 = por %p220, %p221
      %s224 = sadd.s32 %s223, 1
      %p227 = scmp.eq.s32.totalorder %s37, 1
      %p228 = scmp.ne.s32.totalorder %s223, %s225
      %p229 = scmp.eq.s32.totalorder %s37, 0
      %p230 = por %p228, %p229
      %p231 = scmp.ne.s32.totalorder %s223, %s225
      %p232 = scmp.eq.s32.totalorder %s42, 1
      %p233 = por %p231, %p232
      %p234 = scmp.ne.s32.totalorder %s225, %s226
      %p235 = scmp.eq.s32.totalorder %s42, 0
      %p236 = por %p234, %p235
      %p237 = scmp.ne.s32.totalorder %s225, %s226
      %p238 = scmp.eq.s32.totalorder %s43, 1
      %p239 = por %p237, %p238
      %p241 = scmp.ne.s32.totalorder %s226, %s240
      %p242 = scmp.eq.s32.totalorder %s43, 0
      %p243 = por %p241, %p242
      %s245 = sadd.s32 %s244, 1
      %p248 = scmp.eq.s32.totalorder %s37, 1
      %p249 = scmp.ne.s32.totalorder %s244, %s246
      %p250 = scmp.eq.s32.totalorder %s37, 0
      %p251 = por %p249, %p250
      %p252 = scmp.ne.s32.totalorder %s244, %s246
      %p253 = scmp.eq.s32.totalorder %s42, 1
      %p254 = por %p252, %p253
      %p255 = scmp.ne.s32.totalorder %s246, %s247
      %p256 = scmp.eq.s32.totalorder %s42, 0
      %p257 = por %p255, %p256
      %p258 = scmp.ne.s32.totalorder %s246, %s247
      %p259 = scmp.eq.s32.totalorder %s43, 1
      %p260 = por %p258, %p259
      %p262 = scmp.ne.s32.totalorder %s247, %s261
      %p263 = scmp.eq.s32.totalorder %s43, 0
      %p264 = por %p262, %p263
      %s266 = sadd.s32 %s265, 1
      %p269 = scmp.eq.s32.totalorder %s37, 1
      %p270 = scmp.ne.s32.totalorder %s265, %s267
      %p271 = scmp.eq.s32.totalorder %s37, 0
      %p272 = por %p270, %p271
      %p273 = scmp.ne.s32.totalorder %s265, %s267
      %p274 = scmp.eq.s32.totalorder %s42, 1
      %p275 = por %p273, %p274
      %p276 = scmp.ne.s32.totalorder %s267, %s268
      %p277 = scmp.eq.s32.totalorder %s42, 0
      %p278 = por %p276, %p277
      %p279 = scmp.ne.s32.totalorder %s267, %s268
      %p280 = scmp.eq.s32.totalorder %s43, 1
      %p281 = por %p279, %p280
      %p283 = scmp.ne.s32.totalorder %s268, %s282
      %p284 = scmp.eq.s32.totalorder %s43, 0
      %p285 = por %p283, %p284
      %s287 = sadd.s32 %s286, 1
      %p290 = scmp.eq.s32.totalorder %s37, 1
      %p291 = scmp.ne.s32.totalorder %s286, %s288
      %p292 = scmp.eq.s32.totalorder %s37, 0
      %p293 = por %p291, %p292
      %p294 = scmp.ne.s32.totalorder %s286, %s288
      %p295 = scmp.eq.s32.totalorder %s42, 1
      %p296 = por %p294, %p295
      %p297 = scmp.ne.s32.totalorder %s288, %s289
      %p298 = scmp.eq.s32.totalorder %s42, 0
      %p299 = por %p297, %p298
      %p300 = scmp.ne.s32.totalorder %s288, %s289
      %p301 = scmp.eq.s32.totalorder %s43, 1
      %p302 = por %p300, %p301
      %p304 = scmp.ne.s32.totalorder %s289, %s303
      %p305 = scmp.eq.s32.totalorder %s43, 0
      %p306 = por %p304, %p305
      %s308 = sadd.s32 %s307, 1
      %p311 = scmp.eq.s32.totalorder %s37, 1
      %p312 = scmp.ne.s32.totalorder %s307, %s309
      %p313 = scmp.eq.s32.totalorder %s37, 0
      %p314 = por %p312, %p313
      %p315 = scmp.ne.s32.totalorder %s307, %s309
      %p316 = scmp.eq.s32.totalorder %s42, 1
      %p317 = por %p315, %p316
      %p318 = scmp.ne.s32.totalorder %s309, %s310
      %p319 = scmp.eq.s32.totalorder %s42, 0
      %p320 = por %p318, %p319
      %p321 = scmp.ne.s32.totalorder %s309, %s310
      %p322 = scmp.eq.s32.totalorder %s43, 1
      %p323 = por %p321, %p322
      %p325 = scmp.ne.s32.totalorder %s310, %s324
      %p326 = scmp.eq.s32.totalorder %s43, 0
      %p327 = por %p325, %p326
      %s329 = sadd.s32 %s328, 1
      %p332 = scmp.eq.s32.totalorder %s37, 1
      %p333 = scmp.ne.s32.totalorder %s328, %s330
      %p334 = scmp.eq.s32.totalorder %s37, 0
      %p335 = por %p333, %p334
      %p336 = scmp.ne.s32.totalorder %s328, %s330
      %p337 = scmp.eq.s32.totalorder %s42, 1
      %p338 = por %p336, %p337
      %p339 = scmp.ne.s32.totalorder %s330, %s331
      %p340 = scmp.eq.s32.totalorder %s42, 0
      %p341 = por %p339, %p340
      %p342 = scmp.ne.s32.totalorder %s330, %s331
      %p343 = scmp.eq.s32.totalorder %s43, 1
      %p344 = por %p342, %p343
      %p346 = scmp.ne.s32.totalorder %s331, %s345
      %p347 = scmp.eq.s32.totalorder %s43, 0
      %p348 = por %p346, %p347
      %s350 = sadd.s32 %s349, 1
      %p353 = scmp.eq.s32.totalorder %s37, 1
      %p354 = scmp.ne.s32.totalorder %s349, %s351
      %p355 = scmp.eq.s32.totalorder %s37, 0
      %p356 = por %p354, %p355
      %p357 = scmp.ne.s32.totalorder %s349, %s351
      %p358 = scmp.eq.s32.totalorder %s42, 1
      %p359 = por %p357, %p358
      %p360 = scmp.ne.s32.totalorder %s351, %s352
      %p361 = scmp.eq.s32.totalorder %s42, 0
      %p362 = por %p360, %p361
      %p363 = scmp.ne.s32.totalorder %s351, %s352
      %p364 = scmp.eq.s32.totalorder %s43, 1
      %p365 = por %p363, %p364
      %p367 = scmp.ne.s32.totalorder %s352, %s366
      %p368 = scmp.eq.s32.totalorder %s43, 0
      %p369 = por %p367, %p368
      %s371 = sadd.s32 %s370, 1
      %p374 = scmp.eq.s32.totalorder %s37, 1
      %p375 = scmp.ne.s32.totalorder %s370, %s372
      %p376 = scmp.eq.s32.totalorder %s37, 0
      %p377 = por %p375, %p376
      %p378 = scmp.ne.s32.totalorder %s370, %s372
      %p379 = scmp.eq.s32.totalorder %s42, 1
      %p380 = por %p378, %p379
      %p381 = scmp.ne.s32.totalorder %s372, %s373
      %p382 = scmp.eq.s32.totalorder %s42, 0
      %p383 = por %p381, %p382
      %p384 = scmp.ne.s32.totalorder %s372, %s373
      %p385 = scmp.eq.s32.totalorder %s43, 1
      %p386 = por %p384, %p385
      %p388 = scmp.ne.s32.totalorder %s373, %s387
      %p389 = scmp.eq.s32.totalorder %s43, 0
      %p390 = por %p388, %p389
      %s392 = sadd.s32 %s391, 1
      %p395 = scmp.eq.s32.totalorder %s37, 1
      %p396 = scmp.ne.s32.totalorder %s391, %s393
      %p397 = scmp.eq.s32.totalorder %s37, 0
      %p398 = por %p396, %p397
      %p399 = scmp.ne.s32.totalorder %s391, %s393
      %p400 = scmp.eq.s32.totalorder %s42, 1
      %p401 = por %p399, %p400
      %p402 = scmp.ne.s32.totalorder %s393, %s394
      %p403 = scmp.eq.s32.totalorder %s42, 0
      %p404 = por %p402, %p403
      %p405 = scmp.ne.s32.totalorder %s393, %s394
      %p406 = scmp.eq.s32.totalorder %s43, 1
      %p407 = por %p405, %p406
      %p409 = scmp.ne.s32.totalorder %s394, %s408
      %p410 = scmp.eq.s32.totalorder %s43, 0
      %p411 = por %p409, %p410
      %s413 = sadd.s32 %s412, 1
      %p416 = scmp.eq.s32.totalorder %s37, 1
      %p417 = scmp.ne.s32.totalorder %s412, %s414
      %p418 = scmp.eq.s32.totalorder %s37, 0
      %p419 = por %p417, %p418
      %p420 = scmp.ne.s32.totalorder %s412, %s414
      %p421 = scmp.eq.s32.totalorder %s42, 1
      %p422 = por %p420, %p421
      %p423 = scmp.ne.s32.totalorder %s414, %s415
      %p424 = scmp.eq.s32.totalorder %s42, 0
      %p425 = por %p423, %p424
      %p426 = scmp.ne.s32.totalorder %s414, %s415
      %p427 = scmp.eq.s32.totalorder %s43, 1
      %p428 = por %p426, %p427
      %p430 = scmp.ne.s32.totalorder %s415, %s429
      %p431 = scmp.eq.s32.totalorder %s43, 0
      %p432 = por %p430, %p431
      %s434 = sadd.s32 %s433, 1
      %p437 = scmp.eq.s32.totalorder %s37, 1
      %p438 = scmp.ne.s32.totalorder %s433, %s435
      %p439 = scmp.eq.s32.totalorder %s37, 0
      %p440 = por %p438, %p439
      %p441 = scmp.ne.s32.totalorder %s433, %s435
      %p442 = scmp.eq.s32.totalorder %s42, 1
      %p443 = por %p441, %p442
      %p444 = scmp.ne.s32.totalorder %s435, %s436
      %p445 = scmp.eq.s32.totalorder %s42, 0
      %p446 = por %p444, %p445
      %p447 = scmp.ne.s32.totalorder %s435, %s436
      %p448 = scmp.eq.s32.totalorder %s43, 1
      %p449 = por %p447, %p448
      %p451 = scmp.ne.s32.totalorder %s436, %s450
      %p452 = scmp.eq.s32.totalorder %s43, 0
      %p453 = por %p451, %p452
      %s455 = sadd.s32 %s454, 1
      %p458 = scmp.eq.s32.totalorder %s37, 1
      %p459 = scmp.ne.s32.totalorder %s454, %s456
      %p460 = scmp.eq.s32.totalorder %s37, 0
      %p461 = por %p459, %p460
      %p462 = scmp.ne.s32.totalorder %s454, %s456
      %p463 = scmp.eq.s32.totalorder %s42, 1
      %p464 = por %p462, %p463
      %p465 = scmp.ne.s32.totalorder %s456, %s457
      %p466 = scmp.eq.s32.totalorder %s42, 0
      %p467 = por %p465, %p466
      %p468 = scmp.ne.s32.totalorder %s456, %s457
      %p469 = scmp.eq.s32.totalorder %s43, 1
      %p470 = por %p468, %p469
      %p472 = scmp.ne.s32.totalorder %s457, %s471
      %p473 = scmp.eq.s32.totalorder %s43, 0
      %p474 = por %p472, %p473
      %s475 = ssub.s32 %s37, %s44
      %p476 = scmp.eq.s32.totalorder %s475, 0
      %s478 = sadd.s32 %s477, 1
      %s479 = scalar_select %p476, %s477, %s478
      %p482 = pneg %p476
      %p483 = scmp.eq.s32.totalorder %s37, 1
      %p484 = por %p482, %p483
      %p485 = scmp.ne.s32.totalorder %s477, %s480
      %p486 = scmp.eq.s32.totalorder %s37, 0
      %p487 = por %p485, %p486
      %p488 = scmp.ne.s32.totalorder %s477, %s480
      %p489 = scmp.eq.s32.totalorder %s42, 1
      %p490 = por %p488, %p489
      %p491 = scmp.ne.s32.totalorder %s480, %s481
      %p492 = scmp.eq.s32.totalorder %s42, 0
      %p493 = por %p491, %p492
      %p494 = scmp.ne.s32.totalorder %s480, %s481
      %p495 = scmp.eq.s32.totalorder %s43, 1
      %p496 = por %p494, %p495
      %p498 = scmp.ne.s32.totalorder %s481, %s497
      %p499 = scmp.eq.s32.totalorder %s43, 0
      %p500 = por %p498, %p499
      %p501 = scmp.le.s32.totalorder 1, %s37
      %p502 = scmp.lt.s32.totalorder %s37, 3
      %p503 = pnand %p501, %p502
      %p504 = pneg %p503
      // Predicated region
      $region9: #{tpu_custom_call.1} parent=5 // pred_check
        _
      $region10: #{tpu_custom_call.1} parent=5 // pred_check_branch
        %506 = sbr.rel (%p503) target = $region12
      $region11: #{tpu_custom_call.1} parent=5 // pred_region
        %s507 = ssub.s32 %s37, 1
        // Predicated region
        $region13: #{tpu_custom_call.1} parent=11 // pred_check
          %p508 = pneg %p58
        $region14: #{tpu_custom_call.1} parent=11 // pred_check_branch
          %510 = sbr.rel (%p508) target = $region16
        $region15: #{tpu_custom_call.1} parent=11 // pred_region
          _
        $region16: #{tpu_custom_call.1} parent=11 // pred_fallthru
          _
        // Predicated region
        $region17: #{tpu_custom_call.1} parent=11 // pred_check
          %p511 = pneg %p105
        $region18: #{tpu_custom_call.1} parent=11 // pred_check_branch
          %513 = sbr.rel (%p511) target = $region20
        $region19: #{tpu_custom_call.1} parent=11 // pred_region
          %s515 = ssub.s32 128, 128
          %516 = vsyncadd [#allocation7], %s515
          %s518 = sshll.u32 [#allocation6], 4
          %s519 = int_to_ptr.vmem [resolvable:$true] %s518
          %521 = dma.hbm_to_vmem [thread:$0]  %s2, 128, %s519, [#allocation7]
        $region20: #{tpu_custom_call.1} parent=11 // pred_fallthru
          _
        // Predicated region
        $region21: #{tpu_custom_call.1} parent=11 // pred_check
          %p522 = pneg %p152
        $region22: #{tpu_custom_call.1} parent=11 // pred_check_branch
          %524 = sbr.rel (%p522) target = $region24
        $region23: #{tpu_custom_call.1} parent=11 // pred_region
          %s526 = ssub.s32 512, 512
          %527 = vsyncadd [#allocation7], %s526
          %s528 = sshll.u32 [#allocation8], 4
          %s529 = int_to_ptr.vmem [resolvable:$true] %s528
          %534 = dma.hbm_to_vmem [thread:$0]  %s4, 512, %s529, [#allocation7], 64, 64, 4
        $region24: #{tpu_custom_call.1} parent=11 // pred_fallthru
          _
        // Predicated region
        $region25: #{tpu_custom_call.1} parent=11 // pred_check
          %p535 = pneg %p173
        $region26: #{tpu_custom_call.1} parent=11 // pred_check_branch
          %537 = sbr.rel (%p535) target = $region28
        $region27: #{tpu_custom_call.1} parent=11 // pred_region
          %s539 = ssub.s32 512, 512
          %540 = vsyncadd [#allocation10], %s539
          %s541 = sshll.u32 [#allocation9], 4
          %s542 = int_to_ptr.vmem [resolvable:$true] %s541
          %547 = dma.hbm_to_vmem [thread:$0]  %s5, 512, %s542, [#allocation10], 64, 64, 4
        $region28: #{tpu_custom_call.1} parent=11 // pred_fallthru
          _
        // Predicated region
        $region29: #{tpu_custom_call.1} parent=11 // pred_check
          %p548 = pneg %p194
        $region30: #{tpu_custom_call.1} parent=11 // pred_check_branch
          %550 = sbr.rel (%p548) target = $region32
        $region31: #{tpu_custom_call.1} parent=11 // pred_region
          %s552 = ssub.s32 512, 512
          %553 = vsyncadd [#allocation10], %s552
          %s554 = sshll.u32 [#allocation11], 4
          %s555 = int_to_ptr.vmem [resolvable:$true] %s554
          %560 = dma.hbm_to_vmem [thread:$0]  %s6, 512, %s555, [#allocation10], 64, 64, 4
        $region32: #{tpu_custom_call.1} parent=11 // pred_fallthru
          _
        // Predicated region
        $region33: #{tpu_custom_call.1} parent=11 // pred_check
          %p561 = pneg %p215
        $region34: #{tpu_custom_call.1} parent=11 // pred_check_branch
          %563 = sbr.rel (%p561) target = $region36
        $region35: #{tpu_custom_call.1} parent=11 // pred_region
          _
        $region36: #{tpu_custom_call.1} parent=11 // pred_fallthru
          _
        // Predicated region
        $region37: #{tpu_custom_call.1} parent=11 // pred_check
          %p564 = pneg %p236
        $region38: #{tpu_custom_call.1} parent=11 // pred_check_branch
          %566 = sbr.rel (%p564) target = $region40
        $region39: #{tpu_custom_call.1} parent=11 // pred_region
          %s568 = ssub.s32 32, 32
          %569 = vsyncadd [#allocation13], %s568
          %s570 = sshll.u32 [#allocation12], 4
          %s571 = int_to_ptr.vmem [resolvable:$true] %s570
          %576 = dma.hbm_to_vmem [thread:$0]  %s8, 32, %s571, [#allocation13], 16, 16, 1
        $region40: #{tpu_custom_call.1} parent=11 // pred_fallthru
          _
        // Predicated region
        $region41: #{tpu_custom_call.1} parent=11 // pred_check
          %p577 = pneg %p257
        $region42: #{tpu_custom_call.1} parent=11 // pred_check_branch
          %579 = sbr.rel (%p577) target = $region44
        $region43: #{tpu_custom_call.1} parent=11 // pred_region
          %s581 = ssub.s32 32, 32
          %582 = vsyncadd [#allocation13], %s581
          %s583 = sshll.u32 [#allocation14], 4
          %s584 = int_to_ptr.vmem [resolvable:$true] %s583
          %589 = dma.hbm_to_vmem [thread:$0]  %s9, 32, %s584, [#allocation13], 16, 16, 1
        $region44: #{tpu_custom_call.1} parent=11 // pred_fallthru
          _
        // Predicated region
        $region45: #{tpu_custom_call.1} parent=11 // pred_check
          %p590 = pneg %p278
        $region46: #{tpu_custom_call.1} parent=11 // pred_check_branch
          %592 = sbr.rel (%p590) target = $region48
        $region47: #{tpu_custom_call.1} parent=11 // pred_region
          _
        $region48: #{tpu_custom_call.1} parent=11 // pred_fallthru
          _
        // Predicated region
        $region49: #{tpu_custom_call.1} parent=11 // pred_check
          %p593 = pneg %p299
        $region50: #{tpu_custom_call.1} parent=11 // pred_check_branch
          %595 = sbr.rel (%p593) target = $region52
        $region51: #{tpu_custom_call.1} parent=11 // pred_region
          _
        $region52: #{tpu_custom_call.1} parent=11 // pred_fallthru
          _
        // Predicated region
        $region53: #{tpu_custom_call.1} parent=11 // pred_check
          %p596 = pneg %p320
        $region54: #{tpu_custom_call.1} parent=11 // pred_check_branch
          %598 = sbr.rel (%p596) target = $region56
        $region55: #{tpu_custom_call.1} parent=11 // pred_region
          %s600 = ssub.s32 512, 512
          %601 = vsyncadd [#allocation16], %s600
          %s602 = sshll.u32 [#allocation15], 4
          %s603 = int_to_ptr.vmem [resolvable:$true] %s602
          %608 = dma.hbm_to_vmem [thread:$0]  %s12, 512, %s603, [#allocation16], 64, 64, 4
        $region56: #{tpu_custom_call.1} parent=11 // pred_fallthru
          _
        // Predicated region
        $region57: #{tpu_custom_call.1} parent=11 // pred_check
          %p609 = pneg %p341
        $region58: #{tpu_custom_call.1} parent=11 // pred_check_branch
          %611 = sbr.rel (%p609) target = $region60
        $region59: #{tpu_custom_call.1} parent=11 // pred_region
          _
        $region60: #{tpu_custom_call.1} parent=11 // pred_fallthru
          _
        // Predicated region
        $region61: #{tpu_custom_call.1} parent=11 // pred_check
          %p612 = pneg %p362
        $region62: #{tpu_custom_call.1} parent=11 // pred_check_branch
          %614 = sbr.rel (%p612) target = $region64
        $region63: #{tpu_custom_call.1} parent=11 // pred_region
          %s616 = ssub.s32 512, 512
          %617 = vsyncadd [#allocation16], %s616
          %s618 = sshll.u32 [#allocation17], 4
          %s619 = int_to_ptr.vmem [resolvable:$true] %s618
          %624 = dma.hbm_to_vmem [thread:$0]  %s14, 512, %s619, [#allocation16], 64, 64, 4
        $region64: #{tpu_custom_call.1} parent=11 // pred_fallthru
          _
        // Predicated region
        $region65: #{tpu_custom_call.1} parent=11 // pred_check
          %p625 = pneg %p383
        $region66: #{tpu_custom_call.1} parent=11 // pred_check_branch
          %627 = sbr.rel (%p625) target = $region68
        $region67: #{tpu_custom_call.1} parent=11 // pred_region
          _
        $region68: #{tpu_custom_call.1} parent=11 // pred_fallthru
          _
        // Predicated region
        $region69: #{tpu_custom_call.1} parent=11 // pred_check
          %p628 = pneg %p404
        $region70: #{tpu_custom_call.1} parent=11 // pred_check_branch
          %630 = sbr.rel (%p628) target = $region72
        $region71: #{tpu_custom_call.1} parent=11 // pred_region
          _
        $region72: #{tpu_custom_call.1} parent=11 // pred_fallthru
          _
        // Predicated region
        $region73: #{tpu_custom_call.1} parent=11 // pred_check
          %p631 = pneg %p425
        $region74: #{tpu_custom_call.1} parent=11 // pred_check_branch
          %633 = sbr.rel (%p631) target = $region76
        $region75: #{tpu_custom_call.1} parent=11 // pred_region
          _
        $region76: #{tpu_custom_call.1} parent=11 // pred_fallthru
          _
        // Predicated region
        $region77: #{tpu_custom_call.1} parent=11 // pred_check
          %p634 = pneg %p446
        $region78: #{tpu_custom_call.1} parent=11 // pred_check_branch
          %636 = sbr.rel (%p634) target = $region80
        $region79: #{tpu_custom_call.1} parent=11 // pred_region
          _
        $region80: #{tpu_custom_call.1} parent=11 // pred_fallthru
          _
        // Predicated region
        $region81: #{tpu_custom_call.1} parent=11 // pred_check
          %p637 = pneg %p467
        $region82: #{tpu_custom_call.1} parent=11 // pred_check_branch
          %639 = sbr.rel (%p637) target = $region84
        $region83: #{tpu_custom_call.1} parent=11 // pred_region
          _
        $region84: #{tpu_custom_call.1} parent=11 // pred_fallthru
          _
      $region12: #{tpu_custom_call.1} parent=5 // pred_fallthru
        _
      %p640 = scmp.lt.s32.totalorder %s37, 2
      // Predicated region
      $region85: #{tpu_custom_call.1} parent=5 // pred_check
        %p641 = pneg %p640
      $region86: #{tpu_custom_call.1} parent=5 // pred_check_branch
        %643 = sbr.rel (%p641) target = $region88
      $region87: #{tpu_custom_call.1} parent=5 // pred_region
        // Predicated region
        $region89: #{tpu_custom_call.1} parent=87 // pred_check
          %p644 = pneg %p78
        $region90: #{tpu_custom_call.1} parent=87 // pred_check_branch
          %646 = sbr.rel (%p644) target = $region92
        $region91: #{tpu_custom_call.1} parent=87 // pred_region
          %s647 = sand.u32 %s68, 1
          %s648 = scalar_lea.sflag [#allocation4], %s647
          %s649 = sand.u32 %s68, 1
          %s650 = smul.addr %s649, 8
          %s651 = scalar_lea.vmem [#allocation3], %s650
          %s653 = ssub.s32 128, 128
          %654 = vsyncadd %s648, %s653
          %s655 = smul.addr %s37, 128
          %s656 = scalar_lea.hbm %s1, %s655
          %s658 = sshll.u32 %s651, 4
          %s659 = int_to_ptr.vmem [resolvable:$true] %s658
          %661 = dma.hbm_to_vmem [thread:$0]  %s656, 128, %s659, %s648
        $region92: #{tpu_custom_call.1} parent=87 // pred_fallthru
          _
        // Predicated region
        $region93: #{tpu_custom_call.1} parent=87 // pred_check
          %p662 = pneg %p125
        $region94: #{tpu_custom_call.1} parent=87 // pred_check_branch
          %664 = sbr.rel (%p662) target = $region96
        $region95: #{tpu_custom_call.1} parent=87 // pred_region
          %p665 = scmp.lt.s32.totalorder %s37, 1
          %s666 = scalar_select %p665, %s37, 1
          %s667 = scalar_lea.vmem %s3, %s666
        $region96: #{tpu_custom_call.1} parent=87 // pred_fallthru
          _
      $region88: #{tpu_custom_call.1} parent=5 // pred_fallthru
        _
      %p668 = scmp.le.s32.totalorder 1, %s37
      %p669 = scmp.lt.s32.totalorder %s37, 3
      %p670 = pnand %p668, %p669
      %p671 = pneg %p670
      // Predicated region
      $region97: #{tpu_custom_call.1} parent=5 // pred_check
        _
      $region98: #{tpu_custom_call.1} parent=5 // pred_check_branch
        %673 = sbr.rel (%p670) target = $region100
      $region99: #{tpu_custom_call.1} parent=5 // pred_region
        %s674 = ssub.s32 %s37, 1
        %s675 = sand.u32 %s71, 1
        %s676 = scalar_lea.sflag [#allocation4], %s675
        %s677 = sand.u32 %s71, 1
        %s678 = smul.addr %s677, 8
        %s679 = scalar_lea.vmem [#allocation3], %s678
        // Predicated region
        $region101: #{tpu_custom_call.1} parent=99 // pred_check
          %p680 = pneg %p84
        $region102: #{tpu_custom_call.1} parent=99 // pred_check_branch
          %682 = sbr.rel (%p680) target = $region104
        $region103: #{tpu_custom_call.1} parent=99 // pred_region
          %683 = dma.done %s676, 128
        $region104: #{tpu_custom_call.1} parent=99 // pred_fallthru
          _
        // Predicated region
        $region105: #{tpu_custom_call.1} parent=99 // pred_check
          %p684 = pneg %p105
        $region106: #{tpu_custom_call.1} parent=99 // pred_check_branch
          %686 = sbr.rel (%p684) target = $region108
        $region107: #{tpu_custom_call.1} parent=99 // pred_region
          %687 = dma.done [#allocation7], 128
        $region108: #{tpu_custom_call.1} parent=99 // pred_fallthru
          _
        // Predicated region
        $region109: #{tpu_custom_call.1} parent=99 // pred_check
          %p688 = pneg %p152
        $region110: #{tpu_custom_call.1} parent=99 // pred_check_branch
          %690 = sbr.rel (%p688) target = $region112
        $region111: #{tpu_custom_call.1} parent=99 // pred_region
          %691 = dma.done [#allocation7], 512
        $region112: #{tpu_custom_call.1} parent=99 // pred_fallthru
          _
        // Predicated region
        $region113: #{tpu_custom_call.1} parent=99 // pred_check
          %p692 = pneg %p173
        $region114: #{tpu_custom_call.1} parent=99 // pred_check_branch
          %694 = sbr.rel (%p692) target = $region116
        $region115: #{tpu_custom_call.1} parent=99 // pred_region
          %695 = dma.done [#allocation10], 512
        $region116: #{tpu_custom_call.1} parent=99 // pred_fallthru
          _
        // Predicated region
        $region117: #{tpu_custom_call.1} parent=99 // pred_check
          %p696 = pneg %p194
        $region118: #{tpu_custom_call.1} parent=99 // pred_check_branch
          %698 = sbr.rel (%p696) target = $region120
        $region119: #{tpu_custom_call.1} parent=99 // pred_region
          %699 = dma.done [#allocation10], 512
        $region120: #{tpu_custom_call.1} parent=99 // pred_fallthru
          _
        // Predicated region
        $region121: #{tpu_custom_call.1} parent=99 // pred_check
          %p700 = pneg %p236
        $region122: #{tpu_custom_call.1} parent=99 // pred_check_branch
          %702 = sbr.rel (%p700) target = $region124
        $region123: #{tpu_custom_call.1} parent=99 // pred_region
          %703 = dma.done [#allocation13], 32
        $region124: #{tpu_custom_call.1} parent=99 // pred_fallthru
          _
        // Predicated region
        $region125: #{tpu_custom_call.1} parent=99 // pred_check
          %p704 = pneg %p257
        $region126: #{tpu_custom_call.1} parent=99 // pred_check_branch
          %706 = sbr.rel (%p704) target = $region128
        $region127: #{tpu_custom_call.1} parent=99 // pred_region
          %707 = dma.done [#allocation13], 32
        $region128: #{tpu_custom_call.1} parent=99 // pred_fallthru
          _
        // Predicated region
        $region129: #{tpu_custom_call.1} parent=99 // pred_check
          %p708 = pneg %p320
        $region130: #{tpu_custom_call.1} parent=99 // pred_check_branch
          %710 = sbr.rel (%p708) target = $region132
        $region131: #{tpu_custom_call.1} parent=99 // pred_region
          %711 = dma.done [#allocation16], 512
        $region132: #{tpu_custom_call.1} parent=99 // pred_fallthru
          _
        // Predicated region
        $region133: #{tpu_custom_call.1} parent=99 // pred_check
          %p712 = pneg %p362
        $region134: #{tpu_custom_call.1} parent=99 // pred_check_branch
          %714 = sbr.rel (%p712) target = $region136
        $region135: #{tpu_custom_call.1} parent=99 // pred_region
          %715 = dma.done [#allocation16], 512
        $region136: #{tpu_custom_call.1} parent=99 // pred_fallthru
          _
        %p716 = pneg %p58
        %p717 = pneg %p55
        %s718 = sand.u32 %s71, 1
        %s719 = scalar_lea.sflag [#allocation4], %s718
        %s720 = sand.u32 %s71, 1
        %s721 = smul.addr %s720, 8
        %s722 = scalar_lea.vmem [#allocation3], %s721
        %p723 = pneg %p84
        %p724 = pneg %p81
        %p725 = pneg %p105
        %p726 = pneg %p102
        %p727 = scmp.lt.s32.totalorder %s42, 1
        %s728 = scalar_select %p727, %s42, 1
        %s729 = scalar_lea.vmem %s3, %s728
        %p730 = pneg %p131
        %p731 = pneg %p128
        %p732 = pneg %p152
        %p733 = pneg %p149
        %p734 = pneg %p173
        %p735 = pneg %p170
        %p736 = pneg %p194
        %p737 = pneg %p191
        %p738 = pneg %p215
        %p739 = pneg %p212
        %p740 = pneg %p236
        %p741 = pneg %p233
        %p742 = pneg %p257
        %p743 = pneg %p254
        %p744 = pneg %p278
        %p745 = pneg %p275
        %p746 = pneg %p299
        %p747 = pneg %p296
        %p748 = pneg %p320
        %p749 = pneg %p317
        %p750 = pneg %p341
        %p751 = pneg %p338
        %p752 = pneg %p362
        %p753 = pneg %p359
        %p754 = pneg %p383
        %p755 = pneg %p380
        %p756 = pneg %p404
        %p757 = pneg %p401
        %p758 = pneg %p425
        %p759 = pneg %p422
        %p760 = pneg %p446
        %p761 = pneg %p443
        %p762 = pneg %p467
        %p763 = pneg %p464
        %p764 = pneg %p493
        %p765 = pneg %p490
        %s766 = sand.u32 %s480, 1
        %s767 = scalar_lea.sflag [#allocation5], %s766
        %s768 = sand.u32 %s480, 1
        %s769 = smul.addr %s768, 8
        %s770 = scalar_lea.vmem [#allocation18], %s769
        %p771 = scmp.lt.s32.totalorder %s42, 1
        %s772 = scalar_select %p771, %s42, 1
        %s773 = scalar_lea.vmem %s3, %s772
        %v775 = vld [vmem:[%s679] sm:$0xff]
        %v776 = vld [vmem:[#allocation6] sm:$0xff]
        %v777 = vadd.f32 %v775, %v776
        %v778 = vld [vmem:[%s773] sm:$0x1]
        %v779 = vsub.f32 1.0, %v778
        %v780 = vmul.f32 %v779, -1e+09
        %v781 = vlaneseq
        %v782 = vand.u32 %v781, 127
        %vm783 = vcmp.ge.s32.totalorder %v782, 0
        %vm784 = vcmp.lt.s32.totalorder %v782, 16
        %vm785 = vmand %vm783, %vm784
        %v786 = vsel %vm785, 1, 0
        %v787 = vcvt.s32.f32 %v786
        %vm788 = vcmp.ge.s32.totalorder %v782, 16
        %vm789 = vcmp.lt.s32.totalorder %v782, 32
        %vm790 = vmand %vm788, %vm789
        %v791 = vsel %vm790, 1, 0
        %v792 = vcvt.s32.f32 %v791
        %v793 = vpack.c.bf16 %v777, %v777
        %v794 = vld [vmem:[#allocation8] sm:$0xf]
        %v795 = vld [vmem:[#allocation8 + $0x4] sm:$0xf]
        %v796 = vld [vmem:[#allocation8 + $0x8] sm:$0xf]
        %v797 = vld [vmem:[#allocation8 + $0xc] sm:$0xf]
        %v798 = vld [vmem:[%s7] sm:$0x1]
        %v800 = vlaneseq
        %v801 = vshrl.u32 %v800, 7
        %v802 = vsub.s32 0, %v801
        %v803 = vrot.slane %v798, %v802
        %v809 = vunpack.c.l.b16 %v794
        %v810 = vunpack.c.l.b16 %v795
        %v811 = vunpack.c.l.b16 %v796
        %v812 = vunpack.c.l.b16 %v797
        %v813 = vpack.c.b16 %v810, %v809
        %v814 = vpack.c.b16 %v812, %v811
        %vm817 = vcmask 261120
        %v819 = vsel %vm817, %v793, 0
        %821 = vmatprep.subr.bf16.mxu0 0
        %822 = vmatpush1.bf16.msra.mxu0 %v813
        %823 = vmatprep.subr.bf16.mxu0 0
        %824 = vmatpush1.bf16.msra.mxu0 %v814
        %825 = vmatprep.subr.bf16.mxu0 0
        %826 = vmatpush1.bf16.msra.mxu0 0
        %827 = vmatprep.subr.bf16.mxu0 0
        %828 = vmatpush1.bf16.msra.mxu0 0
        %829 = vmatprep.subr.bf16.mxu0 0
        %830 = vmatpush1.bf16.msra.mxu0 0
        %831 = vmatprep.subr.bf16.mxu0 0
        %832 = vmatpush1.bf16.msra.mxu0 0
        %833 = vmatprep.subr.bf16.mxu0 0
        %834 = vmatpush1.bf16.msra.mxu0 0
        %835 = vmatprep.subr.bf16.mxu0 0
        %836 = vmatpush1.bf16.msra.mxu0 0
        %837 = vmatprep.subr.bf16.mxu0 0
        %838 = vmatpush1.bf16.msra.mxu0 0
        %839 = vmatprep.subr.bf16.mxu0 0
        %840 = vmatpush1.bf16.msra.mxu0 0
        %841 = vmatprep.subr.bf16.mxu0 0
        %842 = vmatpush1.bf16.msra.mxu0 0
        %843 = vmatprep.subr.bf16.mxu0 0
        %844 = vmatpush1.bf16.msra.mxu0 0
        %845 = vmatprep.subr.bf16.mxu0 0
        %846 = vmatpush1.bf16.msra.mxu0 0
        %847 = vmatprep.subr.bf16.mxu0 0
        %848 = vmatpush1.bf16.msra.mxu0 0
        %849 = vmatprep.subr.bf16.mxu0 0
        %850 = vmatpush1.bf16.msra.mxu0 0
        %851 = vmatprep.subr.bf16.mxu0 0
        %852 = vmatpush1.bf16.msra.mxu0 0
        %853 = vmatprep.mubr.bf16.mxu0 0
        %854 = vmatmul.mubr.bf16.gmra.mrb[0].mxu0 %v819
        %v855 = vpop.f32.mrb[0].mxu0
        %v856 = vadd.f32 %v803, %v855
        %v857 = vpop.f32.mrb[0].mxu0
        %v858 = vpop.f32.mrb[0].mxu0
        %v859 = vpop.f32.mrb[0].mxu0
        %860 = vdwg.mxu0
        %v861 = vld [vmem:[#allocation9] sm:$0xf]
        %v862 = vld [vmem:[#allocation9 + $0x4] sm:$0xf]
        %v863 = vld [vmem:[#allocation9 + $0x8] sm:$0xf]
        %v864 = vld [vmem:[#allocation9 + $0xc] sm:$0xf]
        %v865 = vld [vmem:[#allocation12] sm:$0x1]
        %v867 = vlaneseq
        %v868 = vshrl.u32 %v867, 7
        %v869 = vsub.s32 0, %v868
        %v870 = vrot.slane %v865, %v869
        %v876 = vunpack.c.l.b16 %v861
        %v877 = vunpack.c.l.b16 %v862
        %v878 = vunpack.c.l.b16 %v863
        %v879 = vunpack.c.l.b16 %v864
        %v880 = vpack.c.b16 %v877, %v876
        %v881 = vpack.c.b16 %v879, %v878
        %884 = vmatprep.subr.bf16.mxu0 0
        %885 = vmatpush1.bf16.msra.mxu0 %v880
        %886 = vmatprep.subr.bf16.mxu0 0
        %887 = vmatpush1.bf16.msra.mxu0 %v881
        %888 = vmatprep.subr.bf16.mxu0 0
        %889 = vmatpush1.bf16.msra.mxu0 0
        %890 = vmatprep.subr.bf16.mxu0 0
        %891 = vmatpush1.bf16.msra.mxu0 0
        %892 = vmatprep.subr.bf16.mxu0 0
        %893 = vmatpush1.bf16.msra.mxu0 0
        %894 = vmatprep.subr.bf16.mxu0 0
        %895 = vmatpush1.bf16.msra.mxu0 0
        %896 = vmatprep.subr.bf16.mxu0 0
        %897 = vmatpush1.bf16.msra.mxu0 0
        %898 = vmatprep.subr.bf16.mxu0 0
        %899 = vmatpush1.bf16.msra.mxu0 0
        %900 = vmatprep.subr.bf16.mxu0 0
        %901 = vmatpush1.bf16.msra.mxu0 0
        %902 = vmatprep.subr.bf16.mxu0 0
        %903 = vmatpush1.bf16.msra.mxu0 0
        %904 = vmatprep.subr.bf16.mxu0 0
        %905 = vmatpush1.bf16.msra.mxu0 0
        %906 = vmatprep.subr.bf16.mxu0 0
        %907 = vmatpush1.bf16.msra.mxu0 0
        %908 = vmatprep.subr.bf16.mxu0 0
        %909 = vmatpush1.bf16.msra.mxu0 0
        %910 = vmatprep.subr.bf16.mxu0 0
        %911 = vmatpush1.bf16.msra.mxu0 0
        %912 = vmatprep.subr.bf16.mxu0 0
        %913 = vmatpush1.bf16.msra.mxu0 0
        %914 = vmatprep.subr.bf16.mxu0 0
        %915 = vmatpush1.bf16.msra.mxu0 0
        %916 = vmatprep.mubr.bf16.mxu0 0
        %917 = vmatmul.mubr.bf16.gmra.mrb[0].mxu0 %v819
        %v918 = vpop.f32.mrb[0].mxu0
        %v919 = vadd.f32 %v870, %v918
        %v920 = vpop.f32.mrb[0].mxu0
        %v921 = vpop.f32.mrb[0].mxu0
        %v922 = vpop.f32.mrb[0].mxu0
        %923 = vdwg.mxu0
        %v924 = vld [vmem:[#allocation11] sm:$0xf]
        %v925 = vld [vmem:[#allocation11 + $0x4] sm:$0xf]
        %v926 = vld [vmem:[#allocation11 + $0x8] sm:$0xf]
        %v927 = vld [vmem:[#allocation11 + $0xc] sm:$0xf]
        %v928 = vld [vmem:[#allocation14] sm:$0x1]
        %v930 = vlaneseq
        %v931 = vshrl.u32 %v930, 7
        %v932 = vsub.s32 0, %v931
        %v933 = vrot.slane %v928, %v932
        %v939 = vunpack.c.l.b16 %v924
        %v940 = vunpack.c.l.b16 %v925
        %v941 = vunpack.c.l.b16 %v926
        %v942 = vunpack.c.l.b16 %v927
        %v943 = vpack.c.b16 %v940, %v939
        %v944 = vpack.c.b16 %v942, %v941
        %947 = vmatprep.subr.bf16.mxu0 0
        %948 = vmatpush1.bf16.msra.mxu0 %v943
        %949 = vmatprep.subr.bf16.mxu0 0
        %950 = vmatpush1.bf16.msra.mxu0 %v944
        %951 = vmatprep.subr.bf16.mxu0 0
        %952 = vmatpush1.bf16.msra.mxu0 0
        %953 = vmatprep.subr.bf16.mxu0 0
        %954 = vmatpush1.bf16.msra.mxu0 0
        %955 = vmatprep.subr.bf16.mxu0 0
        %956 = vmatpush1.bf16.msra.mxu0 0
        %957 = vmatprep.subr.bf16.mxu0 0
        %958 = vmatpush1.bf16.msra.mxu0 0
        %959 = vmatprep.subr.bf16.mxu0 0
        %960 = vmatpush1.bf16.msra.mxu0 0
        %961 = vmatprep.subr.bf16.mxu0 0
        %962 = vmatpush1.bf16.msra.mxu0 0
        %963 = vmatprep.subr.bf16.mxu0 0
        %964 = vmatpush1.bf16.msra.mxu0 0
        %965 = vmatprep.subr.bf16.mxu0 0
        %966 = vmatpush1.bf16.msra.mxu0 0
        %967 = vmatprep.subr.bf16.mxu0 0
        %968 = vmatpush1.bf16.msra.mxu0 0
        %969 = vmatprep.subr.bf16.mxu0 0
        %970 = vmatpush1.bf16.msra.mxu0 0
        %971 = vmatprep.subr.bf16.mxu0 0
        %972 = vmatpush1.bf16.msra.mxu0 0
        %973 = vmatprep.subr.bf16.mxu0 0
        %974 = vmatpush1.bf16.msra.mxu0 0
        %975 = vmatprep.subr.bf16.mxu0 0
        %976 = vmatpush1.bf16.msra.mxu0 0
        %977 = vmatprep.subr.bf16.mxu0 0
        %978 = vmatpush1.bf16.msra.mxu0 0
        %979 = vmatprep.mubr.bf16.mxu0 0
        %980 = vmatmul.mubr.bf16.gmra.mrb[0].mxu0 %v819
        %v981 = vpop.f32.mrb[0].mxu0
        %v982 = vadd.f32 %v933, %v981
        %v983 = vpop.f32.mrb[0].mxu0
        %v984 = vpop.f32.mrb[0].mxu0
        %v985 = vpop.f32.mrb[0].mxu0
        %986 = vdwg.mxu0
        %v987 = vpack.c.bf16 %v919, %v919
        %v988 = vpack.c.bf16 %v982, %v982
        %v989 = vmul.f32 %v856, %v787
        %v990 = vpack.c.bf16 %v989, %v989
        %v992 = vsel %vm817, %v990, 0
        %v995 = vsel %vm817, %v987, 0
        %997 = vmatprep.subr.bf16.mxu0 0
        %998 = vmatpush1.bf16.xpose.msra.mxu0 %v995
        %999 = vmatprep.subr.bf16.mxu0 0
        %1000 = vmatpush1.bf16.xpose.msra.mxu0 0
        %1001 = vmatprep.subr.bf16.mxu0 0
        %1002 = vmatpush1.bf16.xpose.msra.mxu0 0
        %1003 = vmatprep.subr.bf16.mxu0 0
        %1004 = vmatpush1.bf16.xpose.msra.mxu0 0
        %1005 = vmatprep.subr.bf16.mxu0 0
        %1006 = vmatpush1.bf16.xpose.msra.mxu0 0
        %1007 = vmatprep.subr.bf16.mxu0 0
        %1008 = vmatpush1.bf16.xpose.msra.mxu0 0
        %1009 = vmatprep.subr.bf16.mxu0 0
        %1010 = vmatpush1.bf16.xpose.msra.mxu0 0
        %1011 = vmatprep.subr.bf16.mxu0 0
        %1012 = vmatpush1.bf16.xpose.msra.mxu0 0
        %1013 = vmatprep.subr.bf16.mxu0 0
        %1014 = vmatpush1.bf16.xpose.msra.mxu0 0
        %1015 = vmatprep.subr.bf16.mxu0 0
        %1016 = vmatpush1.bf16.xpose.msra.mxu0 0
        %1017 = vmatprep.subr.bf16.mxu0 0
        %1018 = vmatpush1.bf16.xpose.msra.mxu0 0
        %1019 = vmatprep.subr.bf16.mxu0 0
        %1020 = vmatpush1.bf16.xpose.msra.mxu0 0
        %1021 = vmatprep.subr.bf16.mxu0 0
        %1022 = vmatpush1.bf16.xpose.msra.mxu0 0
        %1023 = vmatprep.subr.bf16.mxu0 0
        %1024 = vmatpush1.bf16.xpose.msra.mxu0 0
        %1025 = vmatprep.subr.bf16.mxu0 0
        %1026 = vmatpush1.bf16.xpose.msra.mxu0 0
        %1027 = vmatprep.subr.bf16.mxu0 0
        %1028 = vmatpush1.bf16.xpose.msra.mxu0 0
        %1029 = vmatprep.mubr.bf16.mxu0 0
        %1030 = vmatmul.mubr.bf16.gmra.mrb[0].mxu0 %v992
        %v1031 = vpop.f32.mrb[0].mxu0
        %v1032 = vadd.f32 0.0, %v1031
        %v1033 = vpop.f32.mrb[0].mxu0
        %v1034 = vpop.f32.mrb[0].mxu0
        %v1035 = vpop.f32.mrb[0].mxu0
        %1036 = vdwg.mxu0
        %v1037 = vmul.f32 %v1032, 0.25
        %v1039 = vlaneseq
        %v1040 = vshrl.u32 %v1039, 7
        %v1041 = vsub.s32 0, %v1040
        %v1042 = vrot.slane %v780, %v1041
        %v1044 = vadd.f32 %v1037, %v1042
        %vm1045 = vcmask 64512
        %v1046 = vsel %vm1045, %v1044, -inf
        %1047 = vmax.xlane.f32.xlu0 %v1046
        %v1048 = vpop.xlane.xlu0 %1047
        %v1049 = vsub.f32 %v1044, %v1048
        %v1050 = vmul.f32 %v1049, 1.442695
        %v1051 = vpow.pop %v1050
        %v1052 = vsel %vm1045, %v1051, 0.0
        %1053 = vadd.xlane.f32.xlu0 %v1052
        %v1054 = vpop.xlane.xlu0 %1053
        %v1055 = vrcp.pop %v1054
        %v1056 = vmul.f32 %v1051, %v1055
        %v1057 = vpack.c.bf16 %v1056, %v1056
        %v1059 = vsel %vm1045, %v1057, 0
        %vm1061 = vcmask 1043456
        %v1063 = vsel %vm1061, %v988, 0
        %1065 = vmatprep.subr.bf16.mxu0 0
        %1066 = vmatpush1.bf16.msra.mxu0 %v1063
        %1067 = vmatprep.subr.bf16.mxu0 0
        %1068 = vmatpush1.bf16.msra.mxu0 0
        %1069 = vmatprep.subr.bf16.mxu0 0
        %1070 = vmatpush1.bf16.msra.mxu0 0
        %1071 = vmatprep.subr.bf16.mxu0 0
        %1072 = vmatpush1.bf16.msra.mxu0 0
        %1073 = vmatprep.subr.bf16.mxu0 0
        %1074 = vmatpush1.bf16.msra.mxu0 0
        %1075 = vmatprep.subr.bf16.mxu0 0
        %1076 = vmatpush1.bf16.msra.mxu0 0
        %1077 = vmatprep.subr.bf16.mxu0 0
        %1078 = vmatpush1.bf16.msra.mxu0 0
        %1079 = vmatprep.subr.bf16.mxu0 0
        %1080 = vmatpush1.bf16.msra.mxu0 0
        %1081 = vmatprep.subr.bf16.mxu0 0
        %1082 = vmatpush1.bf16.msra.mxu0 0
        %1083 = vmatprep.subr.bf16.mxu0 0
        %1084 = vmatpush1.bf16.msra.mxu0 0
        %1085 = vmatprep.subr.bf16.mxu0 0
        %1086 = vmatpush1.bf16.msra.mxu0 0
        %1087 = vmatprep.subr.bf16.mxu0 0
        %1088 = vmatpush1.bf16.msra.mxu0 0
        %1089 = vmatprep.subr.bf16.mxu0 0
        %1090 = vmatpush1.bf16.msra.mxu0 0
        %1091 = vmatprep.subr.bf16.mxu0 0
        %1092 = vmatpush1.bf16.msra.mxu0 0
        %1093 = vmatprep.subr.bf16.mxu0 0
        %1094 = vmatpush1.bf16.msra.mxu0 0
        %1095 = vmatprep.subr.bf16.mxu0 0
        %1096 = vmatpush1.bf16.msra.mxu0 0
        %1097 = vmatprep.mubr.bf16.mxu0 0
        %1098 = vmatmul.mubr.bf16.gmra.mrb[0].mxu0 %v1059
        %v1099 = vpop.f32.mrb[0].mxu0
        %v1100 = vadd.f32 0.0, %v1099
        %v1101 = vpop.f32.mrb[0].mxu0
        %v1102 = vpop.f32.mrb[0].mxu0
        %v1103 = vpop.f32.mrb[0].mxu0
        %1104 = vdwg.mxu0
        %v1105 = vmul.f32 %v1100, %v787
        %v1106 = vadd.f32 %v1105, 0.0
        %v1107 = vmul.f32 %v856, %v792
        %v1108 = vpack.c.bf16 %v1107, %v1107
        %v1110 = vsel %vm817, %v1108, 0
        %1112 = vmatprep.subr.bf16.mxu0 0
        %1113 = vmatpush1.bf16.xpose.msra.mxu0 %v995
        %1114 = vmatprep.subr.bf16.mxu0 0
        %1115 = vmatpush1.bf16.xpose.msra.mxu0 0
        %1116 = vmatprep.subr.bf16.mxu0 0
        %1117 = vmatpush1.bf16.xpose.msra.mxu0 0
        %1118 = vmatprep.subr.bf16.mxu0 0
        %1119 = vmatpush1.bf16.xpose.msra.mxu0 0
        %1120 = vmatprep.subr.bf16.mxu0 0
        %1121 = vmatpush1.bf16.xpose.msra.mxu0 0
        %1122 = vmatprep.subr.bf16.mxu0 0
        %1123 = vmatpush1.bf16.xpose.msra.mxu0 0
        %1124 = vmatprep.subr.bf16.mxu0 0
        %1125 = vmatpush1.bf16.xpose.msra.mxu0 0
        %1126 = vmatprep.subr.bf16.mxu0 0
        %1127 = vmatpush1.bf16.xpose.msra.mxu0 0
        %1128 = vmatprep.subr.bf16.mxu0 0
        %1129 = vmatpush1.bf16.xpose.msra.mxu0 0
        %1130 = vmatprep.subr.bf16.mxu0 0
        %1131 = vmatpush1.bf16.xpose.msra.mxu0 0
        %1132 = vmatprep.subr.bf16.mxu0 0
        %1133 = vmatpush1.bf16.xpose.msra.mxu0 0
        %1134 = vmatprep.subr.bf16.mxu0 0
        %1135 = vmatpush1.bf16.xpose.msra.mxu0 0
        %1136 = vmatprep.subr.bf16.mxu0 0
        %1137 = vmatpush1.bf16.xpose.msra.mxu0 0
        %1138 = vmatprep.subr.bf16.mxu0 0
        %1139 = vmatpush1.bf16.xpose.msra.mxu0 0
        %1140 = vmatprep.subr.bf16.mxu0 0
        %1141 = vmatpush1.bf16.xpose.msra.mxu0 0
        %1142 = vmatprep.subr.bf16.mxu0 0
        %1143 = vmatpush1.bf16.xpose.msra.mxu0 0
        %1144 = vmatprep.mubr.bf16.mxu0 0
        %1145 = vmatmul.mubr.bf16.gmra.mrb[0].mxu0 %v1110
        %v1146 = vpop.f32.mrb[0].mxu0
        %v1147 = vadd.f32 0.0, %v1146
        %v1148 = vpop.f32.mrb[0].mxu0
        %v1149 = vpop.f32.mrb[0].mxu0
        %v1150 = vpop.f32.mrb[0].mxu0
        %1151 = vdwg.mxu0
        %v1152 = vmul.f32 %v1147, 0.25
        %v1153 = vadd.f32 %v1152, %v1042
        %v1154 = vsel %vm1045, %v1153, -inf
        %1155 = vmax.xlane.f32.xlu0 %v1154
        %v1156 = vpop.xlane.xlu0 %1155
        %v1157 = vsub.f32 %v1153, %v1156
        %v1158 = vmul.f32 %v1157, 1.442695
        %v1159 = vpow.pop %v1158
        %v1160 = vsel %vm1045, %v1159, 0.0
        %1161 = vadd.xlane.f32.xlu0 %v1160
        %v1162 = vpop.xlane.xlu0 %1161
        %v1163 = vrcp.pop %v1162
        %v1164 = vmul.f32 %v1159, %v1163
        %v1165 = vpack.c.bf16 %v1164, %v1164
        %v1167 = vsel %vm1045, %v1165, 0
        %1169 = vmatprep.subr.bf16.mxu0 0
        %1170 = vmatpush1.bf16.msra.mxu0 %v1063
        %1171 = vmatprep.subr.bf16.mxu0 0
        %1172 = vmatpush1.bf16.msra.mxu0 0
        %1173 = vmatprep.subr.bf16.mxu0 0
        %1174 = vmatpush1.bf16.msra.mxu0 0
        %1175 = vmatprep.subr.bf16.mxu0 0
        %1176 = vmatpush1.bf16.msra.mxu0 0
        %1177 = vmatprep.subr.bf16.mxu0 0
        %1178 = vmatpush1.bf16.msra.mxu0 0
        %1179 = vmatprep.subr.bf16.mxu0 0
        %1180 = vmatpush1.bf16.msra.mxu0 0
        %1181 = vmatprep.subr.bf16.mxu0 0
        %1182 = vmatpush1.bf16.msra.mxu0 0
        %1183 = vmatprep.subr.bf16.mxu0 0
        %1184 = vmatpush1.bf16.msra.mxu0 0
        %1185 = vmatprep.subr.bf16.mxu0 0
        %1186 = vmatpush1.bf16.msra.mxu0 0
        %1187 = vmatprep.subr.bf16.mxu0 0
        %1188 = vmatpush1.bf16.msra.mxu0 0
        %1189 = vmatprep.subr.bf16.mxu0 0
        %1190 = vmatpush1.bf16.msra.mxu0 0
        %1191 = vmatprep.subr.bf16.mxu0 0
        %1192 = vmatpush1.bf16.msra.mxu0 0
        %1193 = vmatprep.subr.bf16.mxu0 0
        %1194 = vmatpush1.bf16.msra.mxu0 0
        %1195 = vmatprep.subr.bf16.mxu0 0
        %1196 = vmatpush1.bf16.msra.mxu0 0
        %1197 = vmatprep.subr.bf16.mxu0 0
        %1198 = vmatpush1.bf16.msra.mxu0 0
        %1199 = vmatprep.subr.bf16.mxu0 0
        %1200 = vmatpush1.bf16.msra.mxu0 0
        %1201 = vmatprep.mubr.bf16.mxu0 0
        %1202 = vmatmul.mubr.bf16.gmra.mrb[0].mxu0 %v1167
        %v1203 = vpop.f32.mrb[0].mxu0
        %v1204 = vadd.f32 0.0, %v1203
        %v1205 = vpop.f32.mrb[0].mxu0
        %v1206 = vpop.f32.mrb[0].mxu0
        %v1207 = vpop.f32.mrb[0].mxu0
        %1208 = vdwg.mxu0
        %v1209 = vmul.f32 %v1204, %v792
        %v1210 = vadd.f32 %v1106, %v1209
        %v1211 = vpack.c.bf16 %v1210, %v1210
        %v1212 = vld [vmem:[%s10] sm:$0xf]
        %v1213 = vld [vmem:[%s10 + $0x4] sm:$0xf]
        %v1214 = vld [vmem:[%s10 + $0x8] sm:$0xf]
        %v1215 = vld [vmem:[%s10 + $0xc] sm:$0xf]
        %v1216 = vld [vmem:[%s11] sm:$0x1]
        %v1218 = vlaneseq
        %v1219 = vshrl.u32 %v1218, 7
        %v1220 = vsub.s32 0, %v1219
        %v1221 = vrot.slane %v1216, %v1220
        %v1227 = vunpack.c.l.b16 %v1212
        %v1228 = vunpack.c.l.b16 %v1213
        %v1229 = vunpack.c.l.b16 %v1214
        %v1230 = vunpack.c.l.b16 %v1215
        %v1231 = vpack.c.b16 %v1228, %v1227
        %v1232 = vpack.c.b16 %v1230, %v1229
        %v1236 = vsel %vm817, %v1211, 0
        %1238 = vmatprep.subr.bf16.mxu0 0
        %1239 = vmatpush1.bf16.msra.mxu0 %v1231
        %1240 = vmatprep.subr.bf16.mxu0 0
        %1241 = vmatpush1.bf16.msra.mxu0 %v1232
        %1242 = vmatprep.subr.bf16.mxu0 0
        %1243 = vmatpush1.bf16.msra.mxu0 0
        %1244 = vmatprep.subr.bf16.mxu0 0
        %1245 = vmatpush1.bf16.msra.mxu0 0
        %1246 = vmatprep.subr.bf16.mxu0 0
        %1247 = vmatpush1.bf16.msra.mxu0 0
        %1248 = vmatprep.subr.bf16.mxu0 0
        %1249 = vmatpush1.bf16.msra.mxu0 0
        %1250 = vmatprep.subr.bf16.mxu0 0
        %1251 = vmatpush1.bf16.msra.mxu0 0
        %1252 = vmatprep.subr.bf16.mxu0 0
        %1253 = vmatpush1.bf16.msra.mxu0 0
        %1254 = vmatprep.subr.bf16.mxu0 0
        %1255 = vmatpush1.bf16.msra.mxu0 0
        %1256 = vmatprep.subr.bf16.mxu0 0
        %1257 = vmatpush1.bf16.msra.mxu0 0
        %1258 = vmatprep.subr.bf16.mxu0 0
        %1259 = vmatpush1.bf16.msra.mxu0 0
        %1260 = vmatprep.subr.bf16.mxu0 0
        %1261 = vmatpush1.bf16.msra.mxu0 0
        %1262 = vmatprep.subr.bf16.mxu0 0
        %1263 = vmatpush1.bf16.msra.mxu0 0
        %1264 = vmatprep.subr.bf16.mxu0 0
        %1265 = vmatpush1.bf16.msra.mxu0 0
        %1266 = vmatprep.subr.bf16.mxu0 0
        %1267 = vmatpush1.bf16.msra.mxu0 0
        %1268 = vmatprep.subr.bf16.mxu0 0
        %1269 = vmatpush1.bf16.msra.mxu0 0
        %1270 = vmatprep.mubr.bf16.mxu0 0
        %1271 = vmatmul.mubr.bf16.gmra.mrb[0].mxu0 %v1236
        %v1272 = vpop.f32.mrb[0].mxu0
        %v1273 = vadd.f32 %v1221, %v1272
        %v1274 = vpop.f32.mrb[0].mxu0
        %v1275 = vpop.f32.mrb[0].mxu0
        %v1276 = vpop.f32.mrb[0].mxu0
        %1277 = vdwg.mxu0
        %v1278 = vadd.f32 %v777, %v1273
        %v1279 = vld [vmem:[%s16] sm:$0x1]
        %v1280 = vld [vmem:[%s17] sm:$0x1]
        %v1281 = vsel %vm817, %v1278, 0.0
        %1282 = vadd.xlane.f32.xlu0 %v1281
        %v1283 = vpop.xlane.xlu0 %1282
        %v1284 = vrcp.pop 32.0
        %v1285 = vmul.f32 %v1283, %v1284
        %v1286 = vsub.f32 %v1278, %v1285
        %v1287 = vmul.f32 %v1286, %v1286
        %v1288 = vsel %vm817, %v1287, 0.0
        %1289 = vadd.xlane.f32.xlu0 %v1288
        %v1290 = vpop.xlane.xlu0 %1289
        %v1291 = vmul.f32 %v1290, %v1284
        %v1292 = vadd.f32 %v1291, 1e-05
        %v1293 = vrsqrt.pop %v1292
        %v1294 = vmul.f32 %v1286, %v1293
        %v1296 = vlaneseq
        %v1297 = vshrl.u32 %v1296, 7
        %v1298 = vsub.s32 0, %v1297
        %v1299 = vrot.slane %v1279, %v1298
        %v1301 = vmul.f32 %v1294, %v1299
        %v1303 = vlaneseq
        %v1304 = vshrl.u32 %v1303, 7
        %v1305 = vsub.s32 0, %v1304
        %v1306 = vrot.slane %v1280, %v1305
        %v1308 = vadd.f32 %v1301, %v1306
        %v1309 = vpack.c.bf16 %v1308, %v1308
        %v1310 = vld [vmem:[#allocation15] sm:$0xf]
        %v1311 = vld [vmem:[#allocation15 + $0x4] sm:$0xf]
        %v1312 = vld [vmem:[#allocation15 + $0x8] sm:$0xf]
        %v1313 = vld [vmem:[#allocation15 + $0xc] sm:$0xf]
        %v1314 = vld [vmem:[%s13] sm:$0x1]
        %v1316 = vlaneseq
        %v1317 = vshrl.u32 %v1316, 7
        %v1318 = vsub.s32 0, %v1317
        %v1319 = vrot.slane %v1314, %v1318
        %v1325 = vunpack.c.l.b16 %v1310
        %v1326 = vunpack.c.l.b16 %v1311
        %v1327 = vunpack.c.l.b16 %v1312
        %v1328 = vunpack.c.l.b16 %v1313
        %v1329 = vpack.c.b16 %v1326, %v1325
        %v1330 = vpack.c.b16 %v1328, %v1327
        %v1334 = vsel %vm817, %v1309, 0
        %1336 = vmatprep.subr.bf16.mxu0 0
        %1337 = vmatpush1.bf16.msra.mxu0 %v1329
        %1338 = vmatprep.subr.bf16.mxu0 0
        %1339 = vmatpush1.bf16.msra.mxu0 %v1330
        %1340 = vmatprep.subr.bf16.mxu0 0
        %1341 = vmatpush1.bf16.msra.mxu0 0
        %1342 = vmatprep.subr.bf16.mxu0 0
        %1343 = vmatpush1.bf16.msra.mxu0 0
        %1344 = vmatprep.subr.bf16.mxu0 0
        %1345 = vmatpush1.bf16.msra.mxu0 0
        %1346 = vmatprep.subr.bf16.mxu0 0
        %1347 = vmatpush1.bf16.msra.mxu0 0
        %1348 = vmatprep.subr.bf16.mxu0 0
        %1349 = vmatpush1.bf16.msra.mxu0 0
        %1350 = vmatprep.subr.bf16.mxu0 0
        %1351 = vmatpush1.bf16.msra.mxu0 0
        %1352 = vmatprep.subr.bf16.mxu0 0
        %1353 = vmatpush1.bf16.msra.mxu0 0
        %1354 = vmatprep.subr.bf16.mxu0 0
        %1355 = vmatpush1.bf16.msra.mxu0 0
        %1356 = vmatprep.subr.bf16.mxu0 0
        %1357 = vmatpush1.bf16.msra.mxu0 0
        %1358 = vmatprep.subr.bf16.mxu0 0
        %1359 = vmatpush1.bf16.msra.mxu0 0
        %1360 = vmatprep.subr.bf16.mxu0 0
        %1361 = vmatpush1.bf16.msra.mxu0 0
        %1362 = vmatprep.subr.bf16.mxu0 0
        %1363 = vmatpush1.bf16.msra.mxu0 0
        %1364 = vmatprep.subr.bf16.mxu0 0
        %1365 = vmatpush1.bf16.msra.mxu0 0
        %1366 = vmatprep.subr.bf16.mxu0 0
        %1367 = vmatpush1.bf16.msra.mxu0 0
        %1368 = vmatprep.mubr.bf16.mxu0 0
        %1369 = vmatmul.mubr.bf16.gmra.mrb[0].mxu0 %v1334
        %v1370 = vpop.f32.mrb[0].mxu0
        %v1371 = vadd.f32 %v1319, %v1370
        %v1372 = vpop.f32.mrb[0].mxu0
        %v1373 = vpop.f32.mrb[0].mxu0
        %v1374 = vpop.f32.mrb[0].mxu0
        %1375 = vdwg.mxu0
        %v1376 = vmax.f32 %v1371, 0.0
        %v1377 = vpack.c.bf16 %v1376, %v1376
        %v1378 = vld [vmem:[#allocation17] sm:$0xf]
        %v1379 = vld [vmem:[#allocation17 + $0x4] sm:$0xf]
        %v1380 = vld [vmem:[#allocation17 + $0x8] sm:$0xf]
        %v1381 = vld [vmem:[#allocation17 + $0xc] sm:$0xf]
        %v1382 = vld [vmem:[%s15] sm:$0x1]
        %v1384 = vlaneseq
        %v1385 = vshrl.u32 %v1384, 7
        %v1386 = vsub.s32 0, %v1385
        %v1387 = vrot.slane %v1382, %v1386
        %v1393 = vunpack.c.l.b16 %v1378
        %v1394 = vunpack.c.l.b16 %v1379
        %v1395 = vunpack.c.l.b16 %v1380
        %v1396 = vunpack.c.l.b16 %v1381
        %v1397 = vpack.c.b16 %v1394, %v1393
        %v1398 = vpack.c.b16 %v1396, %v1395
        %v1402 = vsel %vm817, %v1377, 0
        %1404 = vmatprep.subr.bf16.mxu0 0
        %1405 = vmatpush1.bf16.msra.mxu0 %v1397
        %1406 = vmatprep.subr.bf16.mxu0 0
        %1407 = vmatpush1.bf16.msra.mxu0 %v1398
        %1408 = vmatprep.subr.bf16.mxu0 0
        %1409 = vmatpush1.bf16.msra.mxu0 0
        %1410 = vmatprep.subr.bf16.mxu0 0
        %1411 = vmatpush1.bf16.msra.mxu0 0
        %1412 = vmatprep.subr.bf16.mxu0 0
        %1413 = vmatpush1.bf16.msra.mxu0 0
        %1414 = vmatprep.subr.bf16.mxu0 0
        %1415 = vmatpush1.bf16.msra.mxu0 0
        %1416 = vmatprep.subr.bf16.mxu0 0
        %1417 = vmatpush1.bf16.msra.mxu0 0
        %1418 = vmatprep.subr.bf16.mxu0 0
        %1419 = vmatpush1.bf16.msra.mxu0 0
        %1420 = vmatprep.subr.bf16.mxu0 0
        %1421 = vmatpush1.bf16.msra.mxu0 0
        %1422 = vmatprep.subr.bf16.mxu0 0
        %1423 = vmatpush1.bf16.msra.mxu0 0
        %1424 = vmatprep.subr.bf16.mxu0 0
        %1425 = vmatpush1.bf16.msra.mxu0 0
        %1426 = vmatprep.subr.bf16.mxu0 0
        %1427 = vmatpush1.bf16.msra.mxu0 0
        %1428 = vmatprep.subr.bf16.mxu0 0
        %1429 = vmatpush1.bf16.msra.mxu0 0
        %1430 = vmatprep.subr.bf16.mxu0 0
        %1431 = vmatpush1.bf16.msra.mxu0 0
        %1432 = vmatprep.subr.bf16.mxu0 0
        %1433 = vmatpush1.bf16.msra.mxu0 0
        %1434 = vmatprep.subr.bf16.mxu0 0
        %1435 = vmatpush1.bf16.msra.mxu0 0
        %1436 = vmatprep.mubr.bf16.mxu0 0
        %1437 = vmatmul.mubr.bf16.gmra.mrb[0].mxu0 %v1402
        %v1438 = vpop.f32.mrb[0].mxu0
        %v1439 = vadd.f32 %v1387, %v1438
        %v1440 = vpop.f32.mrb[0].mxu0
        %v1441 = vpop.f32.mrb[0].mxu0
        %v1442 = vpop.f32.mrb[0].mxu0
        %1443 = vdwg.mxu0
        %v1444 = vadd.f32 %v1308, %v1439
        %v1445 = vld [vmem:[%s18] sm:$0x1]
        %v1446 = vld [vmem:[%s19] sm:$0x1]
        %v1447 = vsel %vm817, %v1444, 0.0
        %1448 = vadd.xlane.f32.xlu0 %v1447
        %v1449 = vpop.xlane.xlu0 %1448
        %v1450 = vmul.f32 %v1449, %v1284
        %v1451 = vsub.f32 %v1444, %v1450
        %v1452 = vmul.f32 %v1451, %v1451
        %v1453 = vsel %vm817, %v1452, 0.0
        %1454 = vadd.xlane.f32.xlu0 %v1453
        %v1455 = vpop.xlane.xlu0 %1454
        %v1456 = vmul.f32 %v1455, %v1284
        %v1457 = vadd.f32 %v1456, 1e-05
        %v1458 = vrsqrt.pop %v1457
        %v1459 = vmul.f32 %v1451, %v1458
        %v1461 = vlaneseq
        %v1462 = vshrl.u32 %v1461, 7
        %v1463 = vsub.s32 0, %v1462
        %v1464 = vrot.slane %v1445, %v1463
        %v1466 = vmul.f32 %v1459, %v1464
        %v1468 = vlaneseq
        %v1469 = vshrl.u32 %v1468, 7
        %v1470 = vsub.s32 0, %v1469
        %v1471 = vrot.slane %v1446, %v1470
        %v1473 = vadd.f32 %v1466, %v1471
        %v1474 = vpack.c.bf16 %v1473, %v1473
        %s1475 = scalar_lea.vmem [#allocation8], 16
        %v1476 = vld [vmem:[%s1475] sm:$0xf]
        %v1477 = vld [vmem:[%s1475 + $0x4] sm:$0xf]
        %v1478 = vld [vmem:[%s1475 + $0x8] sm:$0xf]
        %v1479 = vld [vmem:[%s1475 + $0xc] sm:$0xf]
        %s1480 = scalar_lea.vmem %s7, 1
        %v1481 = vld [vmem:[%s1480] sm:$0x1]
        %v1483 = vlaneseq
        %v1484 = vshrl.u32 %v1483, 7
        %v1485 = vsub.s32 0, %v1484
        %v1486 = vrot.slane %v1481, %v1485
        %v1492 = vunpack.c.l.b16 %v1476
        %v1493 = vunpack.c.l.b16 %v1477
        %v1494 = vunpack.c.l.b16 %v1478
        %v1495 = vunpack.c.l.b16 %v1479
        %v1496 = vpack.c.b16 %v1493, %v1492
        %v1497 = vpack.c.b16 %v1495, %v1494
        %v1501 = vsel %vm817, %v1474, 0
        %1503 = vmatprep.subr.bf16.mxu0 0
        %1504 = vmatpush1.bf16.msra.mxu0 %v1496
        %1505 = vmatprep.subr.bf16.mxu0 0
        %1506 = vmatpush1.bf16.msra.mxu0 %v1497
        %1507 = vmatprep.subr.bf16.mxu0 0
        %1508 = vmatpush1.bf16.msra.mxu0 0
        %1509 = vmatprep.subr.bf16.mxu0 0
        %1510 = vmatpush1.bf16.msra.mxu0 0
        %1511 = vmatprep.subr.bf16.mxu0 0
        %1512 = vmatpush1.bf16.msra.mxu0 0
        %1513 = vmatprep.subr.bf16.mxu0 0
        %1514 = vmatpush1.bf16.msra.mxu0 0
        %1515 = vmatprep.subr.bf16.mxu0 0
        %1516 = vmatpush1.bf16.msra.mxu0 0
        %1517 = vmatprep.subr.bf16.mxu0 0
        %1518 = vmatpush1.bf16.msra.mxu0 0
        %1519 = vmatprep.subr.bf16.mxu0 0
        %1520 = vmatpush1.bf16.msra.mxu0 0
        %1521 = vmatprep.subr.bf16.mxu0 0
        %1522 = vmatpush1.bf16.msra.mxu0 0
        %1523 = vmatprep.subr.bf16.mxu0 0
        %1524 = vmatpush1.bf16.msra.mxu0 0
        %1525 = vmatprep.subr.bf16.mxu0 0
        %1526 = vmatpush1.bf16.msra.mxu0 0
        %1527 = vmatprep.subr.bf16.mxu0 0
        %1528 = vmatpush1.bf16.msra.mxu0 0
        %1529 = vmatprep.subr.bf16.mxu0 0
        %1530 = vmatpush1.bf16.msra.mxu0 0
        %1531 = vmatprep.subr.bf16.mxu0 0
        %1532 = vmatpush1.bf16.msra.mxu0 0
        %1533 = vmatprep.subr.bf16.mxu0 0
        %1534 = vmatpush1.bf16.msra.mxu0 0
        %1535 = vmatprep.mubr.bf16.mxu0 0
        %1536 = vmatmul.mubr.bf16.gmra.mrb[0].mxu0 %v1501
        %v1537 = vpop.f32.mrb[0].mxu0
        %v1538 = vadd.f32 %v1486, %v1537
        %v1539 = vpop.f32.mrb[0].mxu0
        %v1540 = vpop.f32.mrb[0].mxu0
        %v1541 = vpop.f32.mrb[0].mxu0
        %1542 = vdwg.mxu0
        %s1543 = scalar_lea.vmem [#allocation9], 16
        %v1544 = vld [vmem:[%s1543] sm:$0xf]
        %v1545 = vld [vmem:[%s1543 + $0x4] sm:$0xf]
        %v1546 = vld [vmem:[%s1543 + $0x8] sm:$0xf]
        %v1547 = vld [vmem:[%s1543 + $0xc] sm:$0xf]
        %s1548 = scalar_lea.vmem [#allocation12], 1
        %v1549 = vld [vmem:[%s1548] sm:$0x1]
        %v1551 = vlaneseq
        %v1552 = vshrl.u32 %v1551, 7
        %v1553 = vsub.s32 0, %v1552
        %v1554 = vrot.slane %v1549, %v1553
        %v1560 = vunpack.c.l.b16 %v1544
        %v1561 = vunpack.c.l.b16 %v1545
        %v1562 = vunpack.c.l.b16 %v1546
        %v1563 = vunpack.c.l.b16 %v1547
        %v1564 = vpack.c.b16 %v1561, %v1560
        %v1565 = vpack.c.b16 %v1563, %v1562
        %1568 = vmatprep.subr.bf16.mxu0 0
        %1569 = vmatpush1.bf16.msra.mxu0 %v1564
        %1570 = vmatprep.subr.bf16.mxu0 0
        %1571 = vmatpush1.bf16.msra.mxu0 %v1565
        %1572 = vmatprep.subr.bf16.mxu0 0
        %1573 = vmatpush1.bf16.msra.mxu0 0
        %1574 = vmatprep.subr.bf16.mxu0 0
        %1575 = vmatpush1.bf16.msra.mxu0 0
        %1576 = vmatprep.subr.bf16.mxu0 0
        %1577 = vmatpush1.bf16.msra.mxu0 0
        %1578 = vmatprep.subr.bf16.mxu0 0
        %1579 = vmatpush1.bf16.msra.mxu0 0
        %1580 = vmatprep.subr.bf16.mxu0 0
        %1581 = vmatpush1.bf16.msra.mxu0 0
        %1582 = vmatprep.subr.bf16.mxu0 0
        %1583 = vmatpush1.bf16.msra.mxu0 0
        %1584 = vmatprep.subr.bf16.mxu0 0
        %1585 = vmatpush1.bf16.msra.mxu0 0
        %1586 = vmatprep.subr.bf16.mxu0 0
        %1587 = vmatpush1.bf16.msra.mxu0 0
        %1588 = vmatprep.subr.bf16.mxu0 0
        %1589 = vmatpush1.bf16.msra.mxu0 0
        %1590 = vmatprep.subr.bf16.mxu0 0
        %1591 = vmatpush1.bf16.msra.mxu0 0
        %1592 = vmatprep.subr.bf16.mxu0 0
        %1593 = vmatpush1.bf16.msra.mxu0 0
        %1594 = vmatprep.subr.bf16.mxu0 0
        %1595 = vmatpush1.bf16.msra.mxu0 0
        %1596 = vmatprep.subr.bf16.mxu0 0
        %1597 = vmatpush1.bf16.msra.mxu0 0
        %1598 = vmatprep.subr.bf16.mxu0 0
        %1599 = vmatpush1.bf16.msra.mxu0 0
        %1600 = vmatprep.mubr.bf16.mxu0 0
        %1601 = vmatmul.mubr.bf16.gmra.mrb[0].mxu0 %v1501
        %v1602 = vpop.f32.mrb[0].mxu0
        %v1603 = vadd.f32 %v1554, %v1602
        %v1604 = vpop.f32.mrb[0].mxu0
        %v1605 = vpop.f32.mrb[0].mxu0
        %v1606 = vpop.f32.mrb[0].mxu0
        %1607 = vdwg.mxu0
        %s1608 = scalar_lea.vmem [#allocation11], 16
        %v1609 = vld [vmem:[%s1608] sm:$0xf]
        %v1610 = vld [vmem:[%s1608 + $0x4] sm:$0xf]
        %v1611 = vld [vmem:[%s1608 + $0x8] sm:$0xf]
        %v1612 = vld [vmem:[%s1608 + $0xc] sm:$0xf]
        %s1613 = scalar_lea.vmem [#allocation14], 1
        %v1614 = vld [vmem:[%s1613] sm:$0x1]
        %v1616 = vlaneseq
        %v1617 = vshrl.u32 %v1616, 7
        %v1618 = vsub.s32 0, %v1617
        %v1619 = vrot.slane %v1614, %v1618
        %v1625 = vunpack.c.l.b16 %v1609
        %v1626 = vunpack.c.l.b16 %v1610
        %v1627 = vunpack.c.l.b16 %v1611
        %v1628 = vunpack.c.l.b16 %v1612
        %v1629 = vpack.c.b16 %v1626, %v1625
        %v1630 = vpack.c.b16 %v1628, %v1627
        %1633 = vmatprep.subr.bf16.mxu0 0
        %1634 = vmatpush1.bf16.msra.mxu0 %v1629
        %1635 = vmatprep.subr.bf16.mxu0 0
        %1636 = vmatpush1.bf16.msra.mxu0 %v1630
        %1637 = vmatprep.subr.bf16.mxu0 0
        %1638 = vmatpush1.bf16.msra.mxu0 0
        %1639 = vmatprep.subr.bf16.mxu0 0
        %1640 = vmatpush1.bf16.msra.mxu0 0
        %1641 = vmatprep.subr.bf16.mxu0 0
        %1642 = vmatpush1.bf16.msra.mxu0 0
        %1643 = vmatprep.subr.bf16.mxu0 0
        %1644 = vmatpush1.bf16.msra.mxu0 0
        %1645 = vmatprep.subr.bf16.mxu0 0
        %1646 = vmatpush1.bf16.msra.mxu0 0
        %1647 = vmatprep.subr.bf16.mxu0 0
        %1648 = vmatpush1.bf16.msra.mxu0 0
        %1649 = vmatprep.subr.bf16.mxu0 0
        %1650 = vmatpush1.bf16.msra.mxu0 0
        %1651 = vmatprep.subr.bf16.mxu0 0
        %1652 = vmatpush1.bf16.msra.mxu0 0
        %1653 = vmatprep.subr.bf16.mxu0 0
        %1654 = vmatpush1.bf16.msra.mxu0 0
        %1655 = vmatprep.subr.bf16.mxu0 0
        %1656 = vmatpush1.bf16.msra.mxu0 0
        %1657 = vmatprep.subr.bf16.mxu0 0
        %1658 = vmatpush1.bf16.msra.mxu0 0
        %1659 = vmatprep.subr.bf16.mxu0 0
        %1660 = vmatpush1.bf16.msra.mxu0 0
        %1661 = vmatprep.subr.bf16.mxu0 0
        %1662 = vmatpush1.bf16.msra.mxu0 0
        %1663 = vmatprep.subr.bf16.mxu0 0
        %1664 = vmatpush1.bf16.msra.mxu0 0
        %1665 = vmatprep.mubr.bf16.mxu0 0
        %1666 = vmatmul.mubr.bf16.gmra.mrb[0].mxu0 %v1501
        %v1667 = vpop.f32.mrb[0].mxu0
        %v1668 = vadd.f32 %v1619, %v1667
        %v1669 = vpop.f32.mrb[0].mxu0
        %v1670 = vpop.f32.mrb[0].mxu0
        %v1671 = vpop.f32.mrb[0].mxu0
        %1672 = vdwg.mxu0
        %v1673 = vpack.c.bf16 %v1603, %v1603
        %v1674 = vpack.c.bf16 %v1668, %v1668
        %v1675 = vmul.f32 %v1538, %v787
        %v1676 = vpack.c.bf16 %v1675, %v1675
        %v1678 = vsel %vm817, %v1676, 0
        %v1681 = vsel %vm817, %v1673, 0
        %1683 = vmatprep.subr.bf16.mxu0 0
        %1684 = vmatpush1.bf16.xpose.msra.mxu0 %v1681
        %1685 = vmatprep.subr.bf16.mxu0 0
        %1686 = vmatpush1.bf16.xpose.msra.mxu0 0
        %1687 = vmatprep.subr.bf16.mxu0 0
        %1688 = vmatpush1.bf16.xpose.msra.mxu0 0
        %1689 = vmatprep.subr.bf16.mxu0 0
        %1690 = vmatpush1.bf16.xpose.msra.mxu0 0
        %1691 = vmatprep.subr.bf16.mxu0 0
        %1692 = vmatpush1.bf16.xpose.msra.mxu0 0
        %1693 = vmatprep.subr.bf16.mxu0 0
        %1694 = vmatpush1.bf16.xpose.msra.mxu0 0
        %1695 = vmatprep.subr.bf16.mxu0 0
        %1696 = vmatpush1.bf16.xpose.msra.mxu0 0
        %1697 = vmatprep.subr.bf16.mxu0 0
        %1698 = vmatpush1.bf16.xpose.msra.mxu0 0
        %1699 = vmatprep.subr.bf16.mxu0 0
        %1700 = vmatpush1.bf16.xpose.msra.mxu0 0
        %1701 = vmatprep.subr.bf16.mxu0 0
        %1702 = vmatpush1.bf16.xpose.msra.mxu0 0
        %1703 = vmatprep.subr.bf16.mxu0 0
        %1704 = vmatpush1.bf16.xpose.msra.mxu0 0
        %1705 = vmatprep.subr.bf16.mxu0 0
        %1706 = vmatpush1.bf16.xpose.msra.mxu0 0
        %1707 = vmatprep.subr.bf16.mxu0 0
        %1708 = vmatpush1.bf16.xpose.msra.mxu0 0
        %1709 = vmatprep.subr.bf16.mxu0 0
        %1710 = vmatpush1.bf16.xpose.msra.mxu0 0
        %1711 = vmatprep.subr.bf16.mxu0 0
        %1712 = vmatpush1.bf16.xpose.msra.mxu0 0
        %1713 = vmatprep.subr.bf16.mxu0 0
        %1714 = vmatpush1.bf16.xpose.msra.mxu0 0
        %1715 = vmatprep.mubr.bf16.mxu0 0
        %1716 = vmatmul.mubr.bf16.gmra.mrb[0].mxu0 %v1678
        %v1717 = vpop.f32.mrb[0].mxu0
        %v1718 = vadd.f32 0.0, %v1717
        %v1719 = vpop.f32.mrb[0].mxu0
        %v1720 = vpop.f32.mrb[0].mxu0
        %v1721 = vpop.f32.mrb[0].mxu0
        %1722 = vdwg.mxu0
        %v1723 = vmul.f32 %v1718, 0.25
        %v1724 = vadd.f32 %v1723, %v1042
        %v1725 = vsel %vm1045, %v1724, -inf
        %1726 = vmax.xlane.f32.xlu0 %v1725
        %v1727 = vpop.xlane.xlu0 %1726
        %v1728 = vsub.f32 %v1724, %v1727
        %v1729 = vmul.f32 %v1728, 1.442695
        %v1730 = vpow.pop %v1729
        %v1731 = vsel %vm1045, %v1730, 0.0
        %1732 = vadd.xlane.f32.xlu0 %v1731
        %v1733 = vpop.xlane.xlu0 %1732
        %v1734 = vrcp.pop %v1733
        %v1735 = vmul.f32 %v1730, %v1734
        %v1736 = vpack.c.bf16 %v1735, %v1735
        %v1738 = vsel %vm1045, %v1736, 0
        %v1741 = vsel %vm1061, %v1674, 0
        %1743 = vmatprep.subr.bf16.mxu0 0
        %1744 = vmatpush1.bf16.msra.mxu0 %v1741
        %1745 = vmatprep.subr.bf16.mxu0 0
        %1746 = vmatpush1.bf16.msra.mxu0 0
        %1747 = vmatprep.subr.bf16.mxu0 0
        %1748 = vmatpush1.bf16.msra.mxu0 0
        %1749 = vmatprep.subr.bf16.mxu0 0
        %1750 = vmatpush1.bf16.msra.mxu0 0
        %1751 = vmatprep.subr.bf16.mxu0 0
        %1752 = vmatpush1.bf16.msra.mxu0 0
        %1753 = vmatprep.subr.bf16.mxu0 0
        %1754 = vmatpush1.bf16.msra.mxu0 0
        %1755 = vmatprep.subr.bf16.mxu0 0
        %1756 = vmatpush1.bf16.msra.mxu0 0
        %1757 = vmatprep.subr.bf16.mxu0 0
        %1758 = vmatpush1.bf16.msra.mxu0 0
        %1759 = vmatprep.subr.bf16.mxu0 0
        %1760 = vmatpush1.bf16.msra.mxu0 0
        %1761 = vmatprep.subr.bf16.mxu0 0
        %1762 = vmatpush1.bf16.msra.mxu0 0
        %1763 = vmatprep.subr.bf16.mxu0 0
        %1764 = vmatpush1.bf16.msra.mxu0 0
        %1765 = vmatprep.subr.bf16.mxu0 0
        %1766 = vmatpush1.bf16.msra.mxu0 0
        %1767 = vmatprep.subr.bf16.mxu0 0
        %1768 = vmatpush1.bf16.msra.mxu0 0
        %1769 = vmatprep.subr.bf16.mxu0 0
        %1770 = vmatpush1.bf16.msra.mxu0 0
        %1771 = vmatprep.subr.bf16.mxu0 0
        %1772 = vmatpush1.bf16.msra.mxu0 0
        %1773 = vmatprep.subr.bf16.mxu0 0
        %1774 = vmatpush1.bf16.msra.mxu0 0
        %1775 = vmatprep.mubr.bf16.mxu0 0
        %1776 = vmatmul.mubr.bf16.gmra.mrb[0].mxu0 %v1738
        %v1777 = vpop.f32.mrb[0].mxu0
        %v1778 = vadd.f32 0.0, %v1777
        %v1779 = vpop.f32.mrb[0].mxu0
        %v1780 = vpop.f32.mrb[0].mxu0
        %v1781 = vpop.f32.mrb[0].mxu0
        %1782 = vdwg.mxu0
        %v1783 = vmul.f32 %v1778, %v787
        %v1784 = vadd.f32 %v1783, 0.0
        %v1785 = vmul.f32 %v1538, %v792
        %v1786 = vpack.c.bf16 %v1785, %v1785
        %v1788 = vsel %vm817, %v1786, 0
        %1790 = vmatprep.subr.bf16.mxu0 0
        %1791 = vmatpush1.bf16.xpose.msra.mxu0 %v1681
        %1792 = vmatprep.subr.bf16.mxu0 0
        %1793 = vmatpush1.bf16.xpose.msra.mxu0 0
        %1794 = vmatprep.subr.bf16.mxu0 0
        %1795 = vmatpush1.bf16.xpose.msra.mxu0 0
        %1796 = vmatprep.subr.bf16.mxu0 0
        %1797 = vmatpush1.bf16.xpose.msra.mxu0 0
        %1798 = vmatprep.subr.bf16.mxu0 0
        %1799 = vmatpush1.bf16.xpose.msra.mxu0 0
        %1800 = vmatprep.subr.bf16.mxu0 0
        %1801 = vmatpush1.bf16.xpose.msra.mxu0 0
        %1802 = vmatprep.subr.bf16.mxu0 0
        %1803 = vmatpush1.bf16.xpose.msra.mxu0 0
        %1804 = vmatprep.subr.bf16.mxu0 0
        %1805 = vmatpush1.bf16.xpose.msra.mxu0 0
        %1806 = vmatprep.subr.bf16.mxu0 0
        %1807 = vmatpush1.bf16.xpose.msra.mxu0 0
        %1808 = vmatprep.subr.bf16.mxu0 0
        %1809 = vmatpush1.bf16.xpose.msra.mxu0 0
        %1810 = vmatprep.subr.bf16.mxu0 0
        %1811 = vmatpush1.bf16.xpose.msra.mxu0 0
        %1812 = vmatprep.subr.bf16.mxu0 0
        %1813 = vmatpush1.bf16.xpose.msra.mxu0 0
        %1814 = vmatprep.subr.bf16.mxu0 0
        %1815 = vmatpush1.bf16.xpose.msra.mxu0 0
        %1816 = vmatprep.subr.bf16.mxu0 0
        %1817 = vmatpush1.bf16.xpose.msra.mxu0 0
        %1818 = vmatprep.subr.bf16.mxu0 0
        %1819 = vmatpush1.bf16.xpose.msra.mxu0 0
        %1820 = vmatprep.subr.bf16.mxu0 0
        %1821 = vmatpush1.bf16.xpose.msra.mxu0 0
        %1822 = vmatprep.mubr.bf16.mxu0 0
        %1823 = vmatmul.mubr.bf16.gmra.mrb[0].mxu0 %v1788
        %v1824 = vpop.f32.mrb[0].mxu0
        %v1825 = vadd.f32 0.0, %v1824
        %v1826 = vpop.f32.mrb[0].mxu0
        %v1827 = vpop.f32.mrb[0].mxu0
        %v1828 = vpop.f32.mrb[0].mxu0
        %1829 = vdwg.mxu0
        %v1830 = vmul.f32 %v1825, 0.25
        %v1831 = vadd.f32 %v1830, %v1042
        %v1832 = vsel %vm1045, %v1831, -inf
        %1833 = vmax.xlane.f32.xlu0 %v1832
        %v1834 = vpop.xlane.xlu0 %1833
        %v1835 = vsub.f32 %v1831, %v1834
        %v1836 = vmul.f32 %v1835, 1.442695
        %v1837 = vpow.pop %v1836
        %v1838 = vsel %vm1045, %v1837, 0.0
        %1839 = vadd.xlane.f32.xlu0 %v1838
        %v1840 = vpop.xlane.xlu0 %1839
        %v1841 = vrcp.pop %v1840
        %v1842 = vmul.f32 %v1837, %v1841
        %v1843 = vpack.c.bf16 %v1842, %v1842
        %v1845 = vsel %vm1045, %v1843, 0
        %1847 = vmatprep.subr.bf16.mxu0 0
        %1848 = vmatpush1.bf16.msra.mxu0 %v1741
        %1849 = vmatprep.subr.bf16.mxu0 0
        %1850 = vmatpush1.bf16.msra.mxu0 0
        %1851 = vmatprep.subr.bf16.mxu0 0
        %1852 = vmatpush1.bf16.msra.mxu0 0
        %1853 = vmatprep.subr.bf16.mxu0 0
        %1854 = vmatpush1.bf16.msra.mxu0 0
        %1855 = vmatprep.subr.bf16.mxu0 0
        %1856 = vmatpush1.bf16.msra.mxu0 0
        %1857 = vmatprep.subr.bf16.mxu0 0
        %1858 = vmatpush1.bf16.msra.mxu0 0
        %1859 = vmatprep.subr.bf16.mxu0 0
        %1860 = vmatpush1.bf16.msra.mxu0 0
        %1861 = vmatprep.subr.bf16.mxu0 0
        %1862 = vmatpush1.bf16.msra.mxu0 0
        %1863 = vmatprep.subr.bf16.mxu0 0
        %1864 = vmatpush1.bf16.msra.mxu0 0
        %1865 = vmatprep.subr.bf16.mxu0 0
        %1866 = vmatpush1.bf16.msra.mxu0 0
        %1867 = vmatprep.subr.bf16.mxu0 0
        %1868 = vmatpush1.bf16.msra.mxu0 0
        %1869 = vmatprep.subr.bf16.mxu0 0
        %1870 = vmatpush1.bf16.msra.mxu0 0
        %1871 = vmatprep.subr.bf16.mxu0 0
        %1872 = vmatpush1.bf16.msra.mxu0 0
        %1873 = vmatprep.subr.bf16.mxu0 0
        %1874 = vmatpush1.bf16.msra.mxu0 0
        %1875 = vmatprep.subr.bf16.mxu0 0
        %1876 = vmatpush1.bf16.msra.mxu0 0
        %1877 = vmatprep.subr.bf16.mxu0 0
        %1878 = vmatpush1.bf16.msra.mxu0 0
        %1879 = vmatprep.mubr.bf16.mxu0 0
        %1880 = vmatmul.mubr.bf16.gmra.mrb[0].mxu0 %v1845
        %v1881 = vpop.f32.mrb[0].mxu0
        %v1882 = vadd.f32 0.0, %v1881
        %v1883 = vpop.f32.mrb[0].mxu0
        %v1884 = vpop.f32.mrb[0].mxu0
        %v1885 = vpop.f32.mrb[0].mxu0
        %1886 = vdwg.mxu0
        %v1887 = vmul.f32 %v1882, %v792
        %v1888 = vadd.f32 %v1784, %v1887
        %v1889 = vpack.c.bf16 %v1888, %v1888
        %s1890 = scalar_lea.vmem %s10, 16
        %v1891 = vld [vmem:[%s1890] sm:$0xf]
        %v1892 = vld [vmem:[%s1890 + $0x4] sm:$0xf]
        %v1893 = vld [vmem:[%s1890 + $0x8] sm:$0xf]
        %v1894 = vld [vmem:[%s1890 + $0xc] sm:$0xf]
        %s1895 = scalar_lea.vmem %s11, 1
        %v1896 = vld [vmem:[%s1895] sm:$0x1]
        %v1898 = vlaneseq
        %v1899 = vshrl.u32 %v1898, 7
        %v1900 = vsub.s32 0, %v1899
        %v1901 = vrot.slane %v1896, %v1900
        %v1907 = vunpack.c.l.b16 %v1891
        %v1908 = vunpack.c.l.b16 %v1892
        %v1909 = vunpack.c.l.b16 %v1893
        %v1910 = vunpack.c.l.b16 %v1894
        %v1911 = vpack.c.b16 %v1908, %v1907
        %v1912 = vpack.c.b16 %v1910, %v1909
        %v1916 = vsel %vm817, %v1889, 0
        %1918 = vmatprep.subr.bf16.mxu0 0
        %1919 = vmatpush1.bf16.msra.mxu0 %v1911
        %1920 = vmatprep.subr.bf16.mxu0 0
        %1921 = vmatpush1.bf16.msra.mxu0 %v1912
        %1922 = vmatprep.subr.bf16.mxu0 0
        %1923 = vmatpush1.bf16.msra.mxu0 0
        %1924 = vmatprep.subr.bf16.mxu0 0
        %1925 = vmatpush1.bf16.msra.mxu0 0
        %1926 = vmatprep.subr.bf16.mxu0 0
        %1927 = vmatpush1.bf16.msra.mxu0 0
        %1928 = vmatprep.subr.bf16.mxu0 0
        %1929 = vmatpush1.bf16.msra.mxu0 0
        %1930 = vmatprep.subr.bf16.mxu0 0
        %1931 = vmatpush1.bf16.msra.mxu0 0
        %1932 = vmatprep.subr.bf16.mxu0 0
        %1933 = vmatpush1.bf16.msra.mxu0 0
        %1934 = vmatprep.subr.bf16.mxu0 0
        %1935 = vmatpush1.bf16.msra.mxu0 0
        %1936 = vmatprep.subr.bf16.mxu0 0
        %1937 = vmatpush1.bf16.msra.mxu0 0
        %1938 = vmatprep.subr.bf16.mxu0 0
        %1939 = vmatpush1.bf16.msra.mxu0 0
        %1940 = vmatprep.subr.bf16.mxu0 0
        %1941 = vmatpush1.bf16.msra.mxu0 0
        %1942 = vmatprep.subr.bf16.mxu0 0
        %1943 = vmatpush1.bf16.msra.mxu0 0
        %1944 = vmatprep.subr.bf16.mxu0 0
        %1945 = vmatpush1.bf16.msra.mxu0 0
        %1946 = vmatprep.subr.bf16.mxu0 0
        %1947 = vmatpush1.bf16.msra.mxu0 0
        %1948 = vmatprep.subr.bf16.mxu0 0
        %1949 = vmatpush1.bf16.msra.mxu0 0
        %1950 = vmatprep.mubr.bf16.mxu0 0
        %1951 = vmatmul.mubr.bf16.gmra.mrb[0].mxu0 %v1916
        %v1952 = vpop.f32.mrb[0].mxu0
        %v1953 = vadd.f32 %v1901, %v1952
        %v1954 = vpop.f32.mrb[0].mxu0
        %v1955 = vpop.f32.mrb[0].mxu0
        %v1956 = vpop.f32.mrb[0].mxu0
        %1957 = vdwg.mxu0
        %v1958 = vadd.f32 %v1473, %v1953
        %s1959 = scalar_lea.vmem %s16, 1
        %v1960 = vld [vmem:[%s1959] sm:$0x1]
        %s1961 = scalar_lea.vmem %s17, 1
        %v1962 = vld [vmem:[%s1961] sm:$0x1]
        %v1963 = vsel %vm817, %v1958, 0.0
        %1964 = vadd.xlane.f32.xlu0 %v1963
        %v1965 = vpop.xlane.xlu0 %1964
        %v1966 = vmul.f32 %v1965, %v1284
        %v1967 = vsub.f32 %v1958, %v1966
        %v1968 = vmul.f32 %v1967, %v1967
        %v1969 = vsel %vm817, %v1968, 0.0
        %1970 = vadd.xlane.f32.xlu0 %v1969
        %v1971 = vpop.xlane.xlu0 %1970
        %v1972 = vmul.f32 %v1971, %v1284
        %v1973 = vadd.f32 %v1972, 1e-05
        %v1974 = vrsqrt.pop %v1973
        %v1975 = vmul.f32 %v1967, %v1974
        %v1977 = vlaneseq
        %v1978 = vshrl.u32 %v1977, 7
        %v1979 = vsub.s32 0, %v1978
        %v1980 = vrot.slane %v1960, %v1979
        %v1982 = vmul.f32 %v1975, %v1980
        %v1984 = vlaneseq
        %v1985 = vshrl.u32 %v1984, 7
        %v1986 = vsub.s32 0, %v1985
        %v1987 = vrot.slane %v1962, %v1986
        %v1989 = vadd.f32 %v1982, %v1987
        %v1990 = vpack.c.bf16 %v1989, %v1989
        %s1991 = scalar_lea.vmem [#allocation15], 16
        %v1992 = vld [vmem:[%s1991] sm:$0xf]
        %v1993 = vld [vmem:[%s1991 + $0x4] sm:$0xf]
        %v1994 = vld [vmem:[%s1991 + $0x8] sm:$0xf]
        %v1995 = vld [vmem:[%s1991 + $0xc] sm:$0xf]
        %s1996 = scalar_lea.vmem %s13, 1
        %v1997 = vld [vmem:[%s1996] sm:$0x1]
        %v1999 = vlaneseq
        %v2000 = vshrl.u32 %v1999, 7
        %v2001 = vsub.s32 0, %v2000
        %v2002 = vrot.slane %v1997, %v2001
        %v2008 = vunpack.c.l.b16 %v1992
        %v2009 = vunpack.c.l.b16 %v1993
        %v2010 = vunpack.c.l.b16 %v1994
        %v2011 = vunpack.c.l.b16 %v1995
        %v2012 = vpack.c.b16 %v2009, %v2008
        %v2013 = vpack.c.b16 %v2011, %v2010
        %v2017 = vsel %vm817, %v1990, 0
        %2019 = vmatprep.subr.bf16.mxu0 0
        %2020 = vmatpush1.bf16.msra.mxu0 %v2012
        %2021 = vmatprep.subr.bf16.mxu0 0
        %2022 = vmatpush1.bf16.msra.mxu0 %v2013
        %2023 = vmatprep.subr.bf16.mxu0 0
        %2024 = vmatpush1.bf16.msra.mxu0 0
        %2025 = vmatprep.subr.bf16.mxu0 0
        %2026 = vmatpush1.bf16.msra.mxu0 0
        %2027 = vmatprep.subr.bf16.mxu0 0
        %2028 = vmatpush1.bf16.msra.mxu0 0
        %2029 = vmatprep.subr.bf16.mxu0 0
        %2030 = vmatpush1.bf16.msra.mxu0 0
        %2031 = vmatprep.subr.bf16.mxu0 0
        %2032 = vmatpush1.bf16.msra.mxu0 0
        %2033 = vmatprep.subr.bf16.mxu0 0
        %2034 = vmatpush1.bf16.msra.mxu0 0
        %2035 = vmatprep.subr.bf16.mxu0 0
        %2036 = vmatpush1.bf16.msra.mxu0 0
        %2037 = vmatprep.subr.bf16.mxu0 0
        %2038 = vmatpush1.bf16.msra.mxu0 0
        %2039 = vmatprep.subr.bf16.mxu0 0
        %2040 = vmatpush1.bf16.msra.mxu0 0
        %2041 = vmatprep.subr.bf16.mxu0 0
        %2042 = vmatpush1.bf16.msra.mxu0 0
        %2043 = vmatprep.subr.bf16.mxu0 0
        %2044 = vmatpush1.bf16.msra.mxu0 0
        %2045 = vmatprep.subr.bf16.mxu0 0
        %2046 = vmatpush1.bf16.msra.mxu0 0
        %2047 = vmatprep.subr.bf16.mxu0 0
        %2048 = vmatpush1.bf16.msra.mxu0 0
        %2049 = vmatprep.subr.bf16.mxu0 0
        %2050 = vmatpush1.bf16.msra.mxu0 0
        %2051 = vmatprep.mubr.bf16.mxu0 0
        %2052 = vmatmul.mubr.bf16.gmra.mrb[0].mxu0 %v2017
        %v2053 = vpop.f32.mrb[0].mxu0
        %v2054 = vadd.f32 %v2002, %v2053
        %v2055 = vpop.f32.mrb[0].mxu0
        %v2056 = vpop.f32.mrb[0].mxu0
        %v2057 = vpop.f32.mrb[0].mxu0
        %2058 = vdwg.mxu0
        %v2059 = vmax.f32 %v2054, 0.0
        %v2060 = vpack.c.bf16 %v2059, %v2059
        %s2061 = scalar_lea.vmem [#allocation17], 16
        %v2062 = vld [vmem:[%s2061] sm:$0xf]
        %v2063 = vld [vmem:[%s2061 + $0x4] sm:$0xf]
        %v2064 = vld [vmem:[%s2061 + $0x8] sm:$0xf]
        %v2065 = vld [vmem:[%s2061 + $0xc] sm:$0xf]
        %s2066 = scalar_lea.vmem %s15, 1
        %v2067 = vld [vmem:[%s2066] sm:$0x1]
        %v2069 = vlaneseq
        %v2070 = vshrl.u32 %v2069, 7
        %v2071 = vsub.s32 0, %v2070
        %v2072 = vrot.slane %v2067, %v2071
        %v2078 = vunpack.c.l.b16 %v2062
        %v2079 = vunpack.c.l.b16 %v2063
        %v2080 = vunpack.c.l.b16 %v2064
        %v2081 = vunpack.c.l.b16 %v2065
        %v2082 = vpack.c.b16 %v2079, %v2078
        %v2083 = vpack.c.b16 %v2081, %v2080
        %v2087 = vsel %vm817, %v2060, 0
        %2089 = vmatprep.subr.bf16.mxu0 0
        %2090 = vmatpush1.bf16.msra.mxu0 %v2082
        %2091 = vmatprep.subr.bf16.mxu0 0
        %2092 = vmatpush1.bf16.msra.mxu0 %v2083
        %2093 = vmatprep.subr.bf16.mxu0 0
        %2094 = vmatpush1.bf16.msra.mxu0 0
        %2095 = vmatprep.subr.bf16.mxu0 0
        %2096 = vmatpush1.bf16.msra.mxu0 0
        %2097 = vmatprep.subr.bf16.mxu0 0
        %2098 = vmatpush1.bf16.msra.mxu0 0
        %2099 = vmatprep.subr.bf16.mxu0 0
        %2100 = vmatpush1.bf16.msra.mxu0 0
        %2101 = vmatprep.subr.bf16.mxu0 0
        %2102 = vmatpush1.bf16.msra.mxu0 0
        %2103 = vmatprep.subr.bf16.mxu0 0
        %2104 = vmatpush1.bf16.msra.mxu0 0
        %2105 = vmatprep.subr.bf16.mxu0 0
        %2106 = vmatpush1.bf16.msra.mxu0 0
        %2107 = vmatprep.subr.bf16.mxu0 0
        %2108 = vmatpush1.bf16.msra.mxu0 0
        %2109 = vmatprep.subr.bf16.mxu0 0
        %2110 = vmatpush1.bf16.msra.mxu0 0
        %2111 = vmatprep.subr.bf16.mxu0 0
        %2112 = vmatpush1.bf16.msra.mxu0 0
        %2113 = vmatprep.subr.bf16.mxu0 0
        %2114 = vmatpush1.bf16.msra.mxu0 0
        %2115 = vmatprep.subr.bf16.mxu0 0
        %2116 = vmatpush1.bf16.msra.mxu0 0
        %2117 = vmatprep.subr.bf16.mxu0 0
        %2118 = vmatpush1.bf16.msra.mxu0 0
        %2119 = vmatprep.subr.bf16.mxu0 0
        %2120 = vmatpush1.bf16.msra.mxu0 0
        %2121 = vmatprep.mubr.bf16.mxu0 0
        %2122 = vmatmul.mubr.bf16.gmra.mrb[0].mxu0 %v2087
        %v2123 = vpop.f32.mrb[0].mxu0
        %v2124 = vadd.f32 %v2072, %v2123
        %v2125 = vpop.f32.mrb[0].mxu0
        %v2126 = vpop.f32.mrb[0].mxu0
        %v2127 = vpop.f32.mrb[0].mxu0
        %2128 = vdwg.mxu0
        %v2129 = vadd.f32 %v1989, %v2124
        %s2130 = scalar_lea.vmem %s18, 1
        %v2131 = vld [vmem:[%s2130] sm:$0x1]
        %s2132 = scalar_lea.vmem %s19, 1
        %v2133 = vld [vmem:[%s2132] sm:$0x1]
        %v2134 = vsel %vm817, %v2129, 0.0
        %2135 = vadd.xlane.f32.xlu0 %v2134
        %v2136 = vpop.xlane.xlu0 %2135
        %v2137 = vmul.f32 %v2136, %v1284
        %v2138 = vsub.f32 %v2129, %v2137
        %v2139 = vmul.f32 %v2138, %v2138
        %v2140 = vsel %vm817, %v2139, 0.0
        %2141 = vadd.xlane.f32.xlu0 %v2140
        %v2142 = vpop.xlane.xlu0 %2141
        %v2143 = vmul.f32 %v2142, %v1284
        %v2144 = vadd.f32 %v2143, 1e-05
        %v2145 = vrsqrt.pop %v2144
        %v2146 = vmul.f32 %v2138, %v2145
        %v2148 = vlaneseq
        %v2149 = vshrl.u32 %v2148, 7
        %v2150 = vsub.s32 0, %v2149
        %v2151 = vrot.slane %v2131, %v2150
        %v2153 = vmul.f32 %v2146, %v2151
        %v2155 = vlaneseq
        %v2156 = vshrl.u32 %v2155, 7
        %v2157 = vsub.s32 0, %v2156
        %v2158 = vrot.slane %v2133, %v2157
        %v2160 = vadd.f32 %v2153, %v2158
        %s2161 = sld [smem:[#allocation2]]
        %v2162 = vstv %s2161
        %v2163 = vmul.f32 %v2162, %v775
        %s2164 = ssub.f32 1.0, %s2161
        %v2165 = vstv %s2164
        %v2166 = vmul.f32 %v2165, %v2160
        %v2167 = vadd.f32 %v2163, %v2166
        %2168 = vst.msk [vmem:[%s770] sm:$0xff] %vm817, %v2167
        %s2169 = sand.u32 %s480, 1
        %s2170 = scalar_lea.sflag [#allocation5], %s2169
        %s2171 = sand.u32 %s480, 1
        %s2172 = smul.addr %s2171, 8
        %s2173 = scalar_lea.vmem [#allocation18], %s2172
        // Predicated region
        $region137: #{tpu_custom_call.1} parent=99 // pred_check
          %p2174 = pneg %p490
        $region138: #{tpu_custom_call.1} parent=99 // pred_check_branch
          %2176 = sbr.rel (%p2174) target = $region140
        $region139: #{tpu_custom_call.1} parent=99 // pred_region
          %s2178 = ssub.s32 128, 128
          %2179 = vsyncadd %s2170, %s2178
          %s2180 = smul.addr %s42, 128
          %s2181 = scalar_lea.hbm %s20, %s2180
          %s2183 = sshll.u32 %s2173, 4
          %s2184 = int_to_ptr.vmem [resolvable:$true] %s2183
          %2186 = dma.vmem_to_hbm [thread:$0]  %s2184, 128, %s2181, %s2170
        $region140: #{tpu_custom_call.1} parent=99 // pred_fallthru
          _
      $region100: #{tpu_custom_call.1} parent=5 // pred_fallthru
        _
      %p2187 = scmp.le.s32.totalorder 2, %s37
      // Predicated region
      $region141: #{tpu_custom_call.1} parent=5 // pred_check
        %p2188 = pneg %p2187
      $region142: #{tpu_custom_call.1} parent=5 // pred_check_branch
        %2190 = sbr.rel (%p2188) target = $region144
      $region143: #{tpu_custom_call.1} parent=5 // pred_region
        %s2191 = ssub.s32 %s37, 2
        // Predicated region
        $region145: #{tpu_custom_call.1} parent=143 // pred_check
          %p2192 = pneg %p496
        $region146: #{tpu_custom_call.1} parent=143 // pred_check_branch
          %2194 = sbr.rel (%p2192) target = $region148
        $region147: #{tpu_custom_call.1} parent=143 // pred_region
          %s2195 = sand.u32 %s481, 1
          %s2196 = scalar_lea.sflag [#allocation5], %s2195
          %s2197 = sand.u32 %s481, 1
          %s2198 = smul.addr %s2197, 8
          %s2199 = scalar_lea.vmem [#allocation18], %s2198
          %2200 = dma.done %s2196, 128
        $region148: #{tpu_custom_call.1} parent=143 // pred_fallthru
          _
      $region144: #{tpu_custom_call.1} parent=5 // pred_fallthru
        _
    $region6: #{tpu_custom_call.1} parent=1 // loop_footer
      %s41 = sadd.s32 1, %s37
    $region7: #{tpu_custom_call.1} parent=1 // loop_footer_branch
      %36 = sbr.rel target = $region3
    $region8: #{tpu_custom_call.1} parent=1 // loop_exit
      _
    %2201 = vsyncpa [#allocation4], 1
    %s2202 = scalar_lea.sflag [#allocation4], 1
    %2203 = vsyncpa %s2202, 1
    %2204 = vsyncpa [#allocation7], 1
    %2205 = vsyncpa [#allocation10], 1
    %2206 = vsyncpa [#allocation13], 1
    %2207 = vsyncpa [#allocation16], 1
    %2208 = vsyncpa [#allocation5], 1
    %s2209 = scalar_lea.sflag [#allocation5], 1
    %2210 = vsyncpa %s2209, 1

</llo_original>
